<compile_context>
chip_gen: v7x
topology: tpu7x:2x2x1
jax: 0.10.0
libtpu: 0.0.40
codegen_flags: <defaults>
</compile_context>

<pallas_src>
import functools

import jax
import jax.numpy as jnp
from jax.experimental import pallas as pl
from jax.experimental.pallas import tpu as pltpu

MAX_LENGTH = 10      # L : encoder length / attention width
HIDDEN = 32          # H
OUTPUT_SIZE = 10     # O : vocab size
BATCH = 128          # the module's global batch_size
N_LAYERS = 1

H, O, L = HIDDEN, OUTPUT_SIZE, MAX_LENGTH
LANES = 128          # TPU lane width: every packed slab is 128 lanes wide
O_PAD = 16           # vocab rows padded to one bf16 sublane tile

# ---- weight/bias slab layout: one (160, 128) bf16 array; every row block starts
# at a multiple of 16, so each in-kernel static slice is a whole-(16,128)-tile view.
R_E = 0        # rows [0,16)   : embedding @ [w_comb_e | w_attn_e]   cols [0:H)=comb, [H:H+L)=attn
R_HID = 16     # rows [16,48)  : [w_hh_r|w_hh_z|w_hh_n|w_attn_h]     cols [0:3H) gates, [3H:3H+L) attn
R_IH = 48      # rows [48,80)  : [w_ih_r|w_ih_z|w_ih_n]              cols [0:3H)
R_COMB = 80    # rows [80,112) : w_comb_a                            cols [0:H)
R_OUT = 112    # rows [112,144): w_out                               cols [0:O)
R_BIAS = 144   # rows [144,160): bias rows 0..3 column-aligned with the matmul results
SLAB_ROWS = 160
PACK_W = O + H + L   # 52 used lanes of the packed (B,128) output


# ----------------------------------------------------------------------------- step math
def _decoder_step_math(ids, h0, enc_ref, w_ref, n_layers):
    """One AttnDecoderRNN step on (B,*) slabs.

    ids: (B,1) int32 value; h0: (B,H) f32 value; enc_ref: (L,B,H) bf16 ref;
    w_ref: (SLAB_ROWS, 128) bf16 ref.  Returns (log_probs, h_new, attn_w) in f32.
    """
    f32, bf16 = jnp.float32, jnp.bfloat16
    B = ids.shape[0]
    h = h0.astype(f32)

    # Bias rows: one (16,128) tile load, rows column-aligned with the matmul results.
    bias = w_ref[R_BIAS:R_BIAS + 16, :].astype(f32)
    b_e, b_hh, b_ih, b_o = bias[0:1], bias[1:2], bias[2:3], bias[3:4]

    # Embedding lookup + both embedding projections in ONE one-hot MXU matmul
    # (embedding @ [w_comb_e | w_attn_e] is constant-folded into the slab).
    col = jax.lax.broadcasted_iota(jnp.int32, (B, O_PAD), 1)
    one_hot = (col == ids).astype(f32).astype(bf16)                    # (B, 16)
    # TODO(synk): nn.Dropout(p=0.1) treated as identity (eval / inference mode).
    eh = jnp.dot(one_hot, w_ref[R_E:R_E + O_PAD, :],
                 preferred_element_type=f32) + b_e                     # (B, 128)

    # hid @ [w_hh_r | w_hh_z | w_hh_n | w_attn_h]   (shared-LHS fusion, N=106 <= 128)
    hidf = jnp.dot(h.astype(bf16), w_ref[R_HID:R_HID + H, :],
                   preferred_element_type=f32) + b_hh                  # (B, 128)

    # attn_weights = softmax(emb @ W_attn_e + hid @ W_attn_h + b_attn)
    logits = eh[:, H:H + L] + hidf[:, 3 * H:3 * H + L]                 # (B, L)
    m = jnp.max(logits, axis=1, keepdims=True)
    e = jnp.exp(logits - m)
    attn_w = e * pl.reciprocal(jnp.sum(e, axis=1, keepdims=True), approx=True)

    # attn_applied[b] = sum_l attn_w[b,l] * enc[l,b,:]  -- per-l VPU FMA on (B,H)
    # slabs; enc kept bf16 in VMEM, upcast at use; accumulation stays f32 (v5e-safe).
    attn_applied = attn_w[:, 0:1] * enc_ref[0].astype(f32)
    for l in range(1, L):
        attn_applied = attn_applied + attn_w[:, l:l + 1] * enc_ref[l].astype(f32)

    # attn_combine: the embedding part (+ b_comb) already lives in eh[:, 0:H].
    comb = jnp.dot(attn_applied.astype(bf16), w_ref[R_COMB:R_COMB + H, :],
                   preferred_element_type=f32)
    x_in = eh[:, 0:H] + comb[:, 0:H]                                   # (B, H)

    # n_layers x (ReLU + GRU cell).  Gates r|z|n sit at identical 32-lane offsets
    # in gi and gh, so the gate math needs no lane realignment.
    for layer in range(n_layers):
        x = jnp.maximum(x_in, 0.0)
        gi = jnp.dot(x.astype(bf16), w_ref[R_IH:R_IH + H, :],
                     preferred_element_type=f32) + b_ih                # (B, 128)
        if layer == 0:
            gh = hidf                                                  # reuse (h == hid)
        else:
            gh = jnp.dot(h.astype(bf16), w_ref[R_HID:R_HID + H, :],
                         preferred_element_type=f32) + b_hh
        r = jax.nn.sigmoid(gi[:, 0:H] + gh[:, 0:H])
        z = jax.nn.sigmoid(gi[:, H:2 * H] + gh[:, H:2 * H])
        n = jnp.tanh(gi[:, 2 * H:3 * H] + r * gh[:, 2 * H:3 * H])
        h = (1.0 - z) * n + z * h
        x_in = h

    # output = log_softmax(h @ W_out + b_out)
    oo = jnp.dot(h.astype(bf16), w_ref[R_OUT:R_OUT + H, :],
                 preferred_element_type=f32) + b_o
    lg = oo[:, 0:O]
    mo = jnp.max(lg, axis=1, keepdims=True)
    sh = lg - mo
    lse = jnp.log(jnp.sum(jnp.exp(sh), axis=1, keepdims=True))
    logp = sh - lse
    return logp, h, attn_w


def _store_packed(out2d, logp, h_new, attn_w):
    """Lane-dense packed (B,128) output: [0:O)=log-probs, [O:O+H)=hidden,
    [O+H:O+H+L)=attn weights, tail zeroed.  One output array -> one writeback DMA."""
    B = logp.shape[0]
    out2d[:, 0:O] = logp
    out2d[:, O:O + H] = h_new
    out2d[:, O + H:O + H + L] = attn_w
    out2d[:, PACK_W:] = jnp.zeros((B, LANES - PACK_W), jnp.float32)


# ----------------------------------------------------------------------------- kernels
def _attn_decoder_step_kernel(ids_ref, hid_ref, enc_ref, w_ref, out_ref, *, n_layers):
    logp, h_new, attn_w = _decoder_step_math(
        ids_ref[...], hid_ref[...], enc_ref, w_ref, n_layers)
    _store_packed(out_ref, logp, h_new, attn_w)


def _attn_decoder_seq_kernel(ids_ref, hid0_ref, enc_ref, w_ref, out_ref, h_scr, *, n_layers):
    t = pl.program_id(0)

    @pl.when(t == 0)
    def _():
        h_scr[...] = hid0_ref[...]

    logp, h_new, attn_w = _decoder_step_math(
        ids_ref[0], h_scr[...], enc_ref, w_ref, n_layers)
    h_scr[...] = h_new                         # carry hidden state across grid steps
    _store_packed(out_ref.at[0], logp, h_new, attn_w)


# ----------------------------------------------------------------------------- wrappers
def _vmem_spec():
    return pl.BlockSpec(memory_space=pltpu.MemorySpace.VMEM)


@functools.partial(jax.jit, static_argnames=("n_layers",))
def attn_decoder_forward(w_slab, input_ids, hidden, encoder_outputs, n_layers=N_LAYERS):
    """Single decoder step == the module's forward.
    input_ids: (B,1) int; hidden: (1,B,H) f32; encoder_outputs: (L,B,H) natural layout."""
    B = input_ids.shape[0]
    packed = pl.pallas_call(
        functools.partial(_attn_decoder_step_kernel, n_layers=n_layers),
        in_specs=[_vmem_spec() for _ in range(4)],
        out_specs=_vmem_spec(),
        out_shape=jax.ShapeDtypeStruct((B, LANES), jnp.float32),
    )(input_ids.astype(jnp.int32), hidden[0],
      encoder_outputs.astype(jnp.bfloat16), w_slab)
    out = packed[:, 0:O]
    h_new = packed[:, O:O + H]
    attn_w = packed[:, O + H:O + H + L]
    # Match PyTorch return shapes: (B,O), (1,B,H), (B,1,L)
    return out, h_new[None, :, :], attn_w[:, None, :]


@functools.partial(jax.jit, static_argnames=("n_layers",))
def attn_decoder_decode_fused(w_slab, input_ids_seq, hidden0, encoder_outputs,
                              n_layers=N_LAYERS):
    """T teacher-forced decoder steps fused in ONE pallas_call (grid over steps).
    Weights / encoder outputs have constant index_maps -> fetched once, VMEM-resident;
    the hidden state is carried step-to-step in VMEM scratch."""
    T, B, _ = input_ids_seq.shape
    packed = pl.pallas_call(
        functools.partial(_attn_decoder_seq_kernel, n_layers=n_layers),
        grid=(T,),
        in_specs=[
            pl.BlockSpec((1, B, 1), lambda t: (t, 0, 0)),          # ids[t]
            pl.BlockSpec((B, H), lambda t: (0, 0)),                # initial hidden
            pl.BlockSpec((L, B, H), lambda t: (0, 0, 0)),          # encoder (resident)
            pl.BlockSpec((SLAB_ROWS, LANES), lambda t: (0, 0)),    # weights (resident)
        ],
        out_specs=pl.BlockSpec((1, B, LANES), lambda t: (t, 0, 0)),
        out_shape=jax.ShapeDtypeStruct((T, B, LANES), jnp.float32),
        scratch_shapes=[pltpu.VMEM((B, H), jnp.float32)],
        compiler_params=pltpu.CompilerParams(dimension_semantics=("arbitrary",)),
    )(input_ids_seq.astype(jnp.int32), hidden0[0],
      encoder_outputs.astype(jnp.bfloat16), w_slab)
    outs = packed[:, :, 0:O]
    h_all = packed[:, :, O:O + H]
    attn_all = packed[:, :, O + H:O + H + L]
    return outs, h_all, attn_all


# ----------------------------------------------------------------------------- params
def init_params(key, hidden_size=HIDDEN, output_size=OUTPUT_SIZE, max_length=MAX_LENGTH):
    ks = jax.random.split(key, 10)

    def uniform(k, shape, fan_in):
        bound = 1.0 / jnp.sqrt(fan_in)
        return jax.random.uniform(k, shape, jnp.float32, -bound, bound)

    Hh, Oo, Ll = hidden_size, output_size, max_length
    return {
        # nn.Embedding(output_size, hidden_size)
        "embedding": jax.random.normal(ks[0], (Oo, Hh), jnp.float32),
        # nn.Linear(2H, L) — stored transposed (in, out) for x @ W
        "w_attn": uniform(ks[1], (2 * Hh, Ll), 2 * Hh),
        "b_attn": uniform(ks[2], (Ll,), 2 * Hh),
        # nn.Linear(2H, H)
        "w_comb": uniform(ks[3], (2 * Hh, Hh), 2 * Hh),
        "b_comb": uniform(ks[4], (Hh,), 2 * Hh),
        # nn.GRU(H, H): gate order [r,z,n]; stored transposed (H, 3H)
        "w_ih": uniform(ks[5], (Hh, 3 * Hh), Hh),
        "b_ih": uniform(ks[6], (3 * Hh,), Hh),
        "w_hh": uniform(ks[7], (Hh, 3 * Hh), Hh),
        "b_hh": uniform(ks[8], (3 * Hh,), Hh),
        # nn.Linear(H, O)
        "w_out": uniform(ks[9], (Hh, Oo), Hh),
        "b_out": jnp.zeros((Oo,), jnp.float32),
    }


def build_weight_slab(p):
    """One-time packing of all weights/biases into a single (160,128) bf16 slab."""
    emb = p["embedding"]                                   # (O, H)
    w_attn_e, w_attn_h = p["w_attn"][:H], p["w_attn"][H:]  # (H,L), (H,L)
    w_comb_e, w_comb_a = p["w_comb"][:H], p["w_comb"][H:]  # (H,H), (H,H)

    slab = jnp.zeros((SLAB_ROWS, LANES), jnp.float32)
    # E block: constant-folded embedding projections.
    slab = slab.at[R_E:R_E + O, 0:H].set(emb @ w_comb_e)
    slab = slab.at[R_E:R_E + O, H:H + L].set(emb @ w_attn_e)
    # HID block: [w_hh_r | w_hh_z | w_hh_n | w_attn_h]
    slab = slab.at[R_HID:R_HID + H, 0:3 * H].set(p["w_hh"])
    slab = slab.at[R_HID:R_HID + H, 3 * H:3 * H + L].set(w_attn_h)
    # IH block
    slab = slab.at[R_IH:R_IH + H, 0:3 * H].set(p["w_ih"])
    # COMB block
    slab = slab.at[R_COMB:R_COMB + H, 0:H].set(w_comb_a)
    # OUT block
    slab = slab.at[R_OUT:R_OUT + H, 0:O].set(p["w_out"])
    # bias rows, column-aligned with the corresponding matmul results
    slab = slab.at[R_BIAS + 0, 0:H].set(p["b_comb"])
    slab = slab.at[R_BIAS + 0, H:H + L].set(p["b_attn"])
    slab = slab.at[R_BIAS + 1, 0:3 * H].set(p["b_hh"])
    slab = slab.at[R_BIAS + 2, 0:3 * H].set(p["b_ih"])
    slab = slab.at[R_BIAS + 3, 0:O].set(p["b_out"])
    return slab.astype(jnp.bfloat16)


# ----------------------------------------------------------------------------- reference
def _reference_forward(params, input_ids, hidden, encoder_outputs, n_layers=N_LAYERS):
    """Pure-JAX f32 reference of the PyTorch forward."""
    Hh = params["embedding"].shape[1]
    emb = params["embedding"][input_ids[:, 0]]
    hid = hidden[0]
    enc = jnp.transpose(encoder_outputs, (1, 0, 2))
    cat_eh = jnp.concatenate([emb, hid], axis=1)
    attn_w = jax.nn.softmax(cat_eh @ params["w_attn"] + params["b_attn"], axis=1)
    attn_applied = jnp.einsum("bl,blh->bh", attn_w, enc)
    out_x = jnp.concatenate([emb, attn_applied], axis=1) @ params["w_comb"] + params["b_comb"]
    h = hid
    for _ in range(n_layers):
        x = jnp.maximum(out_x, 0.0)
        gi = x @ params["w_ih"] + params["b_ih"]
        gh = h @ params["w_hh"] + params["b_hh"]
        r = jax.nn.sigmoid(gi[:, :Hh] + gh[:, :Hh])
        z = jax.nn.sigmoid(gi[:, Hh:2 * Hh] + gh[:, Hh:2 * Hh])
        n = jnp.tanh(gi[:, 2 * Hh:] + r * gh[:, 2 * Hh:])
        h = (1.0 - z) * n + z * h
        out_x = h
    out = jax.nn.log_softmax(out_x @ params["w_out"] + params["b_out"], axis=1)
    return out, h[None], attn_w[:, None, :]


# ----------------------------------------------------------------------------- main
if __name__ == "__main__":
    key = jax.random.PRNGKey(0)
    kp, ki, kh, ke, ks = jax.random.split(key, 5)

    params = init_params(kp)
    w_slab = build_weight_slab(params)

    input_ids = jax.random.randint(ki, (BATCH, 1), 0, OUTPUT_SIZE, dtype=jnp.int32)
    # initHidden() gives zeros; add a small perturbation so the GRU path is exercised.
    hidden = 0.1 * jax.random.normal(kh, (1, BATCH, HIDDEN), jnp.float32)
    encoder_outputs = jax.random.normal(ke, (MAX_LENGTH, BATCH, HIDDEN), jnp.float32)
    enc_bf16 = encoder_outputs.astype(jnp.bfloat16)   # shipped in bf16 (halves the biggest DMA)

    # ---- single decoder step (the module's forward) -------------------------------
    out, h_new, attn_w = attn_decoder_forward(w_slab, input_ids, hidden, enc_bf16)
    jax.block_until_ready((out, h_new, attn_w))

    ref_out, ref_h, ref_aw = _reference_forward(params, input_ids, hidden, encoder_outputs)
    assert out.shape == (BATCH, OUTPUT_SIZE)
    assert h_new.shape == (1, BATCH, HIDDEN)
    assert attn_w.shape == (BATCH, 1, MAX_LENGTH)
    # Tolerances account for bf16 MXU operands + EUP approximate reciprocal in softmax.
    assert jnp.allclose(attn_w, ref_aw, atol=1e-2, rtol=1e-2)
    assert jnp.allclose(h_new, ref_h, atol=2e-2, rtol=1e-2)
    assert jnp.allclose(out, ref_out, atol=5e-2, rtol=1e-2)

    # ---- fused T-step decode loop (structural opt: weights stay VMEM-resident) ----
    T = MAX_LENGTH
    ids_seq = jax.random.randint(ks, (T, BATCH, 1), 0, OUTPUT_SIZE, dtype=jnp.int32)
    outs, h_all, attn_all = attn_decoder_decode_fused(w_slab, ids_seq, hidden, enc_bf16)
    jax.block_until_ready((outs, h_all, attn_all))

    h_ref = hidden
    for t in range(T):
        r_out, h_ref, r_aw = _reference_forward(params, ids_seq[t], h_ref, encoder_outputs)
        assert jnp.allclose(outs[t], r_out, atol=1e-1, rtol=1e-2)
        assert jnp.allclose(h_all[t], h_ref[0], atol=5e-2, rtol=1e-2)
        assert jnp.allclose(attn_all[t], r_aw[:, 0, :], atol=3e-2, rtol=1e-2)

    print("KERNEL_OK")
</pallas_src>

<mosaic_0001>
module attributes {stable_mosaic.version = 11 : i64} {
  func.func @_attn_decoder_step_kernel(%arg0: memref<128x1xi32, #tpu.memory_space<vmem>>, %arg1: memref<128x32xf32, #tpu.memory_space<vmem>>, %arg2: memref<10x128x32xbf16, #tpu.memory_space<vmem>>, %arg3: memref<160x128xbf16, #tpu.memory_space<vmem>>, %arg4: memref<128x128xf32, #tpu.memory_space<vmem>>) attributes {dimension_semantics = [], scalar_prefetch = 0 : i64, scratch_operands = 0 : i64, tpu.core_type = #tpu.core_type<tc>} {
    %c0 = arith.constant 0 : index
    %c0_0 = arith.constant 0 : index
    %0 = vector.load %arg0[%c0, %c0_0] : memref<128x1xi32, #tpu.memory_space<vmem>>, vector<128x1xi32>
    %c0_1 = arith.constant 0 : index
    %c0_2 = arith.constant 0 : index
    %1 = vector.load %arg1[%c0_1, %c0_2] : memref<128x32xf32, #tpu.memory_space<vmem>>, vector<128x32xf32>
    %c144 = arith.constant 144 : index
    %c0_3 = arith.constant 0 : index
    %2 = vector.load %arg3[%c144, %c0_3] : memref<160x128xbf16, #tpu.memory_space<vmem>>, vector<16x128xbf16>
    %3 = arith.extf %2 : vector<16x128xbf16> to vector<16x128xf32>
    %4 = vector.extract_strided_slice %3 {offsets = [0, 0], sizes = [1, 128], strides = [1, 1]} : vector<16x128xf32> to vector<1x128xf32>
    %5 = vector.extract_strided_slice %3 {offsets = [1, 0], sizes = [1, 128], strides = [1, 1]} : vector<16x128xf32> to vector<1x128xf32>
    %6 = vector.extract_strided_slice %3 {offsets = [2, 0], sizes = [1, 128], strides = [1, 1]} : vector<16x128xf32> to vector<1x128xf32>
    %7 = vector.extract_strided_slice %3 {offsets = [3, 0], sizes = [1, 128], strides = [1, 1]} : vector<16x128xf32> to vector<1x128xf32>
    %8 = tpu.iota {dimensions = array<i32: 1>} : vector<128x16xi32>
    %9 = vector.broadcast %0 : vector<128x1xi32> to vector<128x16xi32>
    %10 = arith.cmpi eq, %8, %9 : vector<128x16xi32>
    %11 = arith.extui %10 : vector<128x16xi1> to vector<128x16xi32>
    %12 = arith.sitofp %11 : vector<128x16xi32> to vector<128x16xf32>
    %13 = arith.truncf %12 : vector<128x16xf32> to vector<128x16xbf16>
    %c0_4 = arith.constant 0 : index
    %c0_5 = arith.constant 0 : index
    %14 = vector.load %arg3[%c0_4, %c0_5] : memref<160x128xbf16, #tpu.memory_space<vmem>>, vector<16x128xbf16>
    %cst = arith.constant dense<0.000000e+00> : vector<128x128xf32>
    %15 = tpu.matmul %13, %14, %cst {dimension_numbers = #tpu.dot_dimension_numbers<[1], [0], [0], [1], [0, 0, 1, 1], [], []>} : vector<128x16xbf16>, vector<16x128xbf16>, vector<128x128xf32> -> vector<128x128xf32>
    %16 = vector.broadcast %4 : vector<1x128xf32> to vector<128x128xf32>
    %17 = arith.addf %15, %16 : vector<128x128xf32>
    %18 = arith.truncf %1 : vector<128x32xf32> to vector<128x32xbf16>
    %c16 = arith.constant 16 : index
    %c0_6 = arith.constant 0 : index
    %19 = vector.load %arg3[%c16, %c0_6] : memref<160x128xbf16, #tpu.memory_space<vmem>>, vector<32x128xbf16>
    %cst_7 = arith.constant dense<0.000000e+00> : vector<128x128xf32>
    %20 = tpu.matmul %18, %19, %cst_7 {dimension_numbers = #tpu.dot_dimension_numbers<[1], [0], [0], [1], [0, 0, 1, 1], [], []>} : vector<128x32xbf16>, vector<32x128xbf16>, vector<128x128xf32> -> vector<128x128xf32>
    %21 = vector.broadcast %5 : vector<1x128xf32> to vector<128x128xf32>
    %22 = arith.addf %20, %21 : vector<128x128xf32>
    %23 = vector.extract_strided_slice %17 {offsets = [0, 32], sizes = [128, 10], strides = [1, 1]} : vector<128x128xf32> to vector<128x10xf32>
    %24 = vector.extract_strided_slice %22 {offsets = [0, 96], sizes = [128, 10], strides = [1, 1]} : vector<128x128xf32> to vector<128x10xf32>
    %25 = arith.addf %23, %24 : vector<128x10xf32>
    %cst_8 = arith.constant dense<0xFF800000> : vector<128xf32>
    %26 = vector.multi_reduction <maximumf>, %25, %cst_8 [1] : vector<128x10xf32> to vector<128xf32>
    %27 = vector.shape_cast %26 : vector<128xf32> to vector<128x1xf32>
    %28 = vector.broadcast %27 : vector<128x1xf32> to vector<128x10xf32>
    %29 = arith.subf %25, %28 : vector<128x10xf32>
    %30 = math.exp %29 : vector<128x10xf32>
    %cst_9 = arith.constant dense<0.000000e+00> : vector<128xf32>
    %31 = vector.multi_reduction <add>, %30, %cst_9 [1] : vector<128x10xf32> to vector<128xf32>
    %32 = vector.shape_cast %31 : vector<128xf32> to vector<128x1xf32>
    %33 = tpu.reciprocal %32 {approx = true} : vector<128x1xf32> -> vector<128x1xf32>
    %34 = vector.broadcast %33 : vector<128x1xf32> to vector<128x10xf32>
    %35 = arith.mulf %30, %34 : vector<128x10xf32>
    %36 = vector.extract_strided_slice %35 {offsets = [0, 0], sizes = [128, 1], strides = [1, 1]} : vector<128x10xf32> to vector<128x1xf32>
    %c0_10 = arith.constant 0 : index
    %c0_11 = arith.constant 0 : index
    %c0_12 = arith.constant 0 : index
    %37 = vector.load %arg2[%c0_10, %c0_11, %c0_12] : memref<10x128x32xbf16, #tpu.memory_space<vmem>>, vector<1x128x32xbf16>
    %38 = vector.shape_cast %37 : vector<1x128x32xbf16> to vector<128x32xbf16>
    %39 = arith.extf %38 : vector<128x32xbf16> to vector<128x32xf32>
    %40 = vector.broadcast %36 : vector<128x1xf32> to vector<128x32xf32>
    %41 = arith.mulf %40, %39 : vector<128x32xf32>
    %42 = vector.extract_strided_slice %35 {offsets = [0, 1], sizes = [128, 1], strides = [1, 1]} : vector<128x10xf32> to vector<128x1xf32>
    %c1 = arith.constant 1 : index
    %c0_13 = arith.constant 0 : index
    %c0_14 = arith.constant 0 : index
    %43 = vector.load %arg2[%c1, %c0_13, %c0_14] : memref<10x128x32xbf16, #tpu.memory_space<vmem>>, vector<1x128x32xbf16>
    %44 = vector.shape_cast %43 : vector<1x128x32xbf16> to vector<128x32xbf16>
    %45 = arith.extf %44 : vector<128x32xbf16> to vector<128x32xf32>
    %46 = vector.broadcast %42 : vector<128x1xf32> to vector<128x32xf32>
    %47 = arith.mulf %46, %45 : vector<128x32xf32>
    %48 = arith.addf %41, %47 : vector<128x32xf32>
    %49 = vector.extract_strided_slice %35 {offsets = [0, 2], sizes = [128, 1], strides = [1, 1]} : vector<128x10xf32> to vector<128x1xf32>
    %c2 = arith.constant 2 : index
    %c0_15 = arith.constant 0 : index
    %c0_16 = arith.constant 0 : index
    %50 = vector.load %arg2[%c2, %c0_15, %c0_16] : memref<10x128x32xbf16, #tpu.memory_space<vmem>>, vector<1x128x32xbf16>
    %51 = vector.shape_cast %50 : vector<1x128x32xbf16> to vector<128x32xbf16>
    %52 = arith.extf %51 : vector<128x32xbf16> to vector<128x32xf32>
    %53 = vector.broadcast %49 : vector<128x1xf32> to vector<128x32xf32>
    %54 = arith.mulf %53, %52 : vector<128x32xf32>
    %55 = arith.addf %48, %54 : vector<128x32xf32>
    %56 = vector.extract_strided_slice %35 {offsets = [0, 3], sizes = [128, 1], strides = [1, 1]} : vector<128x10xf32> to vector<128x1xf32>
    %c3 = arith.constant 3 : index
    %c0_17 = arith.constant 0 : index
    %c0_18 = arith.constant 0 : index
    %57 = vector.load %arg2[%c3, %c0_17, %c0_18] : memref<10x128x32xbf16, #tpu.memory_space<vmem>>, vector<1x128x32xbf16>
    %58 = vector.shape_cast %57 : vector<1x128x32xbf16> to vector<128x32xbf16>
    %59 = arith.extf %58 : vector<128x32xbf16> to vector<128x32xf32>
    %60 = vector.broadcast %56 : vector<128x1xf32> to vector<128x32xf32>
    %61 = arith.mulf %60, %59 : vector<128x32xf32>
    %62 = arith.addf %55, %61 : vector<128x32xf32>
    %63 = vector.extract_strided_slice %35 {offsets = [0, 4], sizes = [128, 1], strides = [1, 1]} : vector<128x10xf32> to vector<128x1xf32>
    %c4 = arith.constant 4 : index
    %c0_19 = arith.constant 0 : index
    %c0_20 = arith.constant 0 : index
    %64 = vector.load %arg2[%c4, %c0_19, %c0_20] : memref<10x128x32xbf16, #tpu.memory_space<vmem>>, vector<1x128x32xbf16>
    %65 = vector.shape_cast %64 : vector<1x128x32xbf16> to vector<128x32xbf16>
    %66 = arith.extf %65 : vector<128x32xbf16> to vector<128x32xf32>
    %67 = vector.broadcast %63 : vector<128x1xf32> to vector<128x32xf32>
    %68 = arith.mulf %67, %66 : vector<128x32xf32>
    %69 = arith.addf %62, %68 : vector<128x32xf32>
    %70 = vector.extract_strided_slice %35 {offsets = [0, 5], sizes = [128, 1], strides = [1, 1]} : vector<128x10xf32> to vector<128x1xf32>
    %c5 = arith.constant 5 : index
    %c0_21 = arith.constant 0 : index
    %c0_22 = arith.constant 0 : index
    %71 = vector.load %arg2[%c5, %c0_21, %c0_22] : memref<10x128x32xbf16, #tpu.memory_space<vmem>>, vector<1x128x32xbf16>
    %72 = vector.shape_cast %71 : vector<1x128x32xbf16> to vector<128x32xbf16>
    %73 = arith.extf %72 : vector<128x32xbf16> to vector<128x32xf32>
    %74 = vector.broadcast %70 : vector<128x1xf32> to vector<128x32xf32>
    %75 = arith.mulf %74, %73 : vector<128x32xf32>
    %76 = arith.addf %69, %75 : vector<128x32xf32>
    %77 = vector.extract_strided_slice %35 {offsets = [0, 6], sizes = [128, 1], strides = [1, 1]} : vector<128x10xf32> to vector<128x1xf32>
    %c6 = arith.constant 6 : index
    %c0_23 = arith.constant 0 : index
    %c0_24 = arith.constant 0 : index
    %78 = vector.load %arg2[%c6, %c0_23, %c0_24] : memref<10x128x32xbf16, #tpu.memory_space<vmem>>, vector<1x128x32xbf16>
    %79 = vector.shape_cast %78 : vector<1x128x32xbf16> to vector<128x32xbf16>
    %80 = arith.extf %79 : vector<128x32xbf16> to vector<128x32xf32>
    %81 = vector.broadcast %77 : vector<128x1xf32> to vector<128x32xf32>
    %82 = arith.mulf %81, %80 : vector<128x32xf32>
    %83 = arith.addf %76, %82 : vector<128x32xf32>
    %84 = vector.extract_strided_slice %35 {offsets = [0, 7], sizes = [128, 1], strides = [1, 1]} : vector<128x10xf32> to vector<128x1xf32>
    %c7 = arith.constant 7 : index
    %c0_25 = arith.constant 0 : index
    %c0_26 = arith.constant 0 : index
    %85 = vector.load %arg2[%c7, %c0_25, %c0_26] : memref<10x128x32xbf16, #tpu.memory_space<vmem>>, vector<1x128x32xbf16>
    %86 = vector.shape_cast %85 : vector<1x128x32xbf16> to vector<128x32xbf16>
    %87 = arith.extf %86 : vector<128x32xbf16> to vector<128x32xf32>
    %88 = vector.broadcast %84 : vector<128x1xf32> to vector<128x32xf32>
    %89 = arith.mulf %88, %87 : vector<128x32xf32>
    %90 = arith.addf %83, %89 : vector<128x32xf32>
    %91 = vector.extract_strided_slice %35 {offsets = [0, 8], sizes = [128, 1], strides = [1, 1]} : vector<128x10xf32> to vector<128x1xf32>
    %c8 = arith.constant 8 : index
    %c0_27 = arith.constant 0 : index
    %c0_28 = arith.constant 0 : index
    %92 = vector.load %arg2[%c8, %c0_27, %c0_28] : memref<10x128x32xbf16, #tpu.memory_space<vmem>>, vector<1x128x32xbf16>
    %93 = vector.shape_cast %92 : vector<1x128x32xbf16> to vector<128x32xbf16>
    %94 = arith.extf %93 : vector<128x32xbf16> to vector<128x32xf32>
    %95 = vector.broadcast %91 : vector<128x1xf32> to vector<128x32xf32>
    %96 = arith.mulf %95, %94 : vector<128x32xf32>
    %97 = arith.addf %90, %96 : vector<128x32xf32>
    %98 = vector.extract_strided_slice %35 {offsets = [0, 9], sizes = [128, 1], strides = [1, 1]} : vector<128x10xf32> to vector<128x1xf32>
    %c9 = arith.constant 9 : index
    %c0_29 = arith.constant 0 : index
    %c0_30 = arith.constant 0 : index
    %99 = vector.load %arg2[%c9, %c0_29, %c0_30] : memref<10x128x32xbf16, #tpu.memory_space<vmem>>, vector<1x128x32xbf16>
    %100 = vector.shape_cast %99 : vector<1x128x32xbf16> to vector<128x32xbf16>
    %101 = arith.extf %100 : vector<128x32xbf16> to vector<128x32xf32>
    %102 = vector.broadcast %98 : vector<128x1xf32> to vector<128x32xf32>
    %103 = arith.mulf %102, %101 : vector<128x32xf32>
    %104 = arith.addf %97, %103 : vector<128x32xf32>
    %105 = arith.truncf %104 : vector<128x32xf32> to vector<128x32xbf16>
    %c80 = arith.constant 80 : index
    %c0_31 = arith.constant 0 : index
    %106 = vector.load %arg3[%c80, %c0_31] : memref<160x128xbf16, #tpu.memory_space<vmem>>, vector<32x128xbf16>
    %cst_32 = arith.constant dense<0.000000e+00> : vector<128x128xf32>
    %107 = tpu.matmul %105, %106, %cst_32 {dimension_numbers = #tpu.dot_dimension_numbers<[1], [0], [0], [1], [0, 0, 1, 1], [], []>} : vector<128x32xbf16>, vector<32x128xbf16>, vector<128x128xf32> -> vector<128x128xf32>
    %108 = vector.extract_strided_slice %17 {offsets = [0, 0], sizes = [128, 32], strides = [1, 1]} : vector<128x128xf32> to vector<128x32xf32>
    %109 = vector.extract_strided_slice %107 {offsets = [0, 0], sizes = [128, 32], strides = [1, 1]} : vector<128x128xf32> to vector<128x32xf32>
    %110 = arith.addf %108, %109 : vector<128x32xf32>
    %cst_33 = arith.constant 0.000000e+00 : f32
    %111 = vector.broadcast %cst_33 : f32 to vector<128x32xf32>
    %112 = arith.maximumf %110, %111 : vector<128x32xf32>
    %113 = arith.truncf %112 : vector<128x32xf32> to vector<128x32xbf16>
    %c48 = arith.constant 48 : index
    %c0_34 = arith.constant 0 : index
    %114 = vector.load %arg3[%c48, %c0_34] : memref<160x128xbf16, #tpu.memory_space<vmem>>, vector<32x128xbf16>
    %cst_35 = arith.constant dense<0.000000e+00> : vector<128x128xf32>
    %115 = tpu.matmul %113, %114, %cst_35 {dimension_numbers = #tpu.dot_dimension_numbers<[1], [0], [0], [1], [0, 0, 1, 1], [], []>} : vector<128x32xbf16>, vector<32x128xbf16>, vector<128x128xf32> -> vector<128x128xf32>
    %116 = vector.broadcast %6 : vector<1x128xf32> to vector<128x128xf32>
    %117 = arith.addf %115, %116 : vector<128x128xf32>
    %118 = vector.extract_strided_slice %117 {offsets = [0, 0], sizes = [128, 32], strides = [1, 1]} : vector<128x128xf32> to vector<128x32xf32>
    %119 = vector.extract_strided_slice %22 {offsets = [0, 0], sizes = [128, 32], strides = [1, 1]} : vector<128x128xf32> to vector<128x32xf32>
    %120 = arith.addf %118, %119 : vector<128x32xf32>
    %121 = arith.negf %120 : vector<128x32xf32>
    %122 = math.exp %121 : vector<128x32xf32>
    %cst_36 = arith.constant 1.000000e+00 : f32
    %123 = vector.broadcast %cst_36 : f32 to vector<128x32xf32>
    %124 = arith.addf %123, %122 : vector<128x32xf32>
    %125 = arith.divf %123, %124 : vector<128x32xf32>
    %126 = vector.extract_strided_slice %117 {offsets = [0, 32], sizes = [128, 32], strides = [1, 1]} : vector<128x128xf32> to vector<128x32xf32>
    %127 = vector.extract_strided_slice %22 {offsets = [0, 32], sizes = [128, 32], strides = [1, 1]} : vector<128x128xf32> to vector<128x32xf32>
    %128 = arith.addf %126, %127 : vector<128x32xf32>
    %129 = arith.negf %128 : vector<128x32xf32>
    %130 = math.exp %129 : vector<128x32xf32>
    %cst_37 = arith.constant 1.000000e+00 : f32
    %131 = vector.broadcast %cst_37 : f32 to vector<128x32xf32>
    %132 = arith.addf %131, %130 : vector<128x32xf32>
    %133 = arith.divf %131, %132 : vector<128x32xf32>
    %134 = vector.extract_strided_slice %117 {offsets = [0, 64], sizes = [128, 32], strides = [1, 1]} : vector<128x128xf32> to vector<128x32xf32>
    %135 = vector.extract_strided_slice %22 {offsets = [0, 64], sizes = [128, 32], strides = [1, 1]} : vector<128x128xf32> to vector<128x32xf32>
    %136 = arith.mulf %125, %135 : vector<128x32xf32>
    %137 = arith.addf %134, %136 : vector<128x32xf32>
    %138 = math.tanh %137 : vector<128x32xf32>
    %cst_38 = arith.constant 1.000000e+00 : f32
    %139 = vector.broadcast %cst_38 : f32 to vector<128x32xf32>
    %140 = arith.subf %139, %133 : vector<128x32xf32>
    %141 = arith.mulf %140, %138 : vector<128x32xf32>
    %142 = arith.mulf %133, %1 : vector<128x32xf32>
    %143 = arith.addf %141, %142 : vector<128x32xf32>
    %144 = arith.truncf %143 : vector<128x32xf32> to vector<128x32xbf16>
    %c112 = arith.constant 112 : index
    %c0_39 = arith.constant 0 : index
    %145 = vector.load %arg3[%c112, %c0_39] : memref<160x128xbf16, #tpu.memory_space<vmem>>, vector<32x128xbf16>
    %cst_40 = arith.constant dense<0.000000e+00> : vector<128x128xf32>
    %146 = tpu.matmul %144, %145, %cst_40 {dimension_numbers = #tpu.dot_dimension_numbers<[1], [0], [0], [1], [0, 0, 1, 1], [], []>} : vector<128x32xbf16>, vector<32x128xbf16>, vector<128x128xf32> -> vector<128x128xf32>
    %147 = vector.broadcast %7 : vector<1x128xf32> to vector<128x128xf32>
    %148 = arith.addf %146, %147 : vector<128x128xf32>
    %149 = vector.extract_strided_slice %148 {offsets = [0, 0], sizes = [128, 10], strides = [1, 1]} : vector<128x128xf32> to vector<128x10xf32>
    %cst_41 = arith.constant dense<0xFF800000> : vector<128xf32>
    %150 = vector.multi_reduction <maximumf>, %149, %cst_41 [1] : vector<128x10xf32> to vector<128xf32>
    %151 = vector.shape_cast %150 : vector<128xf32> to vector<128x1xf32>
    %152 = vector.broadcast %151 : vector<128x1xf32> to vector<128x10xf32>
    %153 = arith.subf %149, %152 : vector<128x10xf32>
    %154 = math.exp %153 : vector<128x10xf32>
    %cst_42 = arith.constant dense<0.000000e+00> : vector<128xf32>
    %155 = vector.multi_reduction <add>, %154, %cst_42 [1] : vector<128x10xf32> to vector<128xf32>
    %156 = vector.shape_cast %155 : vector<128xf32> to vector<128x1xf32>
    %157 = math.log %156 : vector<128x1xf32>
    %158 = vector.broadcast %157 : vector<128x1xf32> to vector<128x10xf32>
    %159 = arith.subf %153, %158 : vector<128x10xf32>
    %c0_43 = arith.constant 0 : index
    %c0_44 = arith.constant 0 : index
    %160 = vector.load %arg4[%c0_43, %c0_44] : memref<128x128xf32, #tpu.memory_space<vmem>>, vector<128x10xf32>
    tpu.vector_store %arg4[%c0_43, %c0_44], %159 {strides = array<i32>} : memref<128x128xf32, #tpu.memory_space<vmem>>, vector<128x10xf32>,
    %c0_45 = arith.constant 0 : index
    %c10 = arith.constant 10 : index
    %161 = vector.load %arg4[%c0_45, %c10] : memref<128x128xf32, #tpu.memory_space<vmem>>, vector<128x32xf32>
    tpu.vector_store %arg4[%c0_45, %c10], %143 {strides = array<i32>} : memref<128x128xf32, #tpu.memory_space<vmem>>, vector<128x32xf32>,
    %c0_46 = arith.constant 0 : index
    %c42 = arith.constant 42 : index
    %162 = vector.load %arg4[%c0_46, %c42] : memref<128x128xf32, #tpu.memory_space<vmem>>, vector<128x10xf32>
    tpu.vector_store %arg4[%c0_46, %c42], %35 {strides = array<i32>} : memref<128x128xf32, #tpu.memory_space<vmem>>, vector<128x10xf32>,
    %cst_47 = arith.constant 0.000000e+00 : f32
    %163 = vector.broadcast %cst_47 : f32 to vector<128x76xf32>
    %c0_48 = arith.constant 0 : index
    %c52 = arith.constant 52 : index
    %164 = vector.load %arg4[%c0_48, %c52] : memref<128x128xf32, #tpu.memory_space<vmem>>, vector<128x76xf32>
    tpu.vector_store %arg4[%c0_48, %c52], %163 {strides = array<i32>} : memref<128x128xf32, #tpu.memory_space<vmem>>, vector<128x76xf32>,
    return
  }
}

</mosaic_0001>

<llo_original>
// kernel: attn_decoder_forward.1
$region0: #{attn_decoder_forward.1}
  #allocation0 [shape = 'u32[]', space=smem, size = 0x4, offset = 0x4, fixed_abs, tag = 'smem constant byte address 0x4 - core index']
  #allocation1 [shape = 'u32[144,128]{1,0:T(1,128)}', space=vmem, size = 0x12000, scoped, tag = 'internal scratch']
  %s0 = inlined_call_operand.vmem [shape: s32[128,1], index: 0, kind: input, shape index: {}]
  %s1 = inlined_call_operand.vmem [shape: f32[128,32], index: 1, kind: input, shape index: {}]
  %s2 = inlined_call_operand.vmem [shape: bf16[10,128,32], index: 2, kind: input, shape index: {}]
  %s3 = inlined_call_operand.vmem [shape: bf16[160,128], index: 3, kind: input, shape index: {}]
  %s4 = inlined_call_operand.vmem [shape: f32[128,128], index: 4, kind: output, shape index: {}]
  %s5 = sld [smem:[#allocation0]]
  $region26: #{attn_decoder_forward.1} parent=0
    _
  %s7 = ssub.s32 1, %s5
  %s8 = scalar_select 0, %s7, %s5
  // Predicated region
  $region2: #{attn_decoder_forward.1} parent=0 // pred_check
    _
  $region3: #{attn_decoder_forward.1} parent=0 // pred_check_branch
    %10 = sbr.rel (0) target = $region5
  $region4: #{attn_decoder_forward.1} parent=0 // pred_region
    _
  $region5: #{attn_decoder_forward.1} parent=0 // pred_fallthru
    _
  // Predicated region
  $region6: #{attn_decoder_forward.1} parent=0 // pred_check
    _
  $region7: #{attn_decoder_forward.1} parent=0 // pred_check_branch
    %12 = sbr.rel (0) target = $region9
  $region8: #{attn_decoder_forward.1} parent=0 // pred_region
    _
  $region9: #{attn_decoder_forward.1} parent=0 // pred_fallthru
    _
  // Predicated region
  $region10: #{attn_decoder_forward.1} parent=0 // pred_check
    _
  $region11: #{attn_decoder_forward.1} parent=0 // pred_check_branch
    %14 = sbr.rel (0) target = $region13
  $region12: #{attn_decoder_forward.1} parent=0 // pred_region
    _
  $region13: #{attn_decoder_forward.1} parent=0 // pred_fallthru
    _
  // Predicated region
  $region14: #{attn_decoder_forward.1} parent=0 // pred_check
    _
  $region15: #{attn_decoder_forward.1} parent=0 // pred_check_branch
    %16 = sbr.rel (0) target = $region17
  $region16: #{attn_decoder_forward.1} parent=0 // pred_region
    _
  $region17: #{attn_decoder_forward.1} parent=0 // pred_fallthru
    _
  %v18 = vld [vmem:[%s0] sm:$0xff]
  %v19 = vld [vmem:[%s0 + $0x8] sm:$0xff]
  %v20 = vld [vmem:[%s0 + $0x10] sm:$0xff]
  %v21 = vld [vmem:[%s0 + $0x18] sm:$0xff]
  %v22 = vld [vmem:[%s0 + $0x20] sm:$0xff]
  %v23 = vld [vmem:[%s0 + $0x28] sm:$0xff]
  %v24 = vld [vmem:[%s0 + $0x30] sm:$0xff]
  %v25 = vld [vmem:[%s0 + $0x38] sm:$0xff]
  %v26 = vld [vmem:[%s0 + $0x40] sm:$0xff]
  %v27 = vld [vmem:[%s0 + $0x48] sm:$0xff]
  %v28 = vld [vmem:[%s0 + $0x50] sm:$0xff]
  %v29 = vld [vmem:[%s0 + $0x58] sm:$0xff]
  %v30 = vld [vmem:[%s0 + $0x60] sm:$0xff]
  %v31 = vld [vmem:[%s0 + $0x68] sm:$0xff]
  %v32 = vld [vmem:[%s0 + $0x70] sm:$0xff]
  %v33 = vld [vmem:[%s0 + $0x78] sm:$0xff]
  %v34 = vld [vmem:[%s1] sm:$0xff]
  %v35 = vld [vmem:[%s1 + $0x8] sm:$0xff]
  %v36 = vld [vmem:[%s1 + $0x10] sm:$0xff]
  %v37 = vld [vmem:[%s1 + $0x18] sm:$0xff]
  %v38 = vld [vmem:[%s1 + $0x20] sm:$0xff]
  %v39 = vld [vmem:[%s1 + $0x28] sm:$0xff]
  %v40 = vld [vmem:[%s1 + $0x30] sm:$0xff]
  %v41 = vld [vmem:[%s1 + $0x38] sm:$0xff]
  %v42 = vld [vmem:[%s1 + $0x40] sm:$0xff]
  %v43 = vld [vmem:[%s1 + $0x48] sm:$0xff]
  %v44 = vld [vmem:[%s1 + $0x50] sm:$0xff]
  %v45 = vld [vmem:[%s1 + $0x58] sm:$0xff]
  %v46 = vld [vmem:[%s1 + $0x60] sm:$0xff]
  %v47 = vld [vmem:[%s1 + $0x68] sm:$0xff]
  %v48 = vld [vmem:[%s1 + $0x70] sm:$0xff]
  %v49 = vld [vmem:[%s1 + $0x78] sm:$0xff]
  %v50 = vld [vmem:[%s3 + $0x48] sm:$0xf]
  %v51 = vunpack.c.l.bf16 %v50
  %v52 = vlaneseq
  %v53 = vand.u32 %v52, 127
  %54 = vset.pattern.permute.xlu0 0
  %55 = vperm.xlu0 %54, %v18
  %v56 = vpop.permute.xlu0 %55
  %57 = vset.pattern.permute.xlu0 0
  %58 = vperm.xlu0 %57, %v19
  %v59 = vpop.permute.xlu0 %58
  %60 = vset.pattern.permute.xlu0 0
  %61 = vperm.xlu0 %60, %v20
  %v62 = vpop.permute.xlu0 %61
  %63 = vset.pattern.permute.xlu0 0
  %64 = vperm.xlu0 %63, %v21
  %v65 = vpop.permute.xlu0 %64
  %66 = vset.pattern.permute.xlu0 0
  %67 = vperm.xlu0 %66, %v22
  %v68 = vpop.permute.xlu0 %67
  %69 = vset.pattern.permute.xlu0 0
  %70 = vperm.xlu0 %69, %v23
  %v71 = vpop.permute.xlu0 %70
  %72 = vset.pattern.permute.xlu0 0
  %73 = vperm.xlu0 %72, %v24
  %v74 = vpop.permute.xlu0 %73
  %75 = vset.pattern.permute.xlu0 0
  %76 = vperm.xlu0 %75, %v25
  %v77 = vpop.permute.xlu0 %76
  %78 = vset.pattern.permute.xlu0 0
  %79 = vperm.xlu0 %78, %v26
  %v80 = vpop.permute.xlu0 %79
  %81 = vset.pattern.permute.xlu0 0
  %82 = vperm.xlu0 %81, %v27
  %v83 = vpop.permute.xlu0 %82
  %84 = vset.pattern.permute.xlu0 0
  %85 = vperm.xlu0 %84, %v28
  %v86 = vpop.permute.xlu0 %85
  %87 = vset.pattern.permute.xlu0 0
  %88 = vperm.xlu0 %87, %v29
  %v89 = vpop.permute.xlu0 %88
  %90 = vset.pattern.permute.xlu0 0
  %91 = vperm.xlu0 %90, %v30
  %v92 = vpop.permute.xlu0 %91
  %93 = vset.pattern.permute.xlu0 0
  %94 = vperm.xlu0 %93, %v31
  %v95 = vpop.permute.xlu0 %94
  %96 = vset.pattern.permute.xlu0 0
  %97 = vperm.xlu0 %96, %v32
  %v98 = vpop.permute.xlu0 %97
  %99 = vset.pattern.permute.xlu0 0
  %100 = vperm.xlu0 %99, %v33
  %v101 = vpop.permute.xlu0 %100
  %vm102 = vcmp.eq.s32.totalorder %v53, %v56
  %vm103 = vcmp.eq.s32.totalorder %v53, %v59
  %vm104 = vcmp.eq.s32.totalorder %v53, %v62
  %vm105 = vcmp.eq.s32.totalorder %v53, %v65
  %vm106 = vcmp.eq.s32.totalorder %v53, %v68
  %vm107 = vcmp.eq.s32.totalorder %v53, %v71
  %vm108 = vcmp.eq.s32.totalorder %v53, %v74
  %vm109 = vcmp.eq.s32.totalorder %v53, %v77
  %vm110 = vcmp.eq.s32.totalorder %v53, %v80
  %vm111 = vcmp.eq.s32.totalorder %v53, %v83
  %vm112 = vcmp.eq.s32.totalorder %v53, %v86
  %vm113 = vcmp.eq.s32.totalorder %v53, %v89
  %vm114 = vcmp.eq.s32.totalorder %v53, %v92
  %vm115 = vcmp.eq.s32.totalorder %v53, %v95
  %vm116 = vcmp.eq.s32.totalorder %v53, %v98
  %vm117 = vcmp.eq.s32.totalorder %v53, %v101
  %v118 = vsel %vm102, 1, 0
  %v119 = vsel %vm103, 1, 0
  %v120 = vsel %vm104, 1, 0
  %v121 = vsel %vm105, 1, 0
  %v122 = vsel %vm106, 1, 0
  %v123 = vsel %vm107, 1, 0
  %v124 = vsel %vm108, 1, 0
  %v125 = vsel %vm109, 1, 0
  %v126 = vsel %vm110, 1, 0
  %v127 = vsel %vm111, 1, 0
  %v128 = vsel %vm112, 1, 0
  %v129 = vsel %vm113, 1, 0
  %v130 = vsel %vm114, 1, 0
  %v131 = vsel %vm115, 1, 0
  %v132 = vsel %vm116, 1, 0
  %v133 = vsel %vm117, 1, 0
  %v134 = vcvt.s32.f32 %v118
  %v135 = vcvt.s32.f32 %v119
  %v136 = vcvt.s32.f32 %v120
  %v137 = vcvt.s32.f32 %v121
  %v138 = vcvt.s32.f32 %v122
  %v139 = vcvt.s32.f32 %v123
  %v140 = vcvt.s32.f32 %v124
  %v141 = vcvt.s32.f32 %v125
  %v142 = vcvt.s32.f32 %v126
  %v143 = vcvt.s32.f32 %v127
  %v144 = vcvt.s32.f32 %v128
  %v145 = vcvt.s32.f32 %v129
  %v146 = vcvt.s32.f32 %v130
  %v147 = vcvt.s32.f32 %v131
  %v148 = vcvt.s32.f32 %v132
  %v149 = vcvt.s32.f32 %v133
  %v150 = vpack.c.bf16 %v135, %v134
  %v151 = vpack.c.bf16 %v137, %v136
  %v152 = vpack.c.bf16 %v139, %v138
  %v153 = vpack.c.bf16 %v141, %v140
  %v154 = vpack.c.bf16 %v143, %v142
  %v155 = vpack.c.bf16 %v145, %v144
  %v156 = vpack.c.bf16 %v147, %v146
  %v157 = vpack.c.bf16 %v149, %v148
  %v158 = vld [vmem:[%s3] sm:$0xf]
  %v159 = vld [vmem:[%s3 + $0x4] sm:$0xf]
  %v160 = vlaneseq
  %v161 = vshrl.u32 %v160, 7
  %v162 = vsub.s32 0, %v161
  %v163 = vrot.slane %v51, %v162
  %v166 = vunpack.c.l.b16 %v158
  %v167 = vunpack.c.l.b16 %v159
  %v168 = vpack.c.b16 %v167, %v166
  %vm170 = vcmask 130048
  %v172 = vsel %vm170, %v150, 0
  %v175 = vsel %vm170, %v151, 0
  %v178 = vsel %vm170, %v152, 0
  %v181 = vsel %vm170, %v153, 0
  %v184 = vsel %vm170, %v154, 0
  %v187 = vsel %vm170, %v155, 0
  %v190 = vsel %vm170, %v156, 0
  %v193 = vsel %vm170, %v157, 0
  %195 = vmatprep.subr.bf16.mxu0 0
  %196 = vmatpush1.bf16.msra.mxu0 %v168
  %197 = vmatprep.subr.bf16.mxu0 0
  %198 = vmatpush1.bf16.msra.mxu0 0
  %199 = vmatprep.subr.bf16.mxu0 0
  %200 = vmatpush1.bf16.msra.mxu0 0
  %201 = vmatprep.subr.bf16.mxu0 0
  %202 = vmatpush1.bf16.msra.mxu0 0
  %203 = vmatprep.subr.bf16.mxu0 0
  %204 = vmatpush1.bf16.msra.mxu0 0
  %205 = vmatprep.subr.bf16.mxu0 0
  %206 = vmatpush1.bf16.msra.mxu0 0
  %207 = vmatprep.subr.bf16.mxu0 0
  %208 = vmatpush1.bf16.msra.mxu0 0
  %209 = vmatprep.subr.bf16.mxu0 0
  %210 = vmatpush1.bf16.msra.mxu0 0
  %211 = vmatprep.subr.bf16.mxu0 0
  %212 = vmatpush1.bf16.msra.mxu0 0
  %213 = vmatprep.subr.bf16.mxu0 0
  %214 = vmatpush1.bf16.msra.mxu0 0
  %215 = vmatprep.subr.bf16.mxu0 0
  %216 = vmatpush1.bf16.msra.mxu0 0
  %217 = vmatprep.subr.bf16.mxu0 0
  %218 = vmatpush1.bf16.msra.mxu0 0
  %219 = vmatprep.subr.bf16.mxu0 0
  %220 = vmatpush1.bf16.msra.mxu0 0
  %221 = vmatprep.subr.bf16.mxu0 0
  %222 = vmatpush1.bf16.msra.mxu0 0
  %223 = vmatprep.subr.bf16.mxu0 0
  %224 = vmatpush1.bf16.msra.mxu0 0
  %225 = vmatprep.subr.bf16.mxu0 0
  %226 = vmatpush1.bf16.msra.mxu0 0
  %227 = vmatprep.mubr.bf16.mxu0 0
  %228 = vmatmul.mubr.bf16.gmra.mrb[0].mxu0 %v172
  %v229 = vpop.f32.mrb[0].mxu0
  %v230 = vadd.f32 %v163, %v229
  %v231 = vpop.f32.mrb[0].mxu0
  %v232 = vpop.f32.mrb[0].mxu0
  %v233 = vadd.f32 %v163, %v232
  %v234 = vpop.f32.mrb[0].mxu0
  %235 = vmatprep.mubr.bf16.mxu0 0
  %236 = vmatmul.mubr.bf16.gmra.mrb[0].mxu0 %v175
  %v237 = vpop.f32.mrb[0].mxu0
  %v238 = vadd.f32 %v163, %v237
  %v239 = vpop.f32.mrb[0].mxu0
  %v240 = vpop.f32.mrb[0].mxu0
  %v241 = vadd.f32 %v163, %v240
  %v242 = vpop.f32.mrb[0].mxu0
  %243 = vmatprep.mubr.bf16.mxu0 0
  %244 = vmatmul.mubr.bf16.gmra.mrb[0].mxu0 %v178
  %v245 = vpop.f32.mrb[0].mxu0
  %v246 = vadd.f32 %v163, %v245
  %v247 = vpop.f32.mrb[0].mxu0
  %v248 = vpop.f32.mrb[0].mxu0
  %v249 = vadd.f32 %v163, %v248
  %v250 = vpop.f32.mrb[0].mxu0
  %251 = vmatprep.mubr.bf16.mxu0 0
  %252 = vmatmul.mubr.bf16.gmra.mrb[0].mxu0 %v181
  %v253 = vpop.f32.mrb[0].mxu0
  %v254 = vadd.f32 %v163, %v253
  %v255 = vpop.f32.mrb[0].mxu0
  %v256 = vpop.f32.mrb[0].mxu0
  %v257 = vadd.f32 %v163, %v256
  %v258 = vpop.f32.mrb[0].mxu0
  %259 = vmatprep.mubr.bf16.mxu0 0
  %260 = vmatmul.mubr.bf16.gmra.mrb[0].mxu0 %v184
  %v261 = vpop.f32.mrb[0].mxu0
  %v262 = vadd.f32 %v163, %v261
  %v263 = vpop.f32.mrb[0].mxu0
  %v264 = vpop.f32.mrb[0].mxu0
  %v265 = vadd.f32 %v163, %v264
  %v266 = vpop.f32.mrb[0].mxu0
  %267 = vmatprep.mubr.bf16.mxu0 0
  %268 = vmatmul.mubr.bf16.gmra.mrb[0].mxu0 %v187
  %v269 = vpop.f32.mrb[0].mxu0
  %v270 = vadd.f32 %v163, %v269
  %v271 = vpop.f32.mrb[0].mxu0
  %v272 = vpop.f32.mrb[0].mxu0
  %v273 = vadd.f32 %v163, %v272
  %v274 = vpop.f32.mrb[0].mxu0
  %275 = vmatprep.mubr.bf16.mxu0 0
  %276 = vmatmul.mubr.bf16.gmra.mrb[0].mxu0 %v190
  %v277 = vpop.f32.mrb[0].mxu0
  %v278 = vadd.f32 %v163, %v277
  %v279 = vpop.f32.mrb[0].mxu0
  %v280 = vpop.f32.mrb[0].mxu0
  %v281 = vadd.f32 %v163, %v280
  %v282 = vpop.f32.mrb[0].mxu0
  %283 = vmatprep.mubr.bf16.mxu0 0
  %284 = vmatmul.mubr.bf16.gmra.mrb[0].mxu0 %v193
  %v285 = vpop.f32.mrb[0].mxu0
  %v286 = vadd.f32 %v163, %v285
  %v287 = vpop.f32.mrb[0].mxu0
  %v288 = vpop.f32.mrb[0].mxu0
  %v289 = vadd.f32 %v163, %v288
  %v290 = vpop.f32.mrb[0].mxu0
  %291 = vdwg.mxu0
  %v292 = vpack.c.bf16 %v35, %v34
  %v293 = vpack.c.bf16 %v37, %v36
  %v294 = vpack.c.bf16 %v39, %v38
  %v295 = vpack.c.bf16 %v41, %v40
  %v296 = vpack.c.bf16 %v43, %v42
  %v297 = vpack.c.bf16 %v45, %v44
  %v298 = vpack.c.bf16 %v47, %v46
  %v299 = vpack.c.bf16 %v49, %v48
  %v300 = vld [vmem:[%s3 + $0x8] sm:$0xf]
  %v301 = vld [vmem:[%s3 + $0xc] sm:$0xf]
  %v302 = vld [vmem:[%s3 + $0x10] sm:$0xf]
  %v303 = vld [vmem:[%s3 + $0x14] sm:$0xf]
  %v304 = vlaneseq
  %v305 = vshrl.u32 %v304, 7
  %v306 = vsub.s32 1, %v305
  %v307 = vrot.slane %v51, %v306
  %v312 = vunpack.c.l.b16 %v300
  %v313 = vunpack.c.l.b16 %v301
  %v314 = vunpack.c.l.b16 %v302
  %v315 = vunpack.c.l.b16 %v303
  %v316 = vpack.c.b16 %v313, %v312
  %v317 = vpack.c.b16 %v315, %v314
  %vm320 = vcmask 261120
  %v322 = vsel %vm320, %v292, 0
  %v325 = vsel %vm320, %v293, 0
  %v328 = vsel %vm320, %v294, 0
  %v331 = vsel %vm320, %v295, 0
  %v334 = vsel %vm320, %v296, 0
  %v337 = vsel %vm320, %v297, 0
  %v340 = vsel %vm320, %v298, 0
  %v343 = vsel %vm320, %v299, 0
  %345 = vmatprep.subr.bf16.mxu0 0
  %346 = vmatpush1.bf16.msra.mxu0 %v316
  %347 = vmatprep.subr.bf16.mxu0 0
  %348 = vmatpush1.bf16.msra.mxu0 %v317
  %349 = vmatprep.subr.bf16.mxu0 0
  %350 = vmatpush1.bf16.msra.mxu0 0
  %351 = vmatprep.subr.bf16.mxu0 0
  %352 = vmatpush1.bf16.msra.mxu0 0
  %353 = vmatprep.subr.bf16.mxu0 0
  %354 = vmatpush1.bf16.msra.mxu0 0
  %355 = vmatprep.subr.bf16.mxu0 0
  %356 = vmatpush1.bf16.msra.mxu0 0
  %357 = vmatprep.subr.bf16.mxu0 0
  %358 = vmatpush1.bf16.msra.mxu0 0
  %359 = vmatprep.subr.bf16.mxu0 0
  %360 = vmatpush1.bf16.msra.mxu0 0
  %361 = vmatprep.subr.bf16.mxu0 0
  %362 = vmatpush1.bf16.msra.mxu0 0
  %363 = vmatprep.subr.bf16.mxu0 0
  %364 = vmatpush1.bf16.msra.mxu0 0
  %365 = vmatprep.subr.bf16.mxu0 0
  %366 = vmatpush1.bf16.msra.mxu0 0
  %367 = vmatprep.subr.bf16.mxu0 0
  %368 = vmatpush1.bf16.msra.mxu0 0
  %369 = vmatprep.subr.bf16.mxu0 0
  %370 = vmatpush1.bf16.msra.mxu0 0
  %371 = vmatprep.subr.bf16.mxu0 0
  %372 = vmatpush1.bf16.msra.mxu0 0
  %373 = vmatprep.subr.bf16.mxu0 0
  %374 = vmatpush1.bf16.msra.mxu0 0
  %375 = vmatprep.subr.bf16.mxu0 0
  %376 = vmatpush1.bf16.msra.mxu0 0
  %377 = vmatprep.mubr.bf16.mxu0 0
  %378 = vmatmul.mubr.bf16.gmra.mrb[0].mxu0 %v322
  %v379 = vpop.f32.mrb[0].mxu0
  %v380 = vadd.f32 %v307, %v379
  %v381 = vpop.f32.mrb[0].mxu0
  %v382 = vpop.f32.mrb[0].mxu0
  %v383 = vadd.f32 %v307, %v382
  %v384 = vpop.f32.mrb[0].mxu0
  %385 = vmatprep.mubr.bf16.mxu0 0
  %386 = vmatmul.mubr.bf16.gmra.mrb[0].mxu0 %v325
  %v387 = vpop.f32.mrb[0].mxu0
  %v388 = vadd.f32 %v307, %v387
  %v389 = vpop.f32.mrb[0].mxu0
  %v390 = vpop.f32.mrb[0].mxu0
  %v391 = vadd.f32 %v307, %v390
  %v392 = vpop.f32.mrb[0].mxu0
  %393 = vmatprep.mubr.bf16.mxu0 0
  %394 = vmatmul.mubr.bf16.gmra.mrb[0].mxu0 %v328
  %v395 = vpop.f32.mrb[0].mxu0
  %v396 = vadd.f32 %v307, %v395
  %v397 = vpop.f32.mrb[0].mxu0
  %v398 = vpop.f32.mrb[0].mxu0
  %v399 = vadd.f32 %v307, %v398
  %v400 = vpop.f32.mrb[0].mxu0
  %401 = vmatprep.mubr.bf16.mxu0 0
  %402 = vmatmul.mubr.bf16.gmra.mrb[0].mxu0 %v331
  %v403 = vpop.f32.mrb[0].mxu0
  %v404 = vadd.f32 %v307, %v403
  %v405 = vpop.f32.mrb[0].mxu0
  %v406 = vpop.f32.mrb[0].mxu0
  %v407 = vadd.f32 %v307, %v406
  %v408 = vpop.f32.mrb[0].mxu0
  %409 = vmatprep.mubr.bf16.mxu0 0
  %410 = vmatmul.mubr.bf16.gmra.mrb[0].mxu0 %v334
  %v411 = vpop.f32.mrb[0].mxu0
  %v412 = vadd.f32 %v307, %v411
  %v413 = vpop.f32.mrb[0].mxu0
  %v414 = vpop.f32.mrb[0].mxu0
  %v415 = vadd.f32 %v307, %v414
  %v416 = vpop.f32.mrb[0].mxu0
  %417 = vmatprep.mubr.bf16.mxu0 0
  %418 = vmatmul.mubr.bf16.gmra.mrb[0].mxu0 %v337
  %v419 = vpop.f32.mrb[0].mxu0
  %v420 = vadd.f32 %v307, %v419
  %v421 = vpop.f32.mrb[0].mxu0
  %v422 = vpop.f32.mrb[0].mxu0
  %v423 = vadd.f32 %v307, %v422
  %v424 = vpop.f32.mrb[0].mxu0
  %425 = vmatprep.mubr.bf16.mxu0 0
  %426 = vmatmul.mubr.bf16.gmra.mrb[0].mxu0 %v340
  %v427 = vpop.f32.mrb[0].mxu0
  %v428 = vadd.f32 %v307, %v427
  %v429 = vpop.f32.mrb[0].mxu0
  %v430 = vpop.f32.mrb[0].mxu0
  %v431 = vadd.f32 %v307, %v430
  %v432 = vpop.f32.mrb[0].mxu0
  %433 = vmatprep.mubr.bf16.mxu0 0
  %434 = vmatmul.mubr.bf16.gmra.mrb[0].mxu0 %v343
  %v435 = vpop.f32.mrb[0].mxu0
  %v436 = vadd.f32 %v307, %v435
  %v437 = vpop.f32.mrb[0].mxu0
  %v438 = vpop.f32.mrb[0].mxu0
  %v439 = vadd.f32 %v307, %v438
  %v440 = vpop.f32.mrb[0].mxu0
  %441 = vdwg.mxu0
  %458 = vrot.lane.b32.xlu0 %v380, 64
  %v459 = vpop.permute.xlu0 %458
  %460 = vrot.lane.b32.xlu0 %v383, 64
  %v461 = vpop.permute.xlu0 %460
  %462 = vrot.lane.b32.xlu0 %v388, 64
  %v463 = vpop.permute.xlu0 %462
  %464 = vrot.lane.b32.xlu0 %v391, 64
  %v465 = vpop.permute.xlu0 %464
  %466 = vrot.lane.b32.xlu0 %v396, 64
  %v467 = vpop.permute.xlu0 %466
  %468 = vrot.lane.b32.xlu0 %v399, 64
  %v469 = vpop.permute.xlu0 %468
  %470 = vrot.lane.b32.xlu0 %v404, 64
  %v471 = vpop.permute.xlu0 %470
  %472 = vrot.lane.b32.xlu0 %v407, 64
  %v473 = vpop.permute.xlu0 %472
  %474 = vrot.lane.b32.xlu0 %v412, 64
  %v475 = vpop.permute.xlu0 %474
  %476 = vrot.lane.b32.xlu0 %v415, 64
  %v477 = vpop.permute.xlu0 %476
  %478 = vrot.lane.b32.xlu0 %v420, 64
  %v479 = vpop.permute.xlu0 %478
  %480 = vrot.lane.b32.xlu0 %v423, 64
  %v481 = vpop.permute.xlu0 %480
  %482 = vrot.lane.b32.xlu0 %v428, 64
  %v483 = vpop.permute.xlu0 %482
  %484 = vrot.lane.b32.xlu0 %v431, 64
  %v485 = vpop.permute.xlu0 %484
  %486 = vrot.lane.b32.xlu0 %v436, 64
  %v487 = vpop.permute.xlu0 %486
  %488 = vrot.lane.b32.xlu0 %v439, 64
  %v489 = vpop.permute.xlu0 %488
  %v506 = vadd.f32 %v230, %v459
  %v507 = vadd.f32 %v233, %v461
  %v508 = vadd.f32 %v238, %v463
  %v509 = vadd.f32 %v241, %v465
  %v510 = vadd.f32 %v246, %v467
  %v511 = vadd.f32 %v249, %v469
  %v512 = vadd.f32 %v254, %v471
  %v513 = vadd.f32 %v257, %v473
  %v514 = vadd.f32 %v262, %v475
  %v515 = vadd.f32 %v265, %v477
  %v516 = vadd.f32 %v270, %v479
  %v517 = vadd.f32 %v273, %v481
  %v518 = vadd.f32 %v278, %v483
  %v519 = vadd.f32 %v281, %v485
  %v520 = vadd.f32 %v286, %v487
  %v521 = vadd.f32 %v289, %v489
  %vm522 = vcmask 343296
  %v523 = vsel %vm522, %v506, -inf
  %524 = vmax.xlane.f32.xlu0 %v523
  %v525 = vpop.xlane.xlu0 %524
  %v526 = vsel %vm522, %v507, -inf
  %527 = vmax.xlane.f32.xlu0 %v526
  %v528 = vpop.xlane.xlu0 %527
  %v529 = vsel %vm522, %v508, -inf
  %530 = vmax.xlane.f32.xlu0 %v529
  %v531 = vpop.xlane.xlu0 %530
  %v532 = vsel %vm522, %v509, -inf
  %533 = vmax.xlane.f32.xlu0 %v532
  %v534 = vpop.xlane.xlu0 %533
  %v535 = vsel %vm522, %v510, -inf
  %536 = vmax.xlane.f32.xlu0 %v535
  %v537 = vpop.xlane.xlu0 %536
  %v538 = vsel %vm522, %v511, -inf
  %539 = vmax.xlane.f32.xlu0 %v538
  %v540 = vpop.xlane.xlu0 %539
  %v541 = vsel %vm522, %v512, -inf
  %542 = vmax.xlane.f32.xlu0 %v541
  %v543 = vpop.xlane.xlu0 %542
  %v544 = vsel %vm522, %v513, -inf
  %545 = vmax.xlane.f32.xlu0 %v544
  %v546 = vpop.xlane.xlu0 %545
  %v547 = vsel %vm522, %v514, -inf
  %548 = vmax.xlane.f32.xlu0 %v547
  %v549 = vpop.xlane.xlu0 %548
  %v550 = vsel %vm522, %v515, -inf
  %551 = vmax.xlane.f32.xlu0 %v550
  %v552 = vpop.xlane.xlu0 %551
  %v553 = vsel %vm522, %v516, -inf
  %554 = vmax.xlane.f32.xlu0 %v553
  %v555 = vpop.xlane.xlu0 %554
  %v556 = vsel %vm522, %v517, -inf
  %557 = vmax.xlane.f32.xlu0 %v556
  %v558 = vpop.xlane.xlu0 %557
  %v559 = vsel %vm522, %v518, -inf
  %560 = vmax.xlane.f32.xlu0 %v559
  %v561 = vpop.xlane.xlu0 %560
  %v562 = vsel %vm522, %v519, -inf
  %563 = vmax.xlane.f32.xlu0 %v562
  %v564 = vpop.xlane.xlu0 %563
  %v565 = vsel %vm522, %v520, -inf
  %566 = vmax.xlane.f32.xlu0 %v565
  %v567 = vpop.xlane.xlu0 %566
  %v568 = vsel %vm522, %v521, -inf
  %569 = vmax.xlane.f32.xlu0 %v568
  %v570 = vpop.xlane.xlu0 %569
  %v571 = vsub.f32 %v506, %v525
  %v572 = vsub.f32 %v507, %v528
  %v573 = vsub.f32 %v508, %v531
  %v574 = vsub.f32 %v509, %v534
  %v575 = vsub.f32 %v510, %v537
  %v576 = vsub.f32 %v511, %v540
  %v577 = vsub.f32 %v512, %v543
  %v578 = vsub.f32 %v513, %v546
  %v579 = vsub.f32 %v514, %v549
  %v580 = vsub.f32 %v515, %v552
  %v581 = vsub.f32 %v516, %v555
  %v582 = vsub.f32 %v517, %v558
  %v583 = vsub.f32 %v518, %v561
  %v584 = vsub.f32 %v519, %v564
  %v585 = vsub.f32 %v520, %v567
  %v586 = vsub.f32 %v521, %v570
  %v587 = vmul.f32 %v571, 1.442695
  %v588 = vpow.pop %v587
  %v589 = vmul.f32 %v572, 1.442695
  %v590 = vpow.pop %v589
  %v591 = vmul.f32 %v573, 1.442695
  %v592 = vpow.pop %v591
  %v593 = vmul.f32 %v574, 1.442695
  %v594 = vpow.pop %v593
  %v595 = vmul.f32 %v575, 1.442695
  %v596 = vpow.pop %v595
  %v597 = vmul.f32 %v576, 1.442695
  %v598 = vpow.pop %v597
  %v599 = vmul.f32 %v577, 1.442695
  %v600 = vpow.pop %v599
  %v601 = vmul.f32 %v578, 1.442695
  %v602 = vpow.pop %v601
  %v603 = vmul.f32 %v579, 1.442695
  %v604 = vpow.pop %v603
  %v605 = vmul.f32 %v580, 1.442695
  %v606 = vpow.pop %v605
  %v607 = vmul.f32 %v581, 1.442695
  %v608 = vpow.pop %v607
  %v609 = vmul.f32 %v582, 1.442695
  %v610 = vpow.pop %v609
  %v611 = vmul.f32 %v583, 1.442695
  %v612 = vpow.pop %v611
  %v613 = vmul.f32 %v584, 1.442695
  %v614 = vpow.pop %v613
  %v615 = vmul.f32 %v585, 1.442695
  %v616 = vpow.pop %v615
  %v617 = vmul.f32 %v586, 1.442695
  %v618 = vpow.pop %v617
  %635 = vrot.lane.b32.xlu0 %v588, 96
  %v636 = vpop.permute.xlu0 %635
  %637 = vrot.lane.b32.xlu0 %v590, 96
  %v638 = vpop.permute.xlu0 %637
  %639 = vrot.lane.b32.xlu0 %v592, 96
  %v640 = vpop.permute.xlu0 %639
  %641 = vrot.lane.b32.xlu0 %v594, 96
  %v642 = vpop.permute.xlu0 %641
  %643 = vrot.lane.b32.xlu0 %v596, 96
  %v644 = vpop.permute.xlu0 %643
  %645 = vrot.lane.b32.xlu0 %v598, 96
  %v646 = vpop.permute.xlu0 %645
  %647 = vrot.lane.b32.xlu0 %v600, 96
  %v648 = vpop.permute.xlu0 %647
  %649 = vrot.lane.b32.xlu0 %v602, 96
  %v650 = vpop.permute.xlu0 %649
  %651 = vrot.lane.b32.xlu0 %v604, 96
  %v652 = vpop.permute.xlu0 %651
  %653 = vrot.lane.b32.xlu0 %v606, 96
  %v654 = vpop.permute.xlu0 %653
  %655 = vrot.lane.b32.xlu0 %v608, 96
  %v656 = vpop.permute.xlu0 %655
  %657 = vrot.lane.b32.xlu0 %v610, 96
  %v658 = vpop.permute.xlu0 %657
  %659 = vrot.lane.b32.xlu0 %v612, 96
  %v660 = vpop.permute.xlu0 %659
  %661 = vrot.lane.b32.xlu0 %v614, 96
  %v662 = vpop.permute.xlu0 %661
  %663 = vrot.lane.b32.xlu0 %v616, 96
  %v664 = vpop.permute.xlu0 %663
  %665 = vrot.lane.b32.xlu0 %v618, 96
  %v666 = vpop.permute.xlu0 %665
  %vm683 = vcmask 80896
  %v684 = vsel %vm683, %v636, 0.0
  %685 = vadd.xlane.f32.xlu0 %v684
  %v686 = vpop.xlane.xlu0 %685
  %v687 = vsel %vm683, %v638, 0.0
  %688 = vadd.xlane.f32.xlu0 %v687
  %v689 = vpop.xlane.xlu0 %688
  %v690 = vsel %vm683, %v640, 0.0
  %691 = vadd.xlane.f32.xlu0 %v690
  %v692 = vpop.xlane.xlu0 %691
  %v693 = vsel %vm683, %v642, 0.0
  %694 = vadd.xlane.f32.xlu0 %v693
  %v695 = vpop.xlane.xlu0 %694
  %v696 = vsel %vm683, %v644, 0.0
  %697 = vadd.xlane.f32.xlu0 %v696
  %v698 = vpop.xlane.xlu0 %697
  %v699 = vsel %vm683, %v646, 0.0
  %700 = vadd.xlane.f32.xlu0 %v699
  %v701 = vpop.xlane.xlu0 %700
  %v702 = vsel %vm683, %v648, 0.0
  %703 = vadd.xlane.f32.xlu0 %v702
  %v704 = vpop.xlane.xlu0 %703
  %v705 = vsel %vm683, %v650, 0.0
  %706 = vadd.xlane.f32.xlu0 %v705
  %v707 = vpop.xlane.xlu0 %706
  %v708 = vsel %vm683, %v652, 0.0
  %709 = vadd.xlane.f32.xlu0 %v708
  %v710 = vpop.xlane.xlu0 %709
  %v711 = vsel %vm683, %v654, 0.0
  %712 = vadd.xlane.f32.xlu0 %v711
  %v713 = vpop.xlane.xlu0 %712
  %v714 = vsel %vm683, %v656, 0.0
  %715 = vadd.xlane.f32.xlu0 %v714
  %v716 = vpop.xlane.xlu0 %715
  %v717 = vsel %vm683, %v658, 0.0
  %718 = vadd.xlane.f32.xlu0 %v717
  %v719 = vpop.xlane.xlu0 %718
  %v720 = vsel %vm683, %v660, 0.0
  %721 = vadd.xlane.f32.xlu0 %v720
  %v722 = vpop.xlane.xlu0 %721
  %v723 = vsel %vm683, %v662, 0.0
  %724 = vadd.xlane.f32.xlu0 %v723
  %v725 = vpop.xlane.xlu0 %724
  %v726 = vsel %vm683, %v664, 0.0
  %727 = vadd.xlane.f32.xlu0 %v726
  %v728 = vpop.xlane.xlu0 %727
  %v729 = vsel %vm683, %v666, 0.0
  %730 = vadd.xlane.f32.xlu0 %v729
  %v731 = vpop.xlane.xlu0 %730
  %v732 = vrcp.pop %v686
  %v733 = vrcp.pop %v689
  %v734 = vrcp.pop %v692
  %v735 = vrcp.pop %v695
  %v736 = vrcp.pop %v698
  %v737 = vrcp.pop %v701
  %v738 = vrcp.pop %v704
  %v739 = vrcp.pop %v707
  %v740 = vrcp.pop %v710
  %v741 = vrcp.pop %v713
  %v742 = vrcp.pop %v716
  %v743 = vrcp.pop %v719
  %v744 = vrcp.pop %v722
  %v745 = vrcp.pop %v725
  %v746 = vrcp.pop %v728
  %v747 = vrcp.pop %v731
  %v748 = vmul.f32 %v588, %v732
  %v749 = vmul.f32 %v590, %v733
  %v750 = vmul.f32 %v592, %v734
  %v751 = vmul.f32 %v594, %v735
  %v752 = vmul.f32 %v596, %v736
  %v753 = vmul.f32 %v598, %v737
  %v754 = vmul.f32 %v600, %v738
  %v755 = vmul.f32 %v602, %v739
  %v756 = vmul.f32 %v604, %v740
  %v757 = vmul.f32 %v606, %v741
  %v758 = vmul.f32 %v608, %v742
  %v759 = vmul.f32 %v610, %v743
  %v760 = vmul.f32 %v612, %v744
  %v761 = vmul.f32 %v614, %v745
  %v762 = vmul.f32 %v616, %v746
  %v763 = vmul.f32 %v618, %v747
  %v764 = vld [vmem:[%s2] sm:$0xf]
  %v765 = vld [vmem:[%s2 + $0x4] sm:$0xf]
  %v766 = vld [vmem:[%s2 + $0x8] sm:$0xf]
  %v767 = vld [vmem:[%s2 + $0xc] sm:$0xf]
  %v768 = vld [vmem:[%s2 + $0x10] sm:$0xf]
  %v769 = vld [vmem:[%s2 + $0x14] sm:$0xf]
  %v770 = vld [vmem:[%s2 + $0x18] sm:$0xf]
  %v771 = vld [vmem:[%s2 + $0x1c] sm:$0xf]
  %v772 = vld [vmem:[%s2 + $0x20] sm:$0xf]
  %v773 = vld [vmem:[%s2 + $0x24] sm:$0xf]
  %v774 = vld [vmem:[%s2 + $0x28] sm:$0xf]
  %v775 = vld [vmem:[%s2 + $0x2c] sm:$0xf]
  %v776 = vld [vmem:[%s2 + $0x30] sm:$0xf]
  %v777 = vld [vmem:[%s2 + $0x34] sm:$0xf]
  %v778 = vld [vmem:[%s2 + $0x38] sm:$0xf]
  %v779 = vld [vmem:[%s2 + $0x3c] sm:$0xf]
  %v780 = vunpack.c.l.bf16 %v764
  %v781 = vunpack.c.l.bf16 %v765
  %v782 = vunpack.c.l.bf16 %v766
  %v783 = vunpack.c.l.bf16 %v767
  %v784 = vunpack.c.l.bf16 %v768
  %v785 = vunpack.c.l.bf16 %v769
  %v786 = vunpack.c.l.bf16 %v770
  %v787 = vunpack.c.l.bf16 %v771
  %v788 = vunpack.c.l.bf16 %v772
  %v789 = vunpack.c.l.bf16 %v773
  %v790 = vunpack.c.l.bf16 %v774
  %v791 = vunpack.c.l.bf16 %v775
  %v792 = vunpack.c.l.bf16 %v776
  %v793 = vunpack.c.l.bf16 %v777
  %v794 = vunpack.c.l.bf16 %v778
  %v795 = vunpack.c.l.bf16 %v779
  %797 = vset.pattern.permute.xlu0 32
  %798 = vperm.xlu0 %797, %v748
  %v799 = vpop.permute.xlu0 %798
  %802 = vset.pattern.permute.xlu0 32
  %803 = vperm.xlu0 %802, %v749
  %v804 = vpop.permute.xlu0 %803
  %807 = vset.pattern.permute.xlu0 32
  %808 = vperm.xlu0 %807, %v750
  %v809 = vpop.permute.xlu0 %808
  %812 = vset.pattern.permute.xlu0 32
  %813 = vperm.xlu0 %812, %v751
  %v814 = vpop.permute.xlu0 %813
  %817 = vset.pattern.permute.xlu0 32
  %818 = vperm.xlu0 %817, %v752
  %v819 = vpop.permute.xlu0 %818
  %822 = vset.pattern.permute.xlu0 32
  %823 = vperm.xlu0 %822, %v753
  %v824 = vpop.permute.xlu0 %823
  %827 = vset.pattern.permute.xlu0 32
  %828 = vperm.xlu0 %827, %v754
  %v829 = vpop.permute.xlu0 %828
  %832 = vset.pattern.permute.xlu0 32
  %833 = vperm.xlu0 %832, %v755
  %v834 = vpop.permute.xlu0 %833
  %837 = vset.pattern.permute.xlu0 32
  %838 = vperm.xlu0 %837, %v756
  %v839 = vpop.permute.xlu0 %838
  %842 = vset.pattern.permute.xlu0 32
  %843 = vperm.xlu0 %842, %v757
  %v844 = vpop.permute.xlu0 %843
  %847 = vset.pattern.permute.xlu0 32
  %848 = vperm.xlu0 %847, %v758
  %v849 = vpop.permute.xlu0 %848
  %852 = vset.pattern.permute.xlu0 32
  %853 = vperm.xlu0 %852, %v759
  %v854 = vpop.permute.xlu0 %853
  %857 = vset.pattern.permute.xlu0 32
  %858 = vperm.xlu0 %857, %v760
  %v859 = vpop.permute.xlu0 %858
  %862 = vset.pattern.permute.xlu0 32
  %863 = vperm.xlu0 %862, %v761
  %v864 = vpop.permute.xlu0 %863
  %867 = vset.pattern.permute.xlu0 32
  %868 = vperm.xlu0 %867, %v762
  %v869 = vpop.permute.xlu0 %868
  %872 = vset.pattern.permute.xlu0 32
  %873 = vperm.xlu0 %872, %v763
  %v874 = vpop.permute.xlu0 %873
  %v876 = vmul.f32 %v799, %v780
  %v877 = vmul.f32 %v804, %v781
  %v878 = vmul.f32 %v809, %v782
  %v879 = vmul.f32 %v814, %v783
  %v880 = vmul.f32 %v819, %v784
  %v881 = vmul.f32 %v824, %v785
  %v882 = vmul.f32 %v829, %v786
  %v883 = vmul.f32 %v834, %v787
  %v884 = vmul.f32 %v839, %v788
  %v885 = vmul.f32 %v844, %v789
  %v886 = vmul.f32 %v849, %v790
  %v887 = vmul.f32 %v854, %v791
  %v888 = vmul.f32 %v859, %v792
  %v889 = vmul.f32 %v864, %v793
  %v890 = vmul.f32 %v869, %v794
  %v891 = vmul.f32 %v874, %v795
  %s892 = scalar_lea.vmem %s2, 64
  %v893 = vld [vmem:[%s892] sm:$0xf]
  %v894 = vld [vmem:[%s892 + $0x4] sm:$0xf]
  %v895 = vld [vmem:[%s892 + $0x8] sm:$0xf]
  %v896 = vld [vmem:[%s892 + $0xc] sm:$0xf]
  %v897 = vld [vmem:[%s892 + $0x10] sm:$0xf]
  %v898 = vld [vmem:[%s892 + $0x14] sm:$0xf]
  %v899 = vld [vmem:[%s892 + $0x18] sm:$0xf]
  %v900 = vld [vmem:[%s892 + $0x1c] sm:$0xf]
  %v901 = vld [vmem:[%s892 + $0x20] sm:$0xf]
  %v902 = vld [vmem:[%s892 + $0x24] sm:$0xf]
  %v903 = vld [vmem:[%s892 + $0x28] sm:$0xf]
  %v904 = vld [vmem:[%s892 + $0x2c] sm:$0xf]
  %v905 = vld [vmem:[%s892 + $0x30] sm:$0xf]
  %v906 = vld [vmem:[%s892 + $0x34] sm:$0xf]
  %v907 = vld [vmem:[%s892 + $0x38] sm:$0xf]
  %v908 = vld [vmem:[%s892 + $0x3c] sm:$0xf]
  %v909 = vunpack.c.l.bf16 %v893
  %v910 = vunpack.c.l.bf16 %v894
  %v911 = vunpack.c.l.bf16 %v895
  %v912 = vunpack.c.l.bf16 %v896
  %v913 = vunpack.c.l.bf16 %v897
  %v914 = vunpack.c.l.bf16 %v898
  %v915 = vunpack.c.l.bf16 %v899
  %v916 = vunpack.c.l.bf16 %v900
  %v917 = vunpack.c.l.bf16 %v901
  %v918 = vunpack.c.l.bf16 %v902
  %v919 = vunpack.c.l.bf16 %v903
  %v920 = vunpack.c.l.bf16 %v904
  %v921 = vunpack.c.l.bf16 %v905
  %v922 = vunpack.c.l.bf16 %v906
  %v923 = vunpack.c.l.bf16 %v907
  %v924 = vunpack.c.l.bf16 %v908
  %925 = vset.pattern.permute.xlu0 33
  %926 = vperm.xlu0 %925, %v748
  %v927 = vpop.permute.xlu0 %926
  %929 = vset.pattern.permute.xlu0 33
  %930 = vperm.xlu0 %929, %v749
  %v931 = vpop.permute.xlu0 %930
  %933 = vset.pattern.permute.xlu0 33
  %934 = vperm.xlu0 %933, %v750
  %v935 = vpop.permute.xlu0 %934
  %937 = vset.pattern.permute.xlu0 33
  %938 = vperm.xlu0 %937, %v751
  %v939 = vpop.permute.xlu0 %938
  %941 = vset.pattern.permute.xlu0 33
  %942 = vperm.xlu0 %941, %v752
  %v943 = vpop.permute.xlu0 %942
  %945 = vset.pattern.permute.xlu0 33
  %946 = vperm.xlu0 %945, %v753
  %v947 = vpop.permute.xlu0 %946
  %949 = vset.pattern.permute.xlu0 33
  %950 = vperm.xlu0 %949, %v754
  %v951 = vpop.permute.xlu0 %950
  %953 = vset.pattern.permute.xlu0 33
  %954 = vperm.xlu0 %953, %v755
  %v955 = vpop.permute.xlu0 %954
  %957 = vset.pattern.permute.xlu0 33
  %958 = vperm.xlu0 %957, %v756
  %v959 = vpop.permute.xlu0 %958
  %961 = vset.pattern.permute.xlu0 33
  %962 = vperm.xlu0 %961, %v757
  %v963 = vpop.permute.xlu0 %962
  %965 = vset.pattern.permute.xlu0 33
  %966 = vperm.xlu0 %965, %v758
  %v967 = vpop.permute.xlu0 %966
  %969 = vset.pattern.permute.xlu0 33
  %970 = vperm.xlu0 %969, %v759
  %v971 = vpop.permute.xlu0 %970
  %973 = vset.pattern.permute.xlu0 33
  %974 = vperm.xlu0 %973, %v760
  %v975 = vpop.permute.xlu0 %974
  %977 = vset.pattern.permute.xlu0 33
  %978 = vperm.xlu0 %977, %v761
  %v979 = vpop.permute.xlu0 %978
  %981 = vset.pattern.permute.xlu0 33
  %982 = vperm.xlu0 %981, %v762
  %v983 = vpop.permute.xlu0 %982
  %985 = vset.pattern.permute.xlu0 33
  %986 = vperm.xlu0 %985, %v763
  %v987 = vpop.permute.xlu0 %986
  %v989 = vmul.f32 %v927, %v909
  %v990 = vmul.f32 %v931, %v910
  %v991 = vmul.f32 %v935, %v911
  %v992 = vmul.f32 %v939, %v912
  %v993 = vmul.f32 %v943, %v913
  %v994 = vmul.f32 %v947, %v914
  %v995 = vmul.f32 %v951, %v915
  %v996 = vmul.f32 %v955, %v916
  %v997 = vmul.f32 %v959, %v917
  %v998 = vmul.f32 %v963, %v918
  %v999 = vmul.f32 %v967, %v919
  %v1000 = vmul.f32 %v971, %v920
  %v1001 = vmul.f32 %v975, %v921
  %v1002 = vmul.f32 %v979, %v922
  %v1003 = vmul.f32 %v983, %v923
  %v1004 = vmul.f32 %v987, %v924
  %v1005 = vadd.f32 %v876, %v989
  %v1006 = vadd.f32 %v877, %v990
  %v1007 = vadd.f32 %v878, %v991
  %v1008 = vadd.f32 %v879, %v992
  %v1009 = vadd.f32 %v880, %v993
  %v1010 = vadd.f32 %v881, %v994
  %v1011 = vadd.f32 %v882, %v995
  %v1012 = vadd.f32 %v883, %v996
  %v1013 = vadd.f32 %v884, %v997
  %v1014 = vadd.f32 %v885, %v998
  %v1015 = vadd.f32 %v886, %v999
  %v1016 = vadd.f32 %v887, %v1000
  %v1017 = vadd.f32 %v888, %v1001
  %v1018 = vadd.f32 %v889, %v1002
  %v1019 = vadd.f32 %v890, %v1003
  %v1020 = vadd.f32 %v891, %v1004
  %s1021 = scalar_lea.vmem %s2, 128
  %v1022 = vld [vmem:[%s1021] sm:$0xf]
  %v1023 = vld [vmem:[%s1021 + $0x4] sm:$0xf]
  %v1024 = vld [vmem:[%s1021 + $0x8] sm:$0xf]
  %v1025 = vld [vmem:[%s1021 + $0xc] sm:$0xf]
  %v1026 = vld [vmem:[%s1021 + $0x10] sm:$0xf]
  %v1027 = vld [vmem:[%s1021 + $0x14] sm:$0xf]
  %v1028 = vld [vmem:[%s1021 + $0x18] sm:$0xf]
  %v1029 = vld [vmem:[%s1021 + $0x1c] sm:$0xf]
  %v1030 = vld [vmem:[%s1021 + $0x20] sm:$0xf]
  %v1031 = vld [vmem:[%s1021 + $0x24] sm:$0xf]
  %v1032 = vld [vmem:[%s1021 + $0x28] sm:$0xf]
  %v1033 = vld [vmem:[%s1021 + $0x2c] sm:$0xf]
  %v1034 = vld [vmem:[%s1021 + $0x30] sm:$0xf]
  %v1035 = vld [vmem:[%s1021 + $0x34] sm:$0xf]
  %v1036 = vld [vmem:[%s1021 + $0x38] sm:$0xf]
  %v1037 = vld [vmem:[%s1021 + $0x3c] sm:$0xf]
  %v1038 = vunpack.c.l.bf16 %v1022
  %v1039 = vunpack.c.l.bf16 %v1023
  %v1040 = vunpack.c.l.bf16 %v1024
  %v1041 = vunpack.c.l.bf16 %v1025
  %v1042 = vunpack.c.l.bf16 %v1026
  %v1043 = vunpack.c.l.bf16 %v1027
  %v1044 = vunpack.c.l.bf16 %v1028
  %v1045 = vunpack.c.l.bf16 %v1029
  %v1046 = vunpack.c.l.bf16 %v1030
  %v1047 = vunpack.c.l.bf16 %v1031
  %v1048 = vunpack.c.l.bf16 %v1032
  %v1049 = vunpack.c.l.bf16 %v1033
  %v1050 = vunpack.c.l.bf16 %v1034
  %v1051 = vunpack.c.l.bf16 %v1035
  %v1052 = vunpack.c.l.bf16 %v1036
  %v1053 = vunpack.c.l.bf16 %v1037
  %1054 = vset.pattern.permute.xlu0 34
  %1055 = vperm.xlu0 %1054, %v748
  %v1056 = vpop.permute.xlu0 %1055
  %1058 = vset.pattern.permute.xlu0 34
  %1059 = vperm.xlu0 %1058, %v749
  %v1060 = vpop.permute.xlu0 %1059
  %1062 = vset.pattern.permute.xlu0 34
  %1063 = vperm.xlu0 %1062, %v750
  %v1064 = vpop.permute.xlu0 %1063
  %1066 = vset.pattern.permute.xlu0 34
  %1067 = vperm.xlu0 %1066, %v751
  %v1068 = vpop.permute.xlu0 %1067
  %1070 = vset.pattern.permute.xlu0 34
  %1071 = vperm.xlu0 %1070, %v752
  %v1072 = vpop.permute.xlu0 %1071
  %1074 = vset.pattern.permute.xlu0 34
  %1075 = vperm.xlu0 %1074, %v753
  %v1076 = vpop.permute.xlu0 %1075
  %1078 = vset.pattern.permute.xlu0 34
  %1079 = vperm.xlu0 %1078, %v754
  %v1080 = vpop.permute.xlu0 %1079
  %1082 = vset.pattern.permute.xlu0 34
  %1083 = vperm.xlu0 %1082, %v755
  %v1084 = vpop.permute.xlu0 %1083
  %1086 = vset.pattern.permute.xlu0 34
  %1087 = vperm.xlu0 %1086, %v756
  %v1088 = vpop.permute.xlu0 %1087
  %1090 = vset.pattern.permute.xlu0 34
  %1091 = vperm.xlu0 %1090, %v757
  %v1092 = vpop.permute.xlu0 %1091
  %1094 = vset.pattern.permute.xlu0 34
  %1095 = vperm.xlu0 %1094, %v758
  %v1096 = vpop.permute.xlu0 %1095
  %1098 = vset.pattern.permute.xlu0 34
  %1099 = vperm.xlu0 %1098, %v759
  %v1100 = vpop.permute.xlu0 %1099
  %1102 = vset.pattern.permute.xlu0 34
  %1103 = vperm.xlu0 %1102, %v760
  %v1104 = vpop.permute.xlu0 %1103
  %1106 = vset.pattern.permute.xlu0 34
  %1107 = vperm.xlu0 %1106, %v761
  %v1108 = vpop.permute.xlu0 %1107
  %1110 = vset.pattern.permute.xlu0 34
  %1111 = vperm.xlu0 %1110, %v762
  %v1112 = vpop.permute.xlu0 %1111
  %1114 = vset.pattern.permute.xlu0 34
  %1115 = vperm.xlu0 %1114, %v763
  %v1116 = vpop.permute.xlu0 %1115
  %v1118 = vmul.f32 %v1056, %v1038
  %v1119 = vmul.f32 %v1060, %v1039
  %v1120 = vmul.f32 %v1064, %v1040
  %v1121 = vmul.f32 %v1068, %v1041
  %v1122 = vmul.f32 %v1072, %v1042
  %v1123 = vmul.f32 %v1076, %v1043
  %v1124 = vmul.f32 %v1080, %v1044
  %v1125 = vmul.f32 %v1084, %v1045
  %v1126 = vmul.f32 %v1088, %v1046
  %v1127 = vmul.f32 %v1092, %v1047
  %v1128 = vmul.f32 %v1096, %v1048
  %v1129 = vmul.f32 %v1100, %v1049
  %v1130 = vmul.f32 %v1104, %v1050
  %v1131 = vmul.f32 %v1108, %v1051
  %v1132 = vmul.f32 %v1112, %v1052
  %v1133 = vmul.f32 %v1116, %v1053
  %v1134 = vadd.f32 %v1005, %v1118
  %v1135 = vadd.f32 %v1006, %v1119
  %v1136 = vadd.f32 %v1007, %v1120
  %v1137 = vadd.f32 %v1008, %v1121
  %v1138 = vadd.f32 %v1009, %v1122
  %v1139 = vadd.f32 %v1010, %v1123
  %v1140 = vadd.f32 %v1011, %v1124
  %v1141 = vadd.f32 %v1012, %v1125
  %v1142 = vadd.f32 %v1013, %v1126
  %v1143 = vadd.f32 %v1014, %v1127
  %v1144 = vadd.f32 %v1015, %v1128
  %v1145 = vadd.f32 %v1016, %v1129
  %v1146 = vadd.f32 %v1017, %v1130
  %v1147 = vadd.f32 %v1018, %v1131
  %v1148 = vadd.f32 %v1019, %v1132
  %v1149 = vadd.f32 %v1020, %v1133
  %s1150 = scalar_lea.vmem %s2, 192
  %v1151 = vld [vmem:[%s1150] sm:$0xf]
  %v1152 = vld [vmem:[%s1150 + $0x4] sm:$0xf]
  %v1153 = vld [vmem:[%s1150 + $0x8] sm:$0xf]
  %v1154 = vld [vmem:[%s1150 + $0xc] sm:$0xf]
  %v1155 = vld [vmem:[%s1150 + $0x10] sm:$0xf]
  %v1156 = vld [vmem:[%s1150 + $0x14] sm:$0xf]
  %v1157 = vld [vmem:[%s1150 + $0x18] sm:$0xf]
  %v1158 = vld [vmem:[%s1150 + $0x1c] sm:$0xf]
  %v1159 = vld [vmem:[%s1150 + $0x20] sm:$0xf]
  %v1160 = vld [vmem:[%s1150 + $0x24] sm:$0xf]
  %v1161 = vld [vmem:[%s1150 + $0x28] sm:$0xf]
  %v1162 = vld [vmem:[%s1150 + $0x2c] sm:$0xf]
  %v1163 = vld [vmem:[%s1150 + $0x30] sm:$0xf]
  %v1164 = vld [vmem:[%s1150 + $0x34] sm:$0xf]
  %v1165 = vld [vmem:[%s1150 + $0x38] sm:$0xf]
  %v1166 = vld [vmem:[%s1150 + $0x3c] sm:$0xf]
  %v1167 = vunpack.c.l.bf16 %v1151
  %v1168 = vunpack.c.l.bf16 %v1152
  %v1169 = vunpack.c.l.bf16 %v1153
  %v1170 = vunpack.c.l.bf16 %v1154
  %v1171 = vunpack.c.l.bf16 %v1155
  %v1172 = vunpack.c.l.bf16 %v1156
  %v1173 = vunpack.c.l.bf16 %v1157
  %v1174 = vunpack.c.l.bf16 %v1158
  %v1175 = vunpack.c.l.bf16 %v1159
  %v1176 = vunpack.c.l.bf16 %v1160
  %v1177 = vunpack.c.l.bf16 %v1161
  %v1178 = vunpack.c.l.bf16 %v1162
  %v1179 = vunpack.c.l.bf16 %v1163
  %v1180 = vunpack.c.l.bf16 %v1164
  %v1181 = vunpack.c.l.bf16 %v1165
  %v1182 = vunpack.c.l.bf16 %v1166
  %1183 = vset.pattern.permute.xlu0 35
  %1184 = vperm.xlu0 %1183, %v748
  %v1185 = vpop.permute.xlu0 %1184
  %1187 = vset.pattern.permute.xlu0 35
  %1188 = vperm.xlu0 %1187, %v749
  %v1189 = vpop.permute.xlu0 %1188
  %1191 = vset.pattern.permute.xlu0 35
  %1192 = vperm.xlu0 %1191, %v750
  %v1193 = vpop.permute.xlu0 %1192
  %1195 = vset.pattern.permute.xlu0 35
  %1196 = vperm.xlu0 %1195, %v751
  %v1197 = vpop.permute.xlu0 %1196
  %1199 = vset.pattern.permute.xlu0 35
  %1200 = vperm.xlu0 %1199, %v752
  %v1201 = vpop.permute.xlu0 %1200
  %1203 = vset.pattern.permute.xlu0 35
  %1204 = vperm.xlu0 %1203, %v753
  %v1205 = vpop.permute.xlu0 %1204
  %1207 = vset.pattern.permute.xlu0 35
  %1208 = vperm.xlu0 %1207, %v754
  %v1209 = vpop.permute.xlu0 %1208
  %1211 = vset.pattern.permute.xlu0 35
  %1212 = vperm.xlu0 %1211, %v755
  %v1213 = vpop.permute.xlu0 %1212
  %1215 = vset.pattern.permute.xlu0 35
  %1216 = vperm.xlu0 %1215, %v756
  %v1217 = vpop.permute.xlu0 %1216
  %1219 = vset.pattern.permute.xlu0 35
  %1220 = vperm.xlu0 %1219, %v757
  %v1221 = vpop.permute.xlu0 %1220
  %1223 = vset.pattern.permute.xlu0 35
  %1224 = vperm.xlu0 %1223, %v758
  %v1225 = vpop.permute.xlu0 %1224
  %1227 = vset.pattern.permute.xlu0 35
  %1228 = vperm.xlu0 %1227, %v759
  %v1229 = vpop.permute.xlu0 %1228
  %1231 = vset.pattern.permute.xlu0 35
  %1232 = vperm.xlu0 %1231, %v760
  %v1233 = vpop.permute.xlu0 %1232
  %1235 = vset.pattern.permute.xlu0 35
  %1236 = vperm.xlu0 %1235, %v761
  %v1237 = vpop.permute.xlu0 %1236
  %1239 = vset.pattern.permute.xlu0 35
  %1240 = vperm.xlu0 %1239, %v762
  %v1241 = vpop.permute.xlu0 %1240
  %1243 = vset.pattern.permute.xlu0 35
  %1244 = vperm.xlu0 %1243, %v763
  %v1245 = vpop.permute.xlu0 %1244
  %v1247 = vmul.f32 %v1185, %v1167
  %v1248 = vmul.f32 %v1189, %v1168
  %v1249 = vmul.f32 %v1193, %v1169
  %v1250 = vmul.f32 %v1197, %v1170
  %v1251 = vmul.f32 %v1201, %v1171
  %v1252 = vmul.f32 %v1205, %v1172
  %v1253 = vmul.f32 %v1209, %v1173
  %v1254 = vmul.f32 %v1213, %v1174
  %v1255 = vmul.f32 %v1217, %v1175
  %v1256 = vmul.f32 %v1221, %v1176
  %v1257 = vmul.f32 %v1225, %v1177
  %v1258 = vmul.f32 %v1229, %v1178
  %v1259 = vmul.f32 %v1233, %v1179
  %v1260 = vmul.f32 %v1237, %v1180
  %v1261 = vmul.f32 %v1241, %v1181
  %v1262 = vmul.f32 %v1245, %v1182
  %v1263 = vadd.f32 %v1134, %v1247
  %v1264 = vadd.f32 %v1135, %v1248
  %v1265 = vadd.f32 %v1136, %v1249
  %v1266 = vadd.f32 %v1137, %v1250
  %v1267 = vadd.f32 %v1138, %v1251
  %v1268 = vadd.f32 %v1139, %v1252
  %v1269 = vadd.f32 %v1140, %v1253
  %v1270 = vadd.f32 %v1141, %v1254
  %v1271 = vadd.f32 %v1142, %v1255
  %v1272 = vadd.f32 %v1143, %v1256
  %v1273 = vadd.f32 %v1144, %v1257
  %v1274 = vadd.f32 %v1145, %v1258
  %v1275 = vadd.f32 %v1146, %v1259
  %v1276 = vadd.f32 %v1147, %v1260
  %v1277 = vadd.f32 %v1148, %v1261
  %v1278 = vadd.f32 %v1149, %v1262
  %s1279 = scalar_lea.vmem %s2, 256
  %v1280 = vld [vmem:[%s1279] sm:$0xf]
  %v1281 = vld [vmem:[%s1279 + $0x4] sm:$0xf]
  %v1282 = vld [vmem:[%s1279 + $0x8] sm:$0xf]
  %v1283 = vld [vmem:[%s1279 + $0xc] sm:$0xf]
  %v1284 = vld [vmem:[%s1279 + $0x10] sm:$0xf]
  %v1285 = vld [vmem:[%s1279 + $0x14] sm:$0xf]
  %v1286 = vld [vmem:[%s1279 + $0x18] sm:$0xf]
  %v1287 = vld [vmem:[%s1279 + $0x1c] sm:$0xf]
  %v1288 = vld [vmem:[%s1279 + $0x20] sm:$0xf]
  %v1289 = vld [vmem:[%s1279 + $0x24] sm:$0xf]
  %v1290 = vld [vmem:[%s1279 + $0x28] sm:$0xf]
  %v1291 = vld [vmem:[%s1279 + $0x2c] sm:$0xf]
  %v1292 = vld [vmem:[%s1279 + $0x30] sm:$0xf]
  %v1293 = vld [vmem:[%s1279 + $0x34] sm:$0xf]
  %v1294 = vld [vmem:[%s1279 + $0x38] sm:$0xf]
  %v1295 = vld [vmem:[%s1279 + $0x3c] sm:$0xf]
  %v1296 = vunpack.c.l.bf16 %v1280
  %v1297 = vunpack.c.l.bf16 %v1281
  %v1298 = vunpack.c.l.bf16 %v1282
  %v1299 = vunpack.c.l.bf16 %v1283
  %v1300 = vunpack.c.l.bf16 %v1284
  %v1301 = vunpack.c.l.bf16 %v1285
  %v1302 = vunpack.c.l.bf16 %v1286
  %v1303 = vunpack.c.l.bf16 %v1287
  %v1304 = vunpack.c.l.bf16 %v1288
  %v1305 = vunpack.c.l.bf16 %v1289
  %v1306 = vunpack.c.l.bf16 %v1290
  %v1307 = vunpack.c.l.bf16 %v1291
  %v1308 = vunpack.c.l.bf16 %v1292
  %v1309 = vunpack.c.l.bf16 %v1293
  %v1310 = vunpack.c.l.bf16 %v1294
  %v1311 = vunpack.c.l.bf16 %v1295
  %1312 = vset.pattern.permute.xlu0 36
  %1313 = vperm.xlu0 %1312, %v748
  %v1314 = vpop.permute.xlu0 %1313
  %1316 = vset.pattern.permute.xlu0 36
  %1317 = vperm.xlu0 %1316, %v749
  %v1318 = vpop.permute.xlu0 %1317
  %1320 = vset.pattern.permute.xlu0 36
  %1321 = vperm.xlu0 %1320, %v750
  %v1322 = vpop.permute.xlu0 %1321
  %1324 = vset.pattern.permute.xlu0 36
  %1325 = vperm.xlu0 %1324, %v751
  %v1326 = vpop.permute.xlu0 %1325
  %1328 = vset.pattern.permute.xlu0 36
  %1329 = vperm.xlu0 %1328, %v752
  %v1330 = vpop.permute.xlu0 %1329
  %1332 = vset.pattern.permute.xlu0 36
  %1333 = vperm.xlu0 %1332, %v753
  %v1334 = vpop.permute.xlu0 %1333
  %1336 = vset.pattern.permute.xlu0 36
  %1337 = vperm.xlu0 %1336, %v754
  %v1338 = vpop.permute.xlu0 %1337
  %1340 = vset.pattern.permute.xlu0 36
  %1341 = vperm.xlu0 %1340, %v755
  %v1342 = vpop.permute.xlu0 %1341
  %1344 = vset.pattern.permute.xlu0 36
  %1345 = vperm.xlu0 %1344, %v756
  %v1346 = vpop.permute.xlu0 %1345
  %1348 = vset.pattern.permute.xlu0 36
  %1349 = vperm.xlu0 %1348, %v757
  %v1350 = vpop.permute.xlu0 %1349
  %1352 = vset.pattern.permute.xlu0 36
  %1353 = vperm.xlu0 %1352, %v758
  %v1354 = vpop.permute.xlu0 %1353
  %1356 = vset.pattern.permute.xlu0 36
  %1357 = vperm.xlu0 %1356, %v759
  %v1358 = vpop.permute.xlu0 %1357
  %1360 = vset.pattern.permute.xlu0 36
  %1361 = vperm.xlu0 %1360, %v760
  %v1362 = vpop.permute.xlu0 %1361
  %1364 = vset.pattern.permute.xlu0 36
  %1365 = vperm.xlu0 %1364, %v761
  %v1366 = vpop.permute.xlu0 %1365
  %1368 = vset.pattern.permute.xlu0 36
  %1369 = vperm.xlu0 %1368, %v762
  %v1370 = vpop.permute.xlu0 %1369
  %1372 = vset.pattern.permute.xlu0 36
  %1373 = vperm.xlu0 %1372, %v763
  %v1374 = vpop.permute.xlu0 %1373
  %v1376 = vmul.f32 %v1314, %v1296
  %v1377 = vmul.f32 %v1318, %v1297
  %v1378 = vmul.f32 %v1322, %v1298
  %v1379 = vmul.f32 %v1326, %v1299
  %v1380 = vmul.f32 %v1330, %v1300
  %v1381 = vmul.f32 %v1334, %v1301
  %v1382 = vmul.f32 %v1338, %v1302
  %v1383 = vmul.f32 %v1342, %v1303
  %v1384 = vmul.f32 %v1346, %v1304
  %v1385 = vmul.f32 %v1350, %v1305
  %v1386 = vmul.f32 %v1354, %v1306
  %v1387 = vmul.f32 %v1358, %v1307
  %v1388 = vmul.f32 %v1362, %v1308
  %v1389 = vmul.f32 %v1366, %v1309
  %v1390 = vmul.f32 %v1370, %v1310
  %v1391 = vmul.f32 %v1374, %v1311
  %v1392 = vadd.f32 %v1263, %v1376
  %v1393 = vadd.f32 %v1264, %v1377
  %v1394 = vadd.f32 %v1265, %v1378
  %v1395 = vadd.f32 %v1266, %v1379
  %v1396 = vadd.f32 %v1267, %v1380
  %v1397 = vadd.f32 %v1268, %v1381
  %v1398 = vadd.f32 %v1269, %v1382
  %v1399 = vadd.f32 %v1270, %v1383
  %v1400 = vadd.f32 %v1271, %v1384
  %v1401 = vadd.f32 %v1272, %v1385
  %v1402 = vadd.f32 %v1273, %v1386
  %v1403 = vadd.f32 %v1274, %v1387
  %v1404 = vadd.f32 %v1275, %v1388
  %v1405 = vadd.f32 %v1276, %v1389
  %v1406 = vadd.f32 %v1277, %v1390
  %v1407 = vadd.f32 %v1278, %v1391
  %s1408 = scalar_lea.vmem %s2, 320
  %v1409 = vld [vmem:[%s1408] sm:$0xf]
  %v1410 = vld [vmem:[%s1408 + $0x4] sm:$0xf]
  %v1411 = vld [vmem:[%s1408 + $0x8] sm:$0xf]
  %v1412 = vld [vmem:[%s1408 + $0xc] sm:$0xf]
  %v1413 = vld [vmem:[%s1408 + $0x10] sm:$0xf]
  %v1414 = vld [vmem:[%s1408 + $0x14] sm:$0xf]
  %v1415 = vld [vmem:[%s1408 + $0x18] sm:$0xf]
  %v1416 = vld [vmem:[%s1408 + $0x1c] sm:$0xf]
  %v1417 = vld [vmem:[%s1408 + $0x20] sm:$0xf]
  %v1418 = vld [vmem:[%s1408 + $0x24] sm:$0xf]
  %v1419 = vld [vmem:[%s1408 + $0x28] sm:$0xf]
  %v1420 = vld [vmem:[%s1408 + $0x2c] sm:$0xf]
  %v1421 = vld [vmem:[%s1408 + $0x30] sm:$0xf]
  %v1422 = vld [vmem:[%s1408 + $0x34] sm:$0xf]
  %v1423 = vld [vmem:[%s1408 + $0x38] sm:$0xf]
  %v1424 = vld [vmem:[%s1408 + $0x3c] sm:$0xf]
  %v1425 = vunpack.c.l.bf16 %v1409
  %v1426 = vunpack.c.l.bf16 %v1410
  %v1427 = vunpack.c.l.bf16 %v1411
  %v1428 = vunpack.c.l.bf16 %v1412
  %v1429 = vunpack.c.l.bf16 %v1413
  %v1430 = vunpack.c.l.bf16 %v1414
  %v1431 = vunpack.c.l.bf16 %v1415
  %v1432 = vunpack.c.l.bf16 %v1416
  %v1433 = vunpack.c.l.bf16 %v1417
  %v1434 = vunpack.c.l.bf16 %v1418
  %v1435 = vunpack.c.l.bf16 %v1419
  %v1436 = vunpack.c.l.bf16 %v1420
  %v1437 = vunpack.c.l.bf16 %v1421
  %v1438 = vunpack.c.l.bf16 %v1422
  %v1439 = vunpack.c.l.bf16 %v1423
  %v1440 = vunpack.c.l.bf16 %v1424
  %1441 = vset.pattern.permute.xlu0 37
  %1442 = vperm.xlu0 %1441, %v748
  %v1443 = vpop.permute.xlu0 %1442
  %1445 = vset.pattern.permute.xlu0 37
  %1446 = vperm.xlu0 %1445, %v749
  %v1447 = vpop.permute.xlu0 %1446
  %1449 = vset.pattern.permute.xlu0 37
  %1450 = vperm.xlu0 %1449, %v750
  %v1451 = vpop.permute.xlu0 %1450
  %1453 = vset.pattern.permute.xlu0 37
  %1454 = vperm.xlu0 %1453, %v751
  %v1455 = vpop.permute.xlu0 %1454
  %1457 = vset.pattern.permute.xlu0 37
  %1458 = vperm.xlu0 %1457, %v752
  %v1459 = vpop.permute.xlu0 %1458
  %1461 = vset.pattern.permute.xlu0 37
  %1462 = vperm.xlu0 %1461, %v753
  %v1463 = vpop.permute.xlu0 %1462
  %1465 = vset.pattern.permute.xlu0 37
  %1466 = vperm.xlu0 %1465, %v754
  %v1467 = vpop.permute.xlu0 %1466
  %1469 = vset.pattern.permute.xlu0 37
  %1470 = vperm.xlu0 %1469, %v755
  %v1471 = vpop.permute.xlu0 %1470
  %1473 = vset.pattern.permute.xlu0 37
  %1474 = vperm.xlu0 %1473, %v756
  %v1475 = vpop.permute.xlu0 %1474
  %1477 = vset.pattern.permute.xlu0 37
  %1478 = vperm.xlu0 %1477, %v757
  %v1479 = vpop.permute.xlu0 %1478
  %1481 = vset.pattern.permute.xlu0 37
  %1482 = vperm.xlu0 %1481, %v758
  %v1483 = vpop.permute.xlu0 %1482
  %1485 = vset.pattern.permute.xlu0 37
  %1486 = vperm.xlu0 %1485, %v759
  %v1487 = vpop.permute.xlu0 %1486
  %1489 = vset.pattern.permute.xlu0 37
  %1490 = vperm.xlu0 %1489, %v760
  %v1491 = vpop.permute.xlu0 %1490
  %1493 = vset.pattern.permute.xlu0 37
  %1494 = vperm.xlu0 %1493, %v761
  %v1495 = vpop.permute.xlu0 %1494
  %1497 = vset.pattern.permute.xlu0 37
  %1498 = vperm.xlu0 %1497, %v762
  %v1499 = vpop.permute.xlu0 %1498
  %1501 = vset.pattern.permute.xlu0 37
  %1502 = vperm.xlu0 %1501, %v763
  %v1503 = vpop.permute.xlu0 %1502
  %v1505 = vmul.f32 %v1443, %v1425
  %v1506 = vmul.f32 %v1447, %v1426
  %v1507 = vmul.f32 %v1451, %v1427
  %v1508 = vmul.f32 %v1455, %v1428
  %v1509 = vmul.f32 %v1459, %v1429
  %v1510 = vmul.f32 %v1463, %v1430
  %v1511 = vmul.f32 %v1467, %v1431
  %v1512 = vmul.f32 %v1471, %v1432
  %v1513 = vmul.f32 %v1475, %v1433
  %v1514 = vmul.f32 %v1479, %v1434
  %v1515 = vmul.f32 %v1483, %v1435
  %v1516 = vmul.f32 %v1487, %v1436
  %v1517 = vmul.f32 %v1491, %v1437
  %v1518 = vmul.f32 %v1495, %v1438
  %v1519 = vmul.f32 %v1499, %v1439
  %v1520 = vmul.f32 %v1503, %v1440
  %v1521 = vadd.f32 %v1392, %v1505
  %v1522 = vadd.f32 %v1393, %v1506
  %v1523 = vadd.f32 %v1394, %v1507
  %v1524 = vadd.f32 %v1395, %v1508
  %v1525 = vadd.f32 %v1396, %v1509
  %v1526 = vadd.f32 %v1397, %v1510
  %v1527 = vadd.f32 %v1398, %v1511
  %v1528 = vadd.f32 %v1399, %v1512
  %v1529 = vadd.f32 %v1400, %v1513
  %v1530 = vadd.f32 %v1401, %v1514
  %v1531 = vadd.f32 %v1402, %v1515
  %v1532 = vadd.f32 %v1403, %v1516
  %v1533 = vadd.f32 %v1404, %v1517
  %v1534 = vadd.f32 %v1405, %v1518
  %v1535 = vadd.f32 %v1406, %v1519
  %v1536 = vadd.f32 %v1407, %v1520
  %s1537 = scalar_lea.vmem %s2, 384
  %v1538 = vld [vmem:[%s1537] sm:$0xf]
  %v1539 = vld [vmem:[%s1537 + $0x4] sm:$0xf]
  %v1540 = vld [vmem:[%s1537 + $0x8] sm:$0xf]
  %v1541 = vld [vmem:[%s1537 + $0xc] sm:$0xf]
  %v1542 = vld [vmem:[%s1537 + $0x10] sm:$0xf]
  %v1543 = vld [vmem:[%s1537 + $0x14] sm:$0xf]
  %v1544 = vld [vmem:[%s1537 + $0x18] sm:$0xf]
  %v1545 = vld [vmem:[%s1537 + $0x1c] sm:$0xf]
  %v1546 = vld [vmem:[%s1537 + $0x20] sm:$0xf]
  %v1547 = vld [vmem:[%s1537 + $0x24] sm:$0xf]
  %v1548 = vld [vmem:[%s1537 + $0x28] sm:$0xf]
  %v1549 = vld [vmem:[%s1537 + $0x2c] sm:$0xf]
  %v1550 = vld [vmem:[%s1537 + $0x30] sm:$0xf]
  %v1551 = vld [vmem:[%s1537 + $0x34] sm:$0xf]
  %v1552 = vld [vmem:[%s1537 + $0x38] sm:$0xf]
  %v1553 = vld [vmem:[%s1537 + $0x3c] sm:$0xf]
  %v1554 = vunpack.c.l.bf16 %v1538
  %v1555 = vunpack.c.l.bf16 %v1539
  %v1556 = vunpack.c.l.bf16 %v1540
  %v1557 = vunpack.c.l.bf16 %v1541
  %v1558 = vunpack.c.l.bf16 %v1542
  %v1559 = vunpack.c.l.bf16 %v1543
  %v1560 = vunpack.c.l.bf16 %v1544
  %v1561 = vunpack.c.l.bf16 %v1545
  %v1562 = vunpack.c.l.bf16 %v1546
  %v1563 = vunpack.c.l.bf16 %v1547
  %v1564 = vunpack.c.l.bf16 %v1548
  %v1565 = vunpack.c.l.bf16 %v1549
  %v1566 = vunpack.c.l.bf16 %v1550
  %v1567 = vunpack.c.l.bf16 %v1551
  %v1568 = vunpack.c.l.bf16 %v1552
  %v1569 = vunpack.c.l.bf16 %v1553
  %1570 = vset.pattern.permute.xlu0 38
  %1571 = vperm.xlu0 %1570, %v748
  %v1572 = vpop.permute.xlu0 %1571
  %1574 = vset.pattern.permute.xlu0 38
  %1575 = vperm.xlu0 %1574, %v749
  %v1576 = vpop.permute.xlu0 %1575
  %1578 = vset.pattern.permute.xlu0 38
  %1579 = vperm.xlu0 %1578, %v750
  %v1580 = vpop.permute.xlu0 %1579
  %1582 = vset.pattern.permute.xlu0 38
  %1583 = vperm.xlu0 %1582, %v751
  %v1584 = vpop.permute.xlu0 %1583
  %1586 = vset.pattern.permute.xlu0 38
  %1587 = vperm.xlu0 %1586, %v752
  %v1588 = vpop.permute.xlu0 %1587
  %1590 = vset.pattern.permute.xlu0 38
  %1591 = vperm.xlu0 %1590, %v753
  %v1592 = vpop.permute.xlu0 %1591
  %1594 = vset.pattern.permute.xlu0 38
  %1595 = vperm.xlu0 %1594, %v754
  %v1596 = vpop.permute.xlu0 %1595
  %1598 = vset.pattern.permute.xlu0 38
  %1599 = vperm.xlu0 %1598, %v755
  %v1600 = vpop.permute.xlu0 %1599
  %1602 = vset.pattern.permute.xlu0 38
  %1603 = vperm.xlu0 %1602, %v756
  %v1604 = vpop.permute.xlu0 %1603
  %1606 = vset.pattern.permute.xlu0 38
  %1607 = vperm.xlu0 %1606, %v757
  %v1608 = vpop.permute.xlu0 %1607
  %1610 = vset.pattern.permute.xlu0 38
  %1611 = vperm.xlu0 %1610, %v758
  %v1612 = vpop.permute.xlu0 %1611
  %1614 = vset.pattern.permute.xlu0 38
  %1615 = vperm.xlu0 %1614, %v759
  %v1616 = vpop.permute.xlu0 %1615
  %1618 = vset.pattern.permute.xlu0 38
  %1619 = vperm.xlu0 %1618, %v760
  %v1620 = vpop.permute.xlu0 %1619
  %1622 = vset.pattern.permute.xlu0 38
  %1623 = vperm.xlu0 %1622, %v761
  %v1624 = vpop.permute.xlu0 %1623
  %1626 = vset.pattern.permute.xlu0 38
  %1627 = vperm.xlu0 %1626, %v762
  %v1628 = vpop.permute.xlu0 %1627
  %1630 = vset.pattern.permute.xlu0 38
  %1631 = vperm.xlu0 %1630, %v763
  %v1632 = vpop.permute.xlu0 %1631
  %v1634 = vmul.f32 %v1572, %v1554
  %v1635 = vmul.f32 %v1576, %v1555
  %v1636 = vmul.f32 %v1580, %v1556
  %v1637 = vmul.f32 %v1584, %v1557
  %v1638 = vmul.f32 %v1588, %v1558
  %v1639 = vmul.f32 %v1592, %v1559
  %v1640 = vmul.f32 %v1596, %v1560
  %v1641 = vmul.f32 %v1600, %v1561
  %v1642 = vmul.f32 %v1604, %v1562
  %v1643 = vmul.f32 %v1608, %v1563
  %v1644 = vmul.f32 %v1612, %v1564
  %v1645 = vmul.f32 %v1616, %v1565
  %v1646 = vmul.f32 %v1620, %v1566
  %v1647 = vmul.f32 %v1624, %v1567
  %v1648 = vmul.f32 %v1628, %v1568
  %v1649 = vmul.f32 %v1632, %v1569
  %v1650 = vadd.f32 %v1521, %v1634
  %v1651 = vadd.f32 %v1522, %v1635
  %v1652 = vadd.f32 %v1523, %v1636
  %v1653 = vadd.f32 %v1524, %v1637
  %v1654 = vadd.f32 %v1525, %v1638
  %v1655 = vadd.f32 %v1526, %v1639
  %v1656 = vadd.f32 %v1527, %v1640
  %v1657 = vadd.f32 %v1528, %v1641
  %v1658 = vadd.f32 %v1529, %v1642
  %v1659 = vadd.f32 %v1530, %v1643
  %v1660 = vadd.f32 %v1531, %v1644
  %v1661 = vadd.f32 %v1532, %v1645
  %v1662 = vadd.f32 %v1533, %v1646
  %v1663 = vadd.f32 %v1534, %v1647
  %v1664 = vadd.f32 %v1535, %v1648
  %v1665 = vadd.f32 %v1536, %v1649
  %s1666 = scalar_lea.vmem %s2, 448
  %v1667 = vld [vmem:[%s1666] sm:$0xf]
  %v1668 = vld [vmem:[%s1666 + $0x4] sm:$0xf]
  %v1669 = vld [vmem:[%s1666 + $0x8] sm:$0xf]
  %v1670 = vld [vmem:[%s1666 + $0xc] sm:$0xf]
  %v1671 = vld [vmem:[%s1666 + $0x10] sm:$0xf]
  %v1672 = vld [vmem:[%s1666 + $0x14] sm:$0xf]
  %v1673 = vld [vmem:[%s1666 + $0x18] sm:$0xf]
  %v1674 = vld [vmem:[%s1666 + $0x1c] sm:$0xf]
  %v1675 = vld [vmem:[%s1666 + $0x20] sm:$0xf]
  %v1676 = vld [vmem:[%s1666 + $0x24] sm:$0xf]
  %v1677 = vld [vmem:[%s1666 + $0x28] sm:$0xf]
  %v1678 = vld [vmem:[%s1666 + $0x2c] sm:$0xf]
  %v1679 = vld [vmem:[%s1666 + $0x30] sm:$0xf]
  %v1680 = vld [vmem:[%s1666 + $0x34] sm:$0xf]
  %v1681 = vld [vmem:[%s1666 + $0x38] sm:$0xf]
  %v1682 = vld [vmem:[%s1666 + $0x3c] sm:$0xf]
  %v1683 = vunpack.c.l.bf16 %v1667
  %v1684 = vunpack.c.l.bf16 %v1668
  %v1685 = vunpack.c.l.bf16 %v1669
  %v1686 = vunpack.c.l.bf16 %v1670
  %v1687 = vunpack.c.l.bf16 %v1671
  %v1688 = vunpack.c.l.bf16 %v1672
  %v1689 = vunpack.c.l.bf16 %v1673
  %v1690 = vunpack.c.l.bf16 %v1674
  %v1691 = vunpack.c.l.bf16 %v1675
  %v1692 = vunpack.c.l.bf16 %v1676
  %v1693 = vunpack.c.l.bf16 %v1677
  %v1694 = vunpack.c.l.bf16 %v1678
  %v1695 = vunpack.c.l.bf16 %v1679
  %v1696 = vunpack.c.l.bf16 %v1680
  %v1697 = vunpack.c.l.bf16 %v1681
  %v1698 = vunpack.c.l.bf16 %v1682
  %1699 = vset.pattern.permute.xlu0 39
  %1700 = vperm.xlu0 %1699, %v748
  %v1701 = vpop.permute.xlu0 %1700
  %1703 = vset.pattern.permute.xlu0 39
  %1704 = vperm.xlu0 %1703, %v749
  %v1705 = vpop.permute.xlu0 %1704
  %1707 = vset.pattern.permute.xlu0 39
  %1708 = vperm.xlu0 %1707, %v750
  %v1709 = vpop.permute.xlu0 %1708
  %1711 = vset.pattern.permute.xlu0 39
  %1712 = vperm.xlu0 %1711, %v751
  %v1713 = vpop.permute.xlu0 %1712
  %1715 = vset.pattern.permute.xlu0 39
  %1716 = vperm.xlu0 %1715, %v752
  %v1717 = vpop.permute.xlu0 %1716
  %1719 = vset.pattern.permute.xlu0 39
  %1720 = vperm.xlu0 %1719, %v753
  %v1721 = vpop.permute.xlu0 %1720
  %1723 = vset.pattern.permute.xlu0 39
  %1724 = vperm.xlu0 %1723, %v754
  %v1725 = vpop.permute.xlu0 %1724
  %1727 = vset.pattern.permute.xlu0 39
  %1728 = vperm.xlu0 %1727, %v755
  %v1729 = vpop.permute.xlu0 %1728
  %1731 = vset.pattern.permute.xlu0 39
  %1732 = vperm.xlu0 %1731, %v756
  %v1733 = vpop.permute.xlu0 %1732
  %1735 = vset.pattern.permute.xlu0 39
  %1736 = vperm.xlu0 %1735, %v757
  %v1737 = vpop.permute.xlu0 %1736
  %1739 = vset.pattern.permute.xlu0 39
  %1740 = vperm.xlu0 %1739, %v758
  %v1741 = vpop.permute.xlu0 %1740
  %1743 = vset.pattern.permute.xlu0 39
  %1744 = vperm.xlu0 %1743, %v759
  %v1745 = vpop.permute.xlu0 %1744
  %1747 = vset.pattern.permute.xlu0 39
  %1748 = vperm.xlu0 %1747, %v760
  %v1749 = vpop.permute.xlu0 %1748
  %1751 = vset.pattern.permute.xlu0 39
  %1752 = vperm.xlu0 %1751, %v761
  %v1753 = vpop.permute.xlu0 %1752
  %1755 = vset.pattern.permute.xlu0 39
  %1756 = vperm.xlu0 %1755, %v762
  %v1757 = vpop.permute.xlu0 %1756
  %1759 = vset.pattern.permute.xlu0 39
  %1760 = vperm.xlu0 %1759, %v763
  %v1761 = vpop.permute.xlu0 %1760
  %v1763 = vmul.f32 %v1701, %v1683
  %v1764 = vmul.f32 %v1705, %v1684
  %v1765 = vmul.f32 %v1709, %v1685
  %v1766 = vmul.f32 %v1713, %v1686
  %v1767 = vmul.f32 %v1717, %v1687
  %v1768 = vmul.f32 %v1721, %v1688
  %v1769 = vmul.f32 %v1725, %v1689
  %v1770 = vmul.f32 %v1729, %v1690
  %v1771 = vmul.f32 %v1733, %v1691
  %v1772 = vmul.f32 %v1737, %v1692
  %v1773 = vmul.f32 %v1741, %v1693
  %v1774 = vmul.f32 %v1745, %v1694
  %v1775 = vmul.f32 %v1749, %v1695
  %v1776 = vmul.f32 %v1753, %v1696
  %v1777 = vmul.f32 %v1757, %v1697
  %v1778 = vmul.f32 %v1761, %v1698
  %v1779 = vadd.f32 %v1650, %v1763
  %v1780 = vadd.f32 %v1651, %v1764
  %v1781 = vadd.f32 %v1652, %v1765
  %v1782 = vadd.f32 %v1653, %v1766
  %v1783 = vadd.f32 %v1654, %v1767
  %v1784 = vadd.f32 %v1655, %v1768
  %v1785 = vadd.f32 %v1656, %v1769
  %v1786 = vadd.f32 %v1657, %v1770
  %v1787 = vadd.f32 %v1658, %v1771
  %v1788 = vadd.f32 %v1659, %v1772
  %v1789 = vadd.f32 %v1660, %v1773
  %v1790 = vadd.f32 %v1661, %v1774
  %v1791 = vadd.f32 %v1662, %v1775
  %v1792 = vadd.f32 %v1663, %v1776
  %v1793 = vadd.f32 %v1664, %v1777
  %v1794 = vadd.f32 %v1665, %v1778
  %s1795 = scalar_lea.vmem %s2, 512
  %v1796 = vld [vmem:[%s1795] sm:$0xf]
  %v1797 = vld [vmem:[%s1795 + $0x4] sm:$0xf]
  %v1798 = vld [vmem:[%s1795 + $0x8] sm:$0xf]
  %v1799 = vld [vmem:[%s1795 + $0xc] sm:$0xf]
  %v1800 = vld [vmem:[%s1795 + $0x10] sm:$0xf]
  %v1801 = vld [vmem:[%s1795 + $0x14] sm:$0xf]
  %v1802 = vld [vmem:[%s1795 + $0x18] sm:$0xf]
  %v1803 = vld [vmem:[%s1795 + $0x1c] sm:$0xf]
  %v1804 = vld [vmem:[%s1795 + $0x20] sm:$0xf]
  %v1805 = vld [vmem:[%s1795 + $0x24] sm:$0xf]
  %v1806 = vld [vmem:[%s1795 + $0x28] sm:$0xf]
  %v1807 = vld [vmem:[%s1795 + $0x2c] sm:$0xf]
  %v1808 = vld [vmem:[%s1795 + $0x30] sm:$0xf]
  %v1809 = vld [vmem:[%s1795 + $0x34] sm:$0xf]
  %v1810 = vld [vmem:[%s1795 + $0x38] sm:$0xf]
  %v1811 = vld [vmem:[%s1795 + $0x3c] sm:$0xf]
  %v1812 = vunpack.c.l.bf16 %v1796
  %v1813 = vunpack.c.l.bf16 %v1797
  %v1814 = vunpack.c.l.bf16 %v1798
  %v1815 = vunpack.c.l.bf16 %v1799
  %v1816 = vunpack.c.l.bf16 %v1800
  %v1817 = vunpack.c.l.bf16 %v1801
  %v1818 = vunpack.c.l.bf16 %v1802
  %v1819 = vunpack.c.l.bf16 %v1803
  %v1820 = vunpack.c.l.bf16 %v1804
  %v1821 = vunpack.c.l.bf16 %v1805
  %v1822 = vunpack.c.l.bf16 %v1806
  %v1823 = vunpack.c.l.bf16 %v1807
  %v1824 = vunpack.c.l.bf16 %v1808
  %v1825 = vunpack.c.l.bf16 %v1809
  %v1826 = vunpack.c.l.bf16 %v1810
  %v1827 = vunpack.c.l.bf16 %v1811
  %1828 = vset.pattern.permute.xlu0 40
  %1829 = vperm.xlu0 %1828, %v748
  %v1830 = vpop.permute.xlu0 %1829
  %1832 = vset.pattern.permute.xlu0 40
  %1833 = vperm.xlu0 %1832, %v749
  %v1834 = vpop.permute.xlu0 %1833
  %1836 = vset.pattern.permute.xlu0 40
  %1837 = vperm.xlu0 %1836, %v750
  %v1838 = vpop.permute.xlu0 %1837
  %1840 = vset.pattern.permute.xlu0 40
  %1841 = vperm.xlu0 %1840, %v751
  %v1842 = vpop.permute.xlu0 %1841
  %1844 = vset.pattern.permute.xlu0 40
  %1845 = vperm.xlu0 %1844, %v752
  %v1846 = vpop.permute.xlu0 %1845
  %1848 = vset.pattern.permute.xlu0 40
  %1849 = vperm.xlu0 %1848, %v753
  %v1850 = vpop.permute.xlu0 %1849
  %1852 = vset.pattern.permute.xlu0 40
  %1853 = vperm.xlu0 %1852, %v754
  %v1854 = vpop.permute.xlu0 %1853
  %1856 = vset.pattern.permute.xlu0 40
  %1857 = vperm.xlu0 %1856, %v755
  %v1858 = vpop.permute.xlu0 %1857
  %1860 = vset.pattern.permute.xlu0 40
  %1861 = vperm.xlu0 %1860, %v756
  %v1862 = vpop.permute.xlu0 %1861
  %1864 = vset.pattern.permute.xlu0 40
  %1865 = vperm.xlu0 %1864, %v757
  %v1866 = vpop.permute.xlu0 %1865
  %1868 = vset.pattern.permute.xlu0 40
  %1869 = vperm.xlu0 %1868, %v758
  %v1870 = vpop.permute.xlu0 %1869
  %1872 = vset.pattern.permute.xlu0 40
  %1873 = vperm.xlu0 %1872, %v759
  %v1874 = vpop.permute.xlu0 %1873
  %1876 = vset.pattern.permute.xlu0 40
  %1877 = vperm.xlu0 %1876, %v760
  %v1878 = vpop.permute.xlu0 %1877
  %1880 = vset.pattern.permute.xlu0 40
  %1881 = vperm.xlu0 %1880, %v761
  %v1882 = vpop.permute.xlu0 %1881
  %1884 = vset.pattern.permute.xlu0 40
  %1885 = vperm.xlu0 %1884, %v762
  %v1886 = vpop.permute.xlu0 %1885
  %1888 = vset.pattern.permute.xlu0 40
  %1889 = vperm.xlu0 %1888, %v763
  %v1890 = vpop.permute.xlu0 %1889
  %v1892 = vmul.f32 %v1830, %v1812
  %v1893 = vmul.f32 %v1834, %v1813
  %v1894 = vmul.f32 %v1838, %v1814
  %v1895 = vmul.f32 %v1842, %v1815
  %v1896 = vmul.f32 %v1846, %v1816
  %v1897 = vmul.f32 %v1850, %v1817
  %v1898 = vmul.f32 %v1854, %v1818
  %v1899 = vmul.f32 %v1858, %v1819
  %v1900 = vmul.f32 %v1862, %v1820
  %v1901 = vmul.f32 %v1866, %v1821
  %v1902 = vmul.f32 %v1870, %v1822
  %v1903 = vmul.f32 %v1874, %v1823
  %v1904 = vmul.f32 %v1878, %v1824
  %v1905 = vmul.f32 %v1882, %v1825
  %v1906 = vmul.f32 %v1886, %v1826
  %v1907 = vmul.f32 %v1890, %v1827
  %v1908 = vadd.f32 %v1779, %v1892
  %v1909 = vadd.f32 %v1780, %v1893
  %v1910 = vadd.f32 %v1781, %v1894
  %v1911 = vadd.f32 %v1782, %v1895
  %v1912 = vadd.f32 %v1783, %v1896
  %v1913 = vadd.f32 %v1784, %v1897
  %v1914 = vadd.f32 %v1785, %v1898
  %v1915 = vadd.f32 %v1786, %v1899
  %v1916 = vadd.f32 %v1787, %v1900
  %v1917 = vadd.f32 %v1788, %v1901
  %v1918 = vadd.f32 %v1789, %v1902
  %v1919 = vadd.f32 %v1790, %v1903
  %v1920 = vadd.f32 %v1791, %v1904
  %v1921 = vadd.f32 %v1792, %v1905
  %v1922 = vadd.f32 %v1793, %v1906
  %v1923 = vadd.f32 %v1794, %v1907
  %s1924 = scalar_lea.vmem %s2, 576
  %v1925 = vld [vmem:[%s1924] sm:$0xf]
  %v1926 = vld [vmem:[%s1924 + $0x4] sm:$0xf]
  %v1927 = vld [vmem:[%s1924 + $0x8] sm:$0xf]
  %v1928 = vld [vmem:[%s1924 + $0xc] sm:$0xf]
  %v1929 = vld [vmem:[%s1924 + $0x10] sm:$0xf]
  %v1930 = vld [vmem:[%s1924 + $0x14] sm:$0xf]
  %v1931 = vld [vmem:[%s1924 + $0x18] sm:$0xf]
  %v1932 = vld [vmem:[%s1924 + $0x1c] sm:$0xf]
  %v1933 = vld [vmem:[%s1924 + $0x20] sm:$0xf]
  %v1934 = vld [vmem:[%s1924 + $0x24] sm:$0xf]
  %v1935 = vld [vmem:[%s1924 + $0x28] sm:$0xf]
  %v1936 = vld [vmem:[%s1924 + $0x2c] sm:$0xf]
  %v1937 = vld [vmem:[%s1924 + $0x30] sm:$0xf]
  %v1938 = vld [vmem:[%s1924 + $0x34] sm:$0xf]
  %v1939 = vld [vmem:[%s1924 + $0x38] sm:$0xf]
  %v1940 = vld [vmem:[%s1924 + $0x3c] sm:$0xf]
  %v1941 = vunpack.c.l.bf16 %v1925
  %v1942 = vunpack.c.l.bf16 %v1926
  %v1943 = vunpack.c.l.bf16 %v1927
  %v1944 = vunpack.c.l.bf16 %v1928
  %v1945 = vunpack.c.l.bf16 %v1929
  %v1946 = vunpack.c.l.bf16 %v1930
  %v1947 = vunpack.c.l.bf16 %v1931
  %v1948 = vunpack.c.l.bf16 %v1932
  %v1949 = vunpack.c.l.bf16 %v1933
  %v1950 = vunpack.c.l.bf16 %v1934
  %v1951 = vunpack.c.l.bf16 %v1935
  %v1952 = vunpack.c.l.bf16 %v1936
  %v1953 = vunpack.c.l.bf16 %v1937
  %v1954 = vunpack.c.l.bf16 %v1938
  %v1955 = vunpack.c.l.bf16 %v1939
  %v1956 = vunpack.c.l.bf16 %v1940
  %1957 = vset.pattern.permute.xlu0 41
  %1958 = vperm.xlu0 %1957, %v748
  %v1959 = vpop.permute.xlu0 %1958
  %1961 = vset.pattern.permute.xlu0 41
  %1962 = vperm.xlu0 %1961, %v749
  %v1963 = vpop.permute.xlu0 %1962
  %1965 = vset.pattern.permute.xlu0 41
  %1966 = vperm.xlu0 %1965, %v750
  %v1967 = vpop.permute.xlu0 %1966
  %1969 = vset.pattern.permute.xlu0 41
  %1970 = vperm.xlu0 %1969, %v751
  %v1971 = vpop.permute.xlu0 %1970
  %1973 = vset.pattern.permute.xlu0 41
  %1974 = vperm.xlu0 %1973, %v752
  %v1975 = vpop.permute.xlu0 %1974
  %1977 = vset.pattern.permute.xlu0 41
  %1978 = vperm.xlu0 %1977, %v753
  %v1979 = vpop.permute.xlu0 %1978
  %1981 = vset.pattern.permute.xlu0 41
  %1982 = vperm.xlu0 %1981, %v754
  %v1983 = vpop.permute.xlu0 %1982
  %1985 = vset.pattern.permute.xlu0 41
  %1986 = vperm.xlu0 %1985, %v755
  %v1987 = vpop.permute.xlu0 %1986
  %1989 = vset.pattern.permute.xlu0 41
  %1990 = vperm.xlu0 %1989, %v756
  %v1991 = vpop.permute.xlu0 %1990
  %1993 = vset.pattern.permute.xlu0 41
  %1994 = vperm.xlu0 %1993, %v757
  %v1995 = vpop.permute.xlu0 %1994
  %1997 = vset.pattern.permute.xlu0 41
  %1998 = vperm.xlu0 %1997, %v758
  %v1999 = vpop.permute.xlu0 %1998
  %2001 = vset.pattern.permute.xlu0 41
  %2002 = vperm.xlu0 %2001, %v759
  %v2003 = vpop.permute.xlu0 %2002
  %2005 = vset.pattern.permute.xlu0 41
  %2006 = vperm.xlu0 %2005, %v760
  %v2007 = vpop.permute.xlu0 %2006
  %2009 = vset.pattern.permute.xlu0 41
  %2010 = vperm.xlu0 %2009, %v761
  %v2011 = vpop.permute.xlu0 %2010
  %2013 = vset.pattern.permute.xlu0 41
  %2014 = vperm.xlu0 %2013, %v762
  %v2015 = vpop.permute.xlu0 %2014
  %2017 = vset.pattern.permute.xlu0 41
  %2018 = vperm.xlu0 %2017, %v763
  %v2019 = vpop.permute.xlu0 %2018
  %v2021 = vmul.f32 %v1959, %v1941
  %v2022 = vmul.f32 %v1963, %v1942
  %v2023 = vmul.f32 %v1967, %v1943
  %v2024 = vmul.f32 %v1971, %v1944
  %v2025 = vmul.f32 %v1975, %v1945
  %v2026 = vmul.f32 %v1979, %v1946
  %v2027 = vmul.f32 %v1983, %v1947
  %v2028 = vmul.f32 %v1987, %v1948
  %v2029 = vmul.f32 %v1991, %v1949
  %v2030 = vmul.f32 %v1995, %v1950
  %v2031 = vmul.f32 %v1999, %v1951
  %v2032 = vmul.f32 %v2003, %v1952
  %v2033 = vmul.f32 %v2007, %v1953
  %v2034 = vmul.f32 %v2011, %v1954
  %v2035 = vmul.f32 %v2015, %v1955
  %v2036 = vmul.f32 %v2019, %v1956
  %v2037 = vadd.f32 %v1908, %v2021
  %v2038 = vadd.f32 %v1909, %v2022
  %v2039 = vadd.f32 %v1910, %v2023
  %v2040 = vadd.f32 %v1911, %v2024
  %v2041 = vadd.f32 %v1912, %v2025
  %v2042 = vadd.f32 %v1913, %v2026
  %v2043 = vadd.f32 %v1914, %v2027
  %v2044 = vadd.f32 %v1915, %v2028
  %v2045 = vadd.f32 %v1916, %v2029
  %v2046 = vadd.f32 %v1917, %v2030
  %v2047 = vadd.f32 %v1918, %v2031
  %v2048 = vadd.f32 %v1919, %v2032
  %v2049 = vadd.f32 %v1920, %v2033
  %v2050 = vadd.f32 %v1921, %v2034
  %v2051 = vadd.f32 %v1922, %v2035
  %v2052 = vadd.f32 %v1923, %v2036
  %v2053 = vpack.c.bf16 %v2038, %v2037
  %v2054 = vpack.c.bf16 %v2040, %v2039
  %v2055 = vpack.c.bf16 %v2042, %v2041
  %v2056 = vpack.c.bf16 %v2044, %v2043
  %v2057 = vpack.c.bf16 %v2046, %v2045
  %v2058 = vpack.c.bf16 %v2048, %v2047
  %v2059 = vpack.c.bf16 %v2050, %v2049
  %v2060 = vpack.c.bf16 %v2052, %v2051
  %v2061 = vld [vmem:[%s3 + $0x28] sm:$0xf]
  %v2062 = vld [vmem:[%s3 + $0x2c] sm:$0xf]
  %v2063 = vld [vmem:[%s3 + $0x30] sm:$0xf]
  %v2064 = vld [vmem:[%s3 + $0x34] sm:$0xf]
  %v2069 = vunpack.c.l.b16 %v2061
  %v2070 = vunpack.c.l.b16 %v2062
  %v2071 = vunpack.c.l.b16 %v2063
  %v2072 = vunpack.c.l.b16 %v2064
  %v2073 = vpack.c.b16 %v2070, %v2069
  %v2074 = vpack.c.b16 %v2072, %v2071
  %v2078 = vsel %vm320, %v2053, 0
  %v2081 = vsel %vm320, %v2054, 0
  %v2084 = vsel %vm320, %v2055, 0
  %v2087 = vsel %vm320, %v2056, 0
  %v2090 = vsel %vm320, %v2057, 0
  %v2093 = vsel %vm320, %v2058, 0
  %v2096 = vsel %vm320, %v2059, 0
  %v2099 = vsel %vm320, %v2060, 0
  %2101 = vmatprep.subr.bf16.mxu0 0
  %2102 = vmatpush1.bf16.msra.mxu0 %v2073
  %2103 = vmatprep.subr.bf16.mxu0 0
  %2104 = vmatpush1.bf16.msra.mxu0 %v2074
  %2105 = vmatprep.subr.bf16.mxu0 0
  %2106 = vmatpush1.bf16.msra.mxu0 0
  %2107 = vmatprep.subr.bf16.mxu0 0
  %2108 = vmatpush1.bf16.msra.mxu0 0
  %2109 = vmatprep.subr.bf16.mxu0 0
  %2110 = vmatpush1.bf16.msra.mxu0 0
  %2111 = vmatprep.subr.bf16.mxu0 0
  %2112 = vmatpush1.bf16.msra.mxu0 0
  %2113 = vmatprep.subr.bf16.mxu0 0
  %2114 = vmatpush1.bf16.msra.mxu0 0
  %2115 = vmatprep.subr.bf16.mxu0 0
  %2116 = vmatpush1.bf16.msra.mxu0 0
  %2117 = vmatprep.subr.bf16.mxu0 0
  %2118 = vmatpush1.bf16.msra.mxu0 0
  %2119 = vmatprep.subr.bf16.mxu0 0
  %2120 = vmatpush1.bf16.msra.mxu0 0
  %2121 = vmatprep.subr.bf16.mxu0 0
  %2122 = vmatpush1.bf16.msra.mxu0 0
  %2123 = vmatprep.subr.bf16.mxu0 0
  %2124 = vmatpush1.bf16.msra.mxu0 0
  %2125 = vmatprep.subr.bf16.mxu0 0
  %2126 = vmatpush1.bf16.msra.mxu0 0
  %2127 = vmatprep.subr.bf16.mxu0 0
  %2128 = vmatpush1.bf16.msra.mxu0 0
  %2129 = vmatprep.subr.bf16.mxu0 0
  %2130 = vmatpush1.bf16.msra.mxu0 0
  %2131 = vmatprep.subr.bf16.mxu0 0
  %2132 = vmatpush1.bf16.msra.mxu0 0
  %2133 = vmatprep.mubr.bf16.mxu0 0
  %2134 = vmatmul.mubr.bf16.gmra.mrb[0].mxu0 %v2078
  %v2135 = vpop.f32.mrb[0].mxu0
  %v2136 = vadd.f32 0.0, %v2135
  %v2137 = vpop.f32.mrb[0].mxu0
  %v2138 = vpop.f32.mrb[0].mxu0
  %v2139 = vadd.f32 0.0, %v2138
  %v2140 = vpop.f32.mrb[0].mxu0
  %2141 = vmatprep.mubr.bf16.mxu0 0
  %2142 = vmatmul.mubr.bf16.gmra.mrb[0].mxu0 %v2081
  %v2143 = vpop.f32.mrb[0].mxu0
  %v2144 = vadd.f32 0.0, %v2143
  %v2145 = vpop.f32.mrb[0].mxu0
  %v2146 = vpop.f32.mrb[0].mxu0
  %v2147 = vadd.f32 0.0, %v2146
  %v2148 = vpop.f32.mrb[0].mxu0
  %2149 = vmatprep.mubr.bf16.mxu0 0
  %2150 = vmatmul.mubr.bf16.gmra.mrb[0].mxu0 %v2084
  %v2151 = vpop.f32.mrb[0].mxu0
  %v2152 = vadd.f32 0.0, %v2151
  %v2153 = vpop.f32.mrb[0].mxu0
  %v2154 = vpop.f32.mrb[0].mxu0
  %v2155 = vadd.f32 0.0, %v2154
  %v2156 = vpop.f32.mrb[0].mxu0
  %2157 = vmatprep.mubr.bf16.mxu0 0
  %2158 = vmatmul.mubr.bf16.gmra.mrb[0].mxu0 %v2087
  %v2159 = vpop.f32.mrb[0].mxu0
  %v2160 = vadd.f32 0.0, %v2159
  %v2161 = vpop.f32.mrb[0].mxu0
  %v2162 = vpop.f32.mrb[0].mxu0
  %v2163 = vadd.f32 0.0, %v2162
  %v2164 = vpop.f32.mrb[0].mxu0
  %2165 = vmatprep.mubr.bf16.mxu0 0
  %2166 = vmatmul.mubr.bf16.gmra.mrb[0].mxu0 %v2090
  %v2167 = vpop.f32.mrb[0].mxu0
  %v2168 = vadd.f32 0.0, %v2167
  %v2169 = vpop.f32.mrb[0].mxu0
  %v2170 = vpop.f32.mrb[0].mxu0
  %v2171 = vadd.f32 0.0, %v2170
  %v2172 = vpop.f32.mrb[0].mxu0
  %2173 = vmatprep.mubr.bf16.mxu0 0
  %2174 = vmatmul.mubr.bf16.gmra.mrb[0].mxu0 %v2093
  %v2175 = vpop.f32.mrb[0].mxu0
  %v2176 = vadd.f32 0.0, %v2175
  %v2177 = vpop.f32.mrb[0].mxu0
  %v2178 = vpop.f32.mrb[0].mxu0
  %v2179 = vadd.f32 0.0, %v2178
  %v2180 = vpop.f32.mrb[0].mxu0
  %2181 = vmatprep.mubr.bf16.mxu0 0
  %2182 = vmatmul.mubr.bf16.gmra.mrb[0].mxu0 %v2096
  %v2183 = vpop.f32.mrb[0].mxu0
  %v2184 = vadd.f32 0.0, %v2183
  %v2185 = vpop.f32.mrb[0].mxu0
  %v2186 = vpop.f32.mrb[0].mxu0
  %v2187 = vadd.f32 0.0, %v2186
  %v2188 = vpop.f32.mrb[0].mxu0
  %2189 = vmatprep.mubr.bf16.mxu0 0
  %2190 = vmatmul.mubr.bf16.gmra.mrb[0].mxu0 %v2099
  %v2191 = vpop.f32.mrb[0].mxu0
  %v2192 = vadd.f32 0.0, %v2191
  %v2193 = vpop.f32.mrb[0].mxu0
  %v2194 = vpop.f32.mrb[0].mxu0
  %v2195 = vadd.f32 0.0, %v2194
  %v2196 = vpop.f32.mrb[0].mxu0
  %2197 = vdwg.mxu0
  %v2198 = vadd.f32 %v230, %v2136
  %v2199 = vadd.f32 %v233, %v2139
  %v2200 = vadd.f32 %v238, %v2144
  %v2201 = vadd.f32 %v241, %v2147
  %v2202 = vadd.f32 %v246, %v2152
  %v2203 = vadd.f32 %v249, %v2155
  %v2204 = vadd.f32 %v254, %v2160
  %v2205 = vadd.f32 %v257, %v2163
  %v2206 = vadd.f32 %v262, %v2168
  %v2207 = vadd.f32 %v265, %v2171
  %v2208 = vadd.f32 %v270, %v2176
  %v2209 = vadd.f32 %v273, %v2179
  %v2210 = vadd.f32 %v278, %v2184
  %v2211 = vadd.f32 %v281, %v2187
  %v2212 = vadd.f32 %v286, %v2192
  %v2213 = vadd.f32 %v289, %v2195
  %v2214 = vmax.f32 %v2198, 0.0
  %v2215 = vmax.f32 %v2199, 0.0
  %v2216 = vmax.f32 %v2200, 0.0
  %v2217 = vmax.f32 %v2201, 0.0
  %v2218 = vmax.f32 %v2202, 0.0
  %v2219 = vmax.f32 %v2203, 0.0
  %v2220 = vmax.f32 %v2204, 0.0
  %v2221 = vmax.f32 %v2205, 0.0
  %v2222 = vmax.f32 %v2206, 0.0
  %v2223 = vmax.f32 %v2207, 0.0
  %v2224 = vmax.f32 %v2208, 0.0
  %v2225 = vmax.f32 %v2209, 0.0
  %v2226 = vmax.f32 %v2210, 0.0
  %v2227 = vmax.f32 %v2211, 0.0
  %v2228 = vmax.f32 %v2212, 0.0
  %v2229 = vmax.f32 %v2213, 0.0
  %v2230 = vpack.c.bf16 %v2215, %v2214
  %v2231 = vpack.c.bf16 %v2217, %v2216
  %v2232 = vpack.c.bf16 %v2219, %v2218
  %v2233 = vpack.c.bf16 %v2221, %v2220
  %v2234 = vpack.c.bf16 %v2223, %v2222
  %v2235 = vpack.c.bf16 %v2225, %v2224
  %v2236 = vpack.c.bf16 %v2227, %v2226
  %v2237 = vpack.c.bf16 %v2229, %v2228
  %v2238 = vld [vmem:[%s3 + $0x18] sm:$0xf]
  %v2239 = vld [vmem:[%s3 + $0x1c] sm:$0xf]
  %v2240 = vld [vmem:[%s3 + $0x20] sm:$0xf]
  %v2241 = vld [vmem:[%s3 + $0x24] sm:$0xf]
  %v2242 = vlaneseq
  %v2243 = vshrl.u32 %v2242, 7
  %v2244 = vsub.s32 2, %v2243
  %v2245 = vrot.slane %v51, %v2244
  %v2250 = vunpack.c.l.b16 %v2238
  %v2251 = vunpack.c.l.b16 %v2239
  %v2252 = vunpack.c.l.b16 %v2240
  %v2253 = vunpack.c.l.b16 %v2241
  %v2254 = vpack.c.b16 %v2251, %v2250
  %v2255 = vpack.c.b16 %v2253, %v2252
  %v2259 = vsel %vm320, %v2230, 0
  %v2262 = vsel %vm320, %v2231, 0
  %v2265 = vsel %vm320, %v2232, 0
  %v2268 = vsel %vm320, %v2233, 0
  %v2271 = vsel %vm320, %v2234, 0
  %v2274 = vsel %vm320, %v2235, 0
  %v2277 = vsel %vm320, %v2236, 0
  %v2280 = vsel %vm320, %v2237, 0
  %2282 = vmatprep.subr.bf16.mxu0 0
  %2283 = vmatpush1.bf16.msra.mxu0 %v2254
  %2284 = vmatprep.subr.bf16.mxu0 0
  %2285 = vmatpush1.bf16.msra.mxu0 %v2255
  %2286 = vmatprep.subr.bf16.mxu0 0
  %2287 = vmatpush1.bf16.msra.mxu0 0
  %2288 = vmatprep.subr.bf16.mxu0 0
  %2289 = vmatpush1.bf16.msra.mxu0 0
  %2290 = vmatprep.subr.bf16.mxu0 0
  %2291 = vmatpush1.bf16.msra.mxu0 0
  %2292 = vmatprep.subr.bf16.mxu0 0
  %2293 = vmatpush1.bf16.msra.mxu0 0
  %2294 = vmatprep.subr.bf16.mxu0 0
  %2295 = vmatpush1.bf16.msra.mxu0 0
  %2296 = vmatprep.subr.bf16.mxu0 0
  %2297 = vmatpush1.bf16.msra.mxu0 0
  %2298 = vmatprep.subr.bf16.mxu0 0
  %2299 = vmatpush1.bf16.msra.mxu0 0
  %2300 = vmatprep.subr.bf16.mxu0 0
  %2301 = vmatpush1.bf16.msra.mxu0 0
  %2302 = vmatprep.subr.bf16.mxu0 0
  %2303 = vmatpush1.bf16.msra.mxu0 0
  %2304 = vmatprep.subr.bf16.mxu0 0
  %2305 = vmatpush1.bf16.msra.mxu0 0
  %2306 = vmatprep.subr.bf16.mxu0 0
  %2307 = vmatpush1.bf16.msra.mxu0 0
  %2308 = vmatprep.subr.bf16.mxu0 0
  %2309 = vmatpush1.bf16.msra.mxu0 0
  %2310 = vmatprep.subr.bf16.mxu0 0
  %2311 = vmatpush1.bf16.msra.mxu0 0
  %2312 = vmatprep.subr.bf16.mxu0 0
  %2313 = vmatpush1.bf16.msra.mxu0 0
  %2314 = vmatprep.mubr.bf16.mxu0 0
  %2315 = vmatmul.mubr.bf16.gmra.mrb[0].mxu0 %v2259
  %v2316 = vpop.f32.mrb[0].mxu0
  %v2317 = vadd.f32 %v2245, %v2316
  %v2318 = vpop.f32.mrb[0].mxu0
  %v2319 = vpop.f32.mrb[0].mxu0
  %v2320 = vadd.f32 %v2245, %v2319
  %v2321 = vpop.f32.mrb[0].mxu0
  %2322 = vmatprep.mubr.bf16.mxu0 0
  %2323 = vmatmul.mubr.bf16.gmra.mrb[0].mxu0 %v2262
  %v2324 = vpop.f32.mrb[0].mxu0
  %v2325 = vadd.f32 %v2245, %v2324
  %v2326 = vpop.f32.mrb[0].mxu0
  %v2327 = vpop.f32.mrb[0].mxu0
  %v2328 = vadd.f32 %v2245, %v2327
  %v2329 = vpop.f32.mrb[0].mxu0
  %2330 = vmatprep.mubr.bf16.mxu0 0
  %2331 = vmatmul.mubr.bf16.gmra.mrb[0].mxu0 %v2265
  %v2332 = vpop.f32.mrb[0].mxu0
  %v2333 = vadd.f32 %v2245, %v2332
  %v2334 = vpop.f32.mrb[0].mxu0
  %v2335 = vpop.f32.mrb[0].mxu0
  %v2336 = vadd.f32 %v2245, %v2335
  %v2337 = vpop.f32.mrb[0].mxu0
  %2338 = vmatprep.mubr.bf16.mxu0 0
  %2339 = vmatmul.mubr.bf16.gmra.mrb[0].mxu0 %v2268
  %v2340 = vpop.f32.mrb[0].mxu0
  %v2341 = vadd.f32 %v2245, %v2340
  %v2342 = vpop.f32.mrb[0].mxu0
  %v2343 = vpop.f32.mrb[0].mxu0
  %v2344 = vadd.f32 %v2245, %v2343
  %v2345 = vpop.f32.mrb[0].mxu0
  %2346 = vmatprep.mubr.bf16.mxu0 0
  %2347 = vmatmul.mubr.bf16.gmra.mrb[0].mxu0 %v2271
  %v2348 = vpop.f32.mrb[0].mxu0
  %v2349 = vadd.f32 %v2245, %v2348
  %v2350 = vpop.f32.mrb[0].mxu0
  %v2351 = vpop.f32.mrb[0].mxu0
  %v2352 = vadd.f32 %v2245, %v2351
  %v2353 = vpop.f32.mrb[0].mxu0
  %2354 = vmatprep.mubr.bf16.mxu0 0
  %2355 = vmatmul.mubr.bf16.gmra.mrb[0].mxu0 %v2274
  %v2356 = vpop.f32.mrb[0].mxu0
  %v2357 = vadd.f32 %v2245, %v2356
  %v2358 = vpop.f32.mrb[0].mxu0
  %v2359 = vpop.f32.mrb[0].mxu0
  %v2360 = vadd.f32 %v2245, %v2359
  %v2361 = vpop.f32.mrb[0].mxu0
  %2362 = vmatprep.mubr.bf16.mxu0 0
  %2363 = vmatmul.mubr.bf16.gmra.mrb[0].mxu0 %v2277
  %v2364 = vpop.f32.mrb[0].mxu0
  %v2365 = vadd.f32 %v2245, %v2364
  %v2366 = vpop.f32.mrb[0].mxu0
  %v2367 = vpop.f32.mrb[0].mxu0
  %v2368 = vadd.f32 %v2245, %v2367
  %v2369 = vpop.f32.mrb[0].mxu0
  %2370 = vmatprep.mubr.bf16.mxu0 0
  %2371 = vmatmul.mubr.bf16.gmra.mrb[0].mxu0 %v2280
  %v2372 = vpop.f32.mrb[0].mxu0
  %v2373 = vadd.f32 %v2245, %v2372
  %v2374 = vpop.f32.mrb[0].mxu0
  %v2375 = vpop.f32.mrb[0].mxu0
  %v2376 = vadd.f32 %v2245, %v2375
  %v2377 = vpop.f32.mrb[0].mxu0
  %2378 = vdwg.mxu0
  %v2379 = vadd.f32 %v2317, %v380
  %v2380 = vadd.f32 %v2320, %v383
  %v2381 = vadd.f32 %v2325, %v388
  %v2382 = vadd.f32 %v2328, %v391
  %v2383 = vadd.f32 %v2333, %v396
  %v2384 = vadd.f32 %v2336, %v399
  %v2385 = vadd.f32 %v2341, %v404
  %v2386 = vadd.f32 %v2344, %v407
  %v2387 = vadd.f32 %v2349, %v412
  %v2388 = vadd.f32 %v2352, %v415
  %v2389 = vadd.f32 %v2357, %v420
  %v2390 = vadd.f32 %v2360, %v423
  %v2391 = vadd.f32 %v2365, %v428
  %v2392 = vadd.f32 %v2368, %v431
  %v2393 = vadd.f32 %v2373, %v436
  %v2394 = vadd.f32 %v2376, %v439
  %v2395 = vxor.u32 %v2379, 2147483648
  %v2396 = vxor.u32 %v2380, 2147483648
  %v2397 = vxor.u32 %v2381, 2147483648
  %v2398 = vxor.u32 %v2382, 2147483648
  %v2399 = vxor.u32 %v2383, 2147483648
  %v2400 = vxor.u32 %v2384, 2147483648
  %v2401 = vxor.u32 %v2385, 2147483648
  %v2402 = vxor.u32 %v2386, 2147483648
  %v2403 = vxor.u32 %v2387, 2147483648
  %v2404 = vxor.u32 %v2388, 2147483648
  %v2405 = vxor.u32 %v2389, 2147483648
  %v2406 = vxor.u32 %v2390, 2147483648
  %v2407 = vxor.u32 %v2391, 2147483648
  %v2408 = vxor.u32 %v2392, 2147483648
  %v2409 = vxor.u32 %v2393, 2147483648
  %v2410 = vxor.u32 %v2394, 2147483648
  %v2411 = vmul.f32 %v2395, 1.442695
  %v2412 = vpow.pop %v2411
  %v2413 = vmul.f32 %v2396, 1.442695
  %v2414 = vpow.pop %v2413
  %v2415 = vmul.f32 %v2397, 1.442695
  %v2416 = vpow.pop %v2415
  %v2417 = vmul.f32 %v2398, 1.442695
  %v2418 = vpow.pop %v2417
  %v2419 = vmul.f32 %v2399, 1.442695
  %v2420 = vpow.pop %v2419
  %v2421 = vmul.f32 %v2400, 1.442695
  %v2422 = vpow.pop %v2421
  %v2423 = vmul.f32 %v2401, 1.442695
  %v2424 = vpow.pop %v2423
  %v2425 = vmul.f32 %v2402, 1.442695
  %v2426 = vpow.pop %v2425
  %v2427 = vmul.f32 %v2403, 1.442695
  %v2428 = vpow.pop %v2427
  %v2429 = vmul.f32 %v2404, 1.442695
  %v2430 = vpow.pop %v2429
  %v2431 = vmul.f32 %v2405, 1.442695
  %v2432 = vpow.pop %v2431
  %v2433 = vmul.f32 %v2406, 1.442695
  %v2434 = vpow.pop %v2433
  %v2435 = vmul.f32 %v2407, 1.442695
  %v2436 = vpow.pop %v2435
  %v2437 = vmul.f32 %v2408, 1.442695
  %v2438 = vpow.pop %v2437
  %v2439 = vmul.f32 %v2409, 1.442695
  %v2440 = vpow.pop %v2439
  %v2441 = vmul.f32 %v2410, 1.442695
  %v2442 = vpow.pop %v2441
  %v2443 = vadd.f32 %v2412, 1.0
  %v2444 = vadd.f32 %v2414, 1.0
  %v2445 = vadd.f32 %v2416, 1.0
  %v2446 = vadd.f32 %v2418, 1.0
  %v2447 = vadd.f32 %v2420, 1.0
  %v2448 = vadd.f32 %v2422, 1.0
  %v2449 = vadd.f32 %v2424, 1.0
  %v2450 = vadd.f32 %v2426, 1.0
  %v2451 = vadd.f32 %v2428, 1.0
  %v2452 = vadd.f32 %v2430, 1.0
  %v2453 = vadd.f32 %v2432, 1.0
  %v2454 = vadd.f32 %v2434, 1.0
  %v2455 = vadd.f32 %v2436, 1.0
  %v2456 = vadd.f32 %v2438, 1.0
  %v2457 = vadd.f32 %v2440, 1.0
  %v2458 = vadd.f32 %v2442, 1.0
  %v2459 = vrcp.pop %v2443
  %v2460 = vmul.f32 1.0, %v2459
  %v2461 = vrcp.pop %v2444
  %v2462 = vmul.f32 1.0, %v2461
  %v2463 = vrcp.pop %v2445
  %v2464 = vmul.f32 1.0, %v2463
  %v2465 = vrcp.pop %v2446
  %v2466 = vmul.f32 1.0, %v2465
  %v2467 = vrcp.pop %v2447
  %v2468 = vmul.f32 1.0, %v2467
  %v2469 = vrcp.pop %v2448
  %v2470 = vmul.f32 1.0, %v2469
  %v2471 = vrcp.pop %v2449
  %v2472 = vmul.f32 1.0, %v2471
  %v2473 = vrcp.pop %v2450
  %v2474 = vmul.f32 1.0, %v2473
  %v2475 = vrcp.pop %v2451
  %v2476 = vmul.f32 1.0, %v2475
  %v2477 = vrcp.pop %v2452
  %v2478 = vmul.f32 1.0, %v2477
  %v2479 = vrcp.pop %v2453
  %v2480 = vmul.f32 1.0, %v2479
  %v2481 = vrcp.pop %v2454
  %v2482 = vmul.f32 1.0, %v2481
  %v2483 = vrcp.pop %v2455
  %v2484 = vmul.f32 1.0, %v2483
  %v2485 = vrcp.pop %v2456
  %v2486 = vmul.f32 1.0, %v2485
  %v2487 = vrcp.pop %v2457
  %v2488 = vmul.f32 1.0, %v2487
  %v2489 = vrcp.pop %v2458
  %v2490 = vmul.f32 1.0, %v2489
  %v2491 = vmul.f32 %v2460, %v459
  %v2492 = vmul.f32 %v2462, %v461
  %v2493 = vmul.f32 %v2464, %v463
  %v2494 = vmul.f32 %v2466, %v465
  %v2495 = vmul.f32 %v2468, %v467
  %v2496 = vmul.f32 %v2470, %v469
  %v2497 = vmul.f32 %v2472, %v471
  %v2498 = vmul.f32 %v2474, %v473
  %v2499 = vmul.f32 %v2476, %v475
  %v2500 = vmul.f32 %v2478, %v477
  %v2501 = vmul.f32 %v2480, %v479
  %v2502 = vmul.f32 %v2482, %v481
  %v2503 = vmul.f32 %v2484, %v483
  %v2504 = vmul.f32 %v2486, %v485
  %v2505 = vmul.f32 %v2488, %v487
  %v2506 = vmul.f32 %v2490, %v489
  %2523 = vrot.lane.b32.xlu0 %v2491, 64
  %v2524 = vpop.permute.xlu0 %2523
  %2525 = vrot.lane.b32.xlu0 %v2492, 64
  %v2526 = vpop.permute.xlu0 %2525
  %2527 = vrot.lane.b32.xlu0 %v2493, 64
  %v2528 = vpop.permute.xlu0 %2527
  %2529 = vrot.lane.b32.xlu0 %v2494, 64
  %v2530 = vpop.permute.xlu0 %2529
  %2531 = vrot.lane.b32.xlu0 %v2495, 64
  %v2532 = vpop.permute.xlu0 %2531
  %2533 = vrot.lane.b32.xlu0 %v2496, 64
  %v2534 = vpop.permute.xlu0 %2533
  %2535 = vrot.lane.b32.xlu0 %v2497, 64
  %v2536 = vpop.permute.xlu0 %2535
  %2537 = vrot.lane.b32.xlu0 %v2498, 64
  %v2538 = vpop.permute.xlu0 %2537
  %2539 = vrot.lane.b32.xlu0 %v2499, 64
  %v2540 = vpop.permute.xlu0 %2539
  %2541 = vrot.lane.b32.xlu0 %v2500, 64
  %v2542 = vpop.permute.xlu0 %2541
  %2543 = vrot.lane.b32.xlu0 %v2501, 64
  %v2544 = vpop.permute.xlu0 %2543
  %2545 = vrot.lane.b32.xlu0 %v2502, 64
  %v2546 = vpop.permute.xlu0 %2545
  %2547 = vrot.lane.b32.xlu0 %v2503, 64
  %v2548 = vpop.permute.xlu0 %2547
  %2549 = vrot.lane.b32.xlu0 %v2504, 64
  %v2550 = vpop.permute.xlu0 %2549
  %2551 = vrot.lane.b32.xlu0 %v2505, 64
  %v2552 = vpop.permute.xlu0 %2551
  %2553 = vrot.lane.b32.xlu0 %v2506, 64
  %v2554 = vpop.permute.xlu0 %2553
  %v2571 = vadd.f32 %v2317, %v2524
  %v2572 = vadd.f32 %v2320, %v2526
  %v2573 = vadd.f32 %v2325, %v2528
  %v2574 = vadd.f32 %v2328, %v2530
  %v2575 = vadd.f32 %v2333, %v2532
  %v2576 = vadd.f32 %v2336, %v2534
  %v2577 = vadd.f32 %v2341, %v2536
  %v2578 = vadd.f32 %v2344, %v2538
  %v2579 = vadd.f32 %v2349, %v2540
  %v2580 = vadd.f32 %v2352, %v2542
  %v2581 = vadd.f32 %v2357, %v2544
  %v2582 = vadd.f32 %v2360, %v2546
  %v2583 = vadd.f32 %v2365, %v2548
  %v2584 = vadd.f32 %v2368, %v2550
  %v2585 = vadd.f32 %v2373, %v2552
  %v2586 = vadd.f32 %v2376, %v2554
  %v2587 = vtanh.pop %v2571
  %v2588 = vtanh.pop %v2572
  %v2589 = vtanh.pop %v2573
  %v2590 = vtanh.pop %v2574
  %v2591 = vtanh.pop %v2575
  %v2592 = vtanh.pop %v2576
  %v2593 = vtanh.pop %v2577
  %v2594 = vtanh.pop %v2578
  %v2595 = vtanh.pop %v2579
  %v2596 = vtanh.pop %v2580
  %v2597 = vtanh.pop %v2581
  %v2598 = vtanh.pop %v2582
  %v2599 = vtanh.pop %v2583
  %v2600 = vtanh.pop %v2584
  %v2601 = vtanh.pop %v2585
  %v2602 = vtanh.pop %v2586
  %v2603 = vsub.f32 1.0, %v2460
  %v2604 = vsub.f32 1.0, %v2462
  %v2605 = vsub.f32 1.0, %v2464
  %v2606 = vsub.f32 1.0, %v2466
  %v2607 = vsub.f32 1.0, %v2468
  %v2608 = vsub.f32 1.0, %v2470
  %v2609 = vsub.f32 1.0, %v2472
  %v2610 = vsub.f32 1.0, %v2474
  %v2611 = vsub.f32 1.0, %v2476
  %v2612 = vsub.f32 1.0, %v2478
  %v2613 = vsub.f32 1.0, %v2480
  %v2614 = vsub.f32 1.0, %v2482
  %v2615 = vsub.f32 1.0, %v2484
  %v2616 = vsub.f32 1.0, %v2486
  %v2617 = vsub.f32 1.0, %v2488
  %v2618 = vsub.f32 1.0, %v2490
  %2635 = vrot.lane.b32.xlu0 %v2587, 96
  %v2636 = vpop.permute.xlu0 %2635
  %2637 = vrot.lane.b32.xlu0 %v2588, 96
  %v2638 = vpop.permute.xlu0 %2637
  %2639 = vrot.lane.b32.xlu0 %v2589, 96
  %v2640 = vpop.permute.xlu0 %2639
  %2641 = vrot.lane.b32.xlu0 %v2590, 96
  %v2642 = vpop.permute.xlu0 %2641
  %2643 = vrot.lane.b32.xlu0 %v2591, 96
  %v2644 = vpop.permute.xlu0 %2643
  %2645 = vrot.lane.b32.xlu0 %v2592, 96
  %v2646 = vpop.permute.xlu0 %2645
  %2647 = vrot.lane.b32.xlu0 %v2593, 96
  %v2648 = vpop.permute.xlu0 %2647
  %2649 = vrot.lane.b32.xlu0 %v2594, 96
  %v2650 = vpop.permute.xlu0 %2649
  %2651 = vrot.lane.b32.xlu0 %v2595, 96
  %v2652 = vpop.permute.xlu0 %2651
  %2653 = vrot.lane.b32.xlu0 %v2596, 96
  %v2654 = vpop.permute.xlu0 %2653
  %2655 = vrot.lane.b32.xlu0 %v2597, 96
  %v2656 = vpop.permute.xlu0 %2655
  %2657 = vrot.lane.b32.xlu0 %v2598, 96
  %v2658 = vpop.permute.xlu0 %2657
  %2659 = vrot.lane.b32.xlu0 %v2599, 96
  %v2660 = vpop.permute.xlu0 %2659
  %2661 = vrot.lane.b32.xlu0 %v2600, 96
  %v2662 = vpop.permute.xlu0 %2661
  %2663 = vrot.lane.b32.xlu0 %v2601, 96
  %v2664 = vpop.permute.xlu0 %2663
  %2665 = vrot.lane.b32.xlu0 %v2602, 96
  %v2666 = vpop.permute.xlu0 %2665
  %v2683 = vmul.f32 %v2603, %v2636
  %v2684 = vmul.f32 %v2604, %v2638
  %v2685 = vmul.f32 %v2605, %v2640
  %v2686 = vmul.f32 %v2606, %v2642
  %v2687 = vmul.f32 %v2607, %v2644
  %v2688 = vmul.f32 %v2608, %v2646
  %v2689 = vmul.f32 %v2609, %v2648
  %v2690 = vmul.f32 %v2610, %v2650
  %v2691 = vmul.f32 %v2611, %v2652
  %v2692 = vmul.f32 %v2612, %v2654
  %v2693 = vmul.f32 %v2613, %v2656
  %v2694 = vmul.f32 %v2614, %v2658
  %v2695 = vmul.f32 %v2615, %v2660
  %v2696 = vmul.f32 %v2616, %v2662
  %v2697 = vmul.f32 %v2617, %v2664
  %v2698 = vmul.f32 %v2618, %v2666
  %2715 = vrot.lane.b32.xlu0 %v34, 32
  %v2716 = vpop.permute.xlu0 %2715
  %2717 = vrot.lane.b32.xlu0 %v35, 32
  %v2718 = vpop.permute.xlu0 %2717
  %2719 = vrot.lane.b32.xlu0 %v36, 32
  %v2720 = vpop.permute.xlu0 %2719
  %2721 = vrot.lane.b32.xlu0 %v37, 32
  %v2722 = vpop.permute.xlu0 %2721
  %2723 = vrot.lane.b32.xlu0 %v38, 32
  %v2724 = vpop.permute.xlu0 %2723
  %2725 = vrot.lane.b32.xlu0 %v39, 32
  %v2726 = vpop.permute.xlu0 %2725
  %2727 = vrot.lane.b32.xlu0 %v40, 32
  %v2728 = vpop.permute.xlu0 %2727
  %2729 = vrot.lane.b32.xlu0 %v41, 32
  %v2730 = vpop.permute.xlu0 %2729
  %2731 = vrot.lane.b32.xlu0 %v42, 32
  %v2732 = vpop.permute.xlu0 %2731
  %2733 = vrot.lane.b32.xlu0 %v43, 32
  %v2734 = vpop.permute.xlu0 %2733
  %2735 = vrot.lane.b32.xlu0 %v44, 32
  %v2736 = vpop.permute.xlu0 %2735
  %2737 = vrot.lane.b32.xlu0 %v45, 32
  %v2738 = vpop.permute.xlu0 %2737
  %2739 = vrot.lane.b32.xlu0 %v46, 32
  %v2740 = vpop.permute.xlu0 %2739
  %2741 = vrot.lane.b32.xlu0 %v47, 32
  %v2742 = vpop.permute.xlu0 %2741
  %2743 = vrot.lane.b32.xlu0 %v48, 32
  %v2744 = vpop.permute.xlu0 %2743
  %2745 = vrot.lane.b32.xlu0 %v49, 32
  %v2746 = vpop.permute.xlu0 %2745
  %v2763 = vmul.f32 %v2460, %v2716
  %v2764 = vmul.f32 %v2462, %v2718
  %v2765 = vmul.f32 %v2464, %v2720
  %v2766 = vmul.f32 %v2466, %v2722
  %v2767 = vmul.f32 %v2468, %v2724
  %v2768 = vmul.f32 %v2470, %v2726
  %v2769 = vmul.f32 %v2472, %v2728
  %v2770 = vmul.f32 %v2474, %v2730
  %v2771 = vmul.f32 %v2476, %v2732
  %v2772 = vmul.f32 %v2478, %v2734
  %v2773 = vmul.f32 %v2480, %v2736
  %v2774 = vmul.f32 %v2482, %v2738
  %v2775 = vmul.f32 %v2484, %v2740
  %v2776 = vmul.f32 %v2486, %v2742
  %v2777 = vmul.f32 %v2488, %v2744
  %v2778 = vmul.f32 %v2490, %v2746
  %v2779 = vadd.f32 %v2683, %v2763
  %v2780 = vadd.f32 %v2684, %v2764
  %v2781 = vadd.f32 %v2685, %v2765
  %v2782 = vadd.f32 %v2686, %v2766
  %v2783 = vadd.f32 %v2687, %v2767
  %v2784 = vadd.f32 %v2688, %v2768
  %v2785 = vadd.f32 %v2689, %v2769
  %v2786 = vadd.f32 %v2690, %v2770
  %v2787 = vadd.f32 %v2691, %v2771
  %v2788 = vadd.f32 %v2692, %v2772
  %v2789 = vadd.f32 %v2693, %v2773
  %v2790 = vadd.f32 %v2694, %v2774
  %v2791 = vadd.f32 %v2695, %v2775
  %v2792 = vadd.f32 %v2696, %v2776
  %v2793 = vadd.f32 %v2697, %v2777
  %v2794 = vadd.f32 %v2698, %v2778
  %v2795 = vpack.c.bf16 %v2780, %v2779
  %v2796 = vpack.c.bf16 %v2782, %v2781
  %v2797 = vpack.c.bf16 %v2784, %v2783
  %v2798 = vpack.c.bf16 %v2786, %v2785
  %v2799 = vpack.c.bf16 %v2788, %v2787
  %v2800 = vpack.c.bf16 %v2790, %v2789
  %v2801 = vpack.c.bf16 %v2792, %v2791
  %v2802 = vpack.c.bf16 %v2794, %v2793
  %v2803 = vld [vmem:[%s3 + $0x38] sm:$0xf]
  %v2804 = vld [vmem:[%s3 + $0x3c] sm:$0xf]
  %v2805 = vld [vmem:[%s3 + $0x40] sm:$0xf]
  %v2806 = vld [vmem:[%s3 + $0x44] sm:$0xf]
  %v2807 = vlaneseq
  %v2808 = vshrl.u32 %v2807, 7
  %v2809 = vsub.s32 3, %v2808
  %v2810 = vrot.slane %v51, %v2809
  %2819 = vrot.lane.b32.xlu0 %v2795, 96
  %v2820 = vpop.permute.xlu0 %2819
  %2821 = vrot.lane.b32.xlu0 %v2796, 96
  %v2822 = vpop.permute.xlu0 %2821
  %2823 = vrot.lane.b32.xlu0 %v2797, 96
  %v2824 = vpop.permute.xlu0 %2823
  %2825 = vrot.lane.b32.xlu0 %v2798, 96
  %v2826 = vpop.permute.xlu0 %2825
  %2827 = vrot.lane.b32.xlu0 %v2799, 96
  %v2828 = vpop.permute.xlu0 %2827
  %2829 = vrot.lane.b32.xlu0 %v2800, 96
  %v2830 = vpop.permute.xlu0 %2829
  %2831 = vrot.lane.b32.xlu0 %v2801, 96
  %v2832 = vpop.permute.xlu0 %2831
  %2833 = vrot.lane.b32.xlu0 %v2802, 96
  %v2834 = vpop.permute.xlu0 %2833
  %v2839 = vunpack.c.l.b16 %v2803
  %v2840 = vunpack.c.l.b16 %v2804
  %v2841 = vunpack.c.l.b16 %v2805
  %v2842 = vunpack.c.l.b16 %v2806
  %v2843 = vpack.c.b16 %v2840, %v2839
  %v2844 = vpack.c.b16 %v2842, %v2841
  %v2848 = vsel %vm320, %v2820, 0
  %v2851 = vsel %vm320, %v2822, 0
  %v2854 = vsel %vm320, %v2824, 0
  %v2857 = vsel %vm320, %v2826, 0
  %v2860 = vsel %vm320, %v2828, 0
  %v2863 = vsel %vm320, %v2830, 0
  %v2866 = vsel %vm320, %v2832, 0
  %v2869 = vsel %vm320, %v2834, 0
  %2871 = vmatprep.subr.bf16.mxu0 0
  %2872 = vmatpush1.bf16.msra.mxu0 %v2843
  %2873 = vmatprep.subr.bf16.mxu0 0
  %2874 = vmatpush1.bf16.msra.mxu0 %v2844
  %2875 = vmatprep.subr.bf16.mxu0 0
  %2876 = vmatpush1.bf16.msra.mxu0 0
  %2877 = vmatprep.subr.bf16.mxu0 0
  %2878 = vmatpush1.bf16.msra.mxu0 0
  %2879 = vmatprep.subr.bf16.mxu0 0
  %2880 = vmatpush1.bf16.msra.mxu0 0
  %2881 = vmatprep.subr.bf16.mxu0 0
  %2882 = vmatpush1.bf16.msra.mxu0 0
  %2883 = vmatprep.subr.bf16.mxu0 0
  %2884 = vmatpush1.bf16.msra.mxu0 0
  %2885 = vmatprep.subr.bf16.mxu0 0
  %2886 = vmatpush1.bf16.msra.mxu0 0
  %2887 = vmatprep.subr.bf16.mxu0 0
  %2888 = vmatpush1.bf16.msra.mxu0 0
  %2889 = vmatprep.subr.bf16.mxu0 0
  %2890 = vmatpush1.bf16.msra.mxu0 0
  %2891 = vmatprep.subr.bf16.mxu0 0
  %2892 = vmatpush1.bf16.msra.mxu0 0
  %2893 = vmatprep.subr.bf16.mxu0 0
  %2894 = vmatpush1.bf16.msra.mxu0 0
  %2895 = vmatprep.subr.bf16.mxu0 0
  %2896 = vmatpush1.bf16.msra.mxu0 0
  %2897 = vmatprep.subr.bf16.mxu0 0
  %2898 = vmatpush1.bf16.msra.mxu0 0
  %2899 = vmatprep.subr.bf16.mxu0 0
  %2900 = vmatpush1.bf16.msra.mxu0 0
  %2901 = vmatprep.subr.bf16.mxu0 0
  %2902 = vmatpush1.bf16.msra.mxu0 0
  %2903 = vmatprep.mubr.bf16.mxu0 0
  %2904 = vmatmul.mubr.bf16.gmra.mrb[0].mxu0 %v2848
  %v2905 = vpop.f32.mrb[0].mxu0
  %v2906 = vadd.f32 %v2810, %v2905
  %v2907 = vpop.f32.mrb[0].mxu0
  %v2908 = vpop.f32.mrb[0].mxu0
  %v2909 = vadd.f32 %v2810, %v2908
  %v2910 = vpop.f32.mrb[0].mxu0
  %2911 = vmatprep.mubr.bf16.mxu0 0
  %2912 = vmatmul.mubr.bf16.gmra.mrb[0].mxu0 %v2851
  %v2913 = vpop.f32.mrb[0].mxu0
  %v2914 = vadd.f32 %v2810, %v2913
  %v2915 = vpop.f32.mrb[0].mxu0
  %v2916 = vpop.f32.mrb[0].mxu0
  %v2917 = vadd.f32 %v2810, %v2916
  %v2918 = vpop.f32.mrb[0].mxu0
  %2919 = vmatprep.mubr.bf16.mxu0 0
  %2920 = vmatmul.mubr.bf16.gmra.mrb[0].mxu0 %v2854
  %v2921 = vpop.f32.mrb[0].mxu0
  %v2922 = vadd.f32 %v2810, %v2921
  %v2923 = vpop.f32.mrb[0].mxu0
  %v2924 = vpop.f32.mrb[0].mxu0
  %v2925 = vadd.f32 %v2810, %v2924
  %v2926 = vpop.f32.mrb[0].mxu0
  %2927 = vmatprep.mubr.bf16.mxu0 0
  %2928 = vmatmul.mubr.bf16.gmra.mrb[0].mxu0 %v2857
  %v2929 = vpop.f32.mrb[0].mxu0
  %v2930 = vadd.f32 %v2810, %v2929
  %v2931 = vpop.f32.mrb[0].mxu0
  %v2932 = vpop.f32.mrb[0].mxu0
  %v2933 = vadd.f32 %v2810, %v2932
  %v2934 = vpop.f32.mrb[0].mxu0
  %2935 = vmatprep.mubr.bf16.mxu0 0
  %2936 = vmatmul.mubr.bf16.gmra.mrb[0].mxu0 %v2860
  %v2937 = vpop.f32.mrb[0].mxu0
  %v2938 = vadd.f32 %v2810, %v2937
  %v2939 = vpop.f32.mrb[0].mxu0
  %v2940 = vpop.f32.mrb[0].mxu0
  %v2941 = vadd.f32 %v2810, %v2940
  %v2942 = vpop.f32.mrb[0].mxu0
  %2943 = vmatprep.mubr.bf16.mxu0 0
  %2944 = vmatmul.mubr.bf16.gmra.mrb[0].mxu0 %v2863
  %v2945 = vpop.f32.mrb[0].mxu0
  %v2946 = vadd.f32 %v2810, %v2945
  %v2947 = vpop.f32.mrb[0].mxu0
  %v2948 = vpop.f32.mrb[0].mxu0
  %v2949 = vadd.f32 %v2810, %v2948
  %v2950 = vpop.f32.mrb[0].mxu0
  %2951 = vmatprep.mubr.bf16.mxu0 0
  %2952 = vmatmul.mubr.bf16.gmra.mrb[0].mxu0 %v2866
  %v2953 = vpop.f32.mrb[0].mxu0
  %v2954 = vadd.f32 %v2810, %v2953
  %v2955 = vpop.f32.mrb[0].mxu0
  %v2956 = vpop.f32.mrb[0].mxu0
  %v2957 = vadd.f32 %v2810, %v2956
  %v2958 = vpop.f32.mrb[0].mxu0
  %2959 = vmatprep.mubr.bf16.mxu0 0
  %2960 = vmatmul.mubr.bf16.gmra.mrb[0].mxu0 %v2869
  %v2961 = vpop.f32.mrb[0].mxu0
  %v2962 = vadd.f32 %v2810, %v2961
  %v2963 = vpop.f32.mrb[0].mxu0
  %v2964 = vpop.f32.mrb[0].mxu0
  %v2965 = vadd.f32 %v2810, %v2964
  %v2966 = vpop.f32.mrb[0].mxu0
  %2967 = vdwg.mxu0
  %v2968 = vsel %vm683, %v2906, -inf
  %2969 = vmax.xlane.f32.xlu0 %v2968
  %v2970 = vpop.xlane.xlu0 %2969
  %v2971 = vsel %vm683, %v2909, -inf
  %2972 = vmax.xlane.f32.xlu0 %v2971
  %v2973 = vpop.xlane.xlu0 %2972
  %v2974 = vsel %vm683, %v2914, -inf
  %2975 = vmax.xlane.f32.xlu0 %v2974
  %v2976 = vpop.xlane.xlu0 %2975
  %v2977 = vsel %vm683, %v2917, -inf
  %2978 = vmax.xlane.f32.xlu0 %v2977
  %v2979 = vpop.xlane.xlu0 %2978
  %v2980 = vsel %vm683, %v2922, -inf
  %2981 = vmax.xlane.f32.xlu0 %v2980
  %v2982 = vpop.xlane.xlu0 %2981
  %v2983 = vsel %vm683, %v2925, -inf
  %2984 = vmax.xlane.f32.xlu0 %v2983
  %v2985 = vpop.xlane.xlu0 %2984
  %v2986 = vsel %vm683, %v2930, -inf
  %2987 = vmax.xlane.f32.xlu0 %v2986
  %v2988 = vpop.xlane.xlu0 %2987
  %v2989 = vsel %vm683, %v2933, -inf
  %2990 = vmax.xlane.f32.xlu0 %v2989
  %v2991 = vpop.xlane.xlu0 %2990
  %v2992 = vsel %vm683, %v2938, -inf
  %2993 = vmax.xlane.f32.xlu0 %v2992
  %v2994 = vpop.xlane.xlu0 %2993
  %v2995 = vsel %vm683, %v2941, -inf
  %2996 = vmax.xlane.f32.xlu0 %v2995
  %v2997 = vpop.xlane.xlu0 %2996
  %v2998 = vsel %vm683, %v2946, -inf
  %2999 = vmax.xlane.f32.xlu0 %v2998
  %v3000 = vpop.xlane.xlu0 %2999
  %v3001 = vsel %vm683, %v2949, -inf
  %3002 = vmax.xlane.f32.xlu0 %v3001
  %v3003 = vpop.xlane.xlu0 %3002
  %v3004 = vsel %vm683, %v2954, -inf
  %3005 = vmax.xlane.f32.xlu0 %v3004
  %v3006 = vpop.xlane.xlu0 %3005
  %v3007 = vsel %vm683, %v2957, -inf
  %3008 = vmax.xlane.f32.xlu0 %v3007
  %v3009 = vpop.xlane.xlu0 %3008
  %v3010 = vsel %vm683, %v2962, -inf
  %3011 = vmax.xlane.f32.xlu0 %v3010
  %v3012 = vpop.xlane.xlu0 %3011
  %v3013 = vsel %vm683, %v2965, -inf
  %3014 = vmax.xlane.f32.xlu0 %v3013
  %v3015 = vpop.xlane.xlu0 %3014
  %v3016 = vsub.f32 %v2906, %v2970
  %v3017 = vsub.f32 %v2909, %v2973
  %v3018 = vsub.f32 %v2914, %v2976
  %v3019 = vsub.f32 %v2917, %v2979
  %v3020 = vsub.f32 %v2922, %v2982
  %v3021 = vsub.f32 %v2925, %v2985
  %v3022 = vsub.f32 %v2930, %v2988
  %v3023 = vsub.f32 %v2933, %v2991
  %v3024 = vsub.f32 %v2938, %v2994
  %v3025 = vsub.f32 %v2941, %v2997
  %v3026 = vsub.f32 %v2946, %v3000
  %v3027 = vsub.f32 %v2949, %v3003
  %v3028 = vsub.f32 %v2954, %v3006
  %v3029 = vsub.f32 %v2957, %v3009
  %v3030 = vsub.f32 %v2962, %v3012
  %v3031 = vsub.f32 %v2965, %v3015
  %v3032 = vmul.f32 %v3016, 1.442695
  %v3033 = vpow.pop %v3032
  %v3034 = vmul.f32 %v3017, 1.442695
  %v3035 = vpow.pop %v3034
  %v3036 = vmul.f32 %v3018, 1.442695
  %v3037 = vpow.pop %v3036
  %v3038 = vmul.f32 %v3019, 1.442695
  %v3039 = vpow.pop %v3038
  %v3040 = vmul.f32 %v3020, 1.442695
  %v3041 = vpow.pop %v3040
  %v3042 = vmul.f32 %v3021, 1.442695
  %v3043 = vpow.pop %v3042
  %v3044 = vmul.f32 %v3022, 1.442695
  %v3045 = vpow.pop %v3044
  %v3046 = vmul.f32 %v3023, 1.442695
  %v3047 = vpow.pop %v3046
  %v3048 = vmul.f32 %v3024, 1.442695
  %v3049 = vpow.pop %v3048
  %v3050 = vmul.f32 %v3025, 1.442695
  %v3051 = vpow.pop %v3050
  %v3052 = vmul.f32 %v3026, 1.442695
  %v3053 = vpow.pop %v3052
  %v3054 = vmul.f32 %v3027, 1.442695
  %v3055 = vpow.pop %v3054
  %v3056 = vmul.f32 %v3028, 1.442695
  %v3057 = vpow.pop %v3056
  %v3058 = vmul.f32 %v3029, 1.442695
  %v3059 = vpow.pop %v3058
  %v3060 = vmul.f32 %v3030, 1.442695
  %v3061 = vpow.pop %v3060
  %v3062 = vmul.f32 %v3031, 1.442695
  %v3063 = vpow.pop %v3062
  %v3064 = vsel %vm683, %v3033, 0.0
  %3065 = vadd.xlane.f32.xlu0 %v3064
  %v3066 = vpop.xlane.xlu0 %3065
  %v3067 = vsel %vm683, %v3035, 0.0
  %3068 = vadd.xlane.f32.xlu0 %v3067
  %v3069 = vpop.xlane.xlu0 %3068
  %v3070 = vsel %vm683, %v3037, 0.0
  %3071 = vadd.xlane.f32.xlu0 %v3070
  %v3072 = vpop.xlane.xlu0 %3071
  %v3073 = vsel %vm683, %v3039, 0.0
  %3074 = vadd.xlane.f32.xlu0 %v3073
  %v3075 = vpop.xlane.xlu0 %3074
  %v3076 = vsel %vm683, %v3041, 0.0
  %3077 = vadd.xlane.f32.xlu0 %v3076
  %v3078 = vpop.xlane.xlu0 %3077
  %v3079 = vsel %vm683, %v3043, 0.0
  %3080 = vadd.xlane.f32.xlu0 %v3079
  %v3081 = vpop.xlane.xlu0 %3080
  %v3082 = vsel %vm683, %v3045, 0.0
  %3083 = vadd.xlane.f32.xlu0 %v3082
  %v3084 = vpop.xlane.xlu0 %3083
  %v3085 = vsel %vm683, %v3047, 0.0
  %3086 = vadd.xlane.f32.xlu0 %v3085
  %v3087 = vpop.xlane.xlu0 %3086
  %v3088 = vsel %vm683, %v3049, 0.0
  %3089 = vadd.xlane.f32.xlu0 %v3088
  %v3090 = vpop.xlane.xlu0 %3089
  %v3091 = vsel %vm683, %v3051, 0.0
  %3092 = vadd.xlane.f32.xlu0 %v3091
  %v3093 = vpop.xlane.xlu0 %3092
  %v3094 = vsel %vm683, %v3053, 0.0
  %3095 = vadd.xlane.f32.xlu0 %v3094
  %v3096 = vpop.xlane.xlu0 %3095
  %v3097 = vsel %vm683, %v3055, 0.0
  %3098 = vadd.xlane.f32.xlu0 %v3097
  %v3099 = vpop.xlane.xlu0 %3098
  %v3100 = vsel %vm683, %v3057, 0.0
  %3101 = vadd.xlane.f32.xlu0 %v3100
  %v3102 = vpop.xlane.xlu0 %3101
  %v3103 = vsel %vm683, %v3059, 0.0
  %3104 = vadd.xlane.f32.xlu0 %v3103
  %v3105 = vpop.xlane.xlu0 %3104
  %v3106 = vsel %vm683, %v3061, 0.0
  %3107 = vadd.xlane.f32.xlu0 %v3106
  %v3108 = vpop.xlane.xlu0 %3107
  %v3109 = vsel %vm683, %v3063, 0.0
  %3110 = vadd.xlane.f32.xlu0 %v3109
  %v3111 = vpop.xlane.xlu0 %3110
  %v3112 = vlog2.pop %v3066
  %v3113 = vmul.f32 %v3112, 0.6931472
  %v3114 = vlog2.pop %v3069
  %v3115 = vmul.f32 %v3114, 0.6931472
  %v3116 = vlog2.pop %v3072
  %v3117 = vmul.f32 %v3116, 0.6931472
  %v3118 = vlog2.pop %v3075
  %v3119 = vmul.f32 %v3118, 0.6931472
  %v3120 = vlog2.pop %v3078
  %v3121 = vmul.f32 %v3120, 0.6931472
  %v3122 = vlog2.pop %v3081
  %v3123 = vmul.f32 %v3122, 0.6931472
  %v3124 = vlog2.pop %v3084
  %v3125 = vmul.f32 %v3124, 0.6931472
  %v3126 = vlog2.pop %v3087
  %v3127 = vmul.f32 %v3126, 0.6931472
  %v3128 = vlog2.pop %v3090
  %v3129 = vmul.f32 %v3128, 0.6931472
  %v3130 = vlog2.pop %v3093
  %v3131 = vmul.f32 %v3130, 0.6931472
  %v3132 = vlog2.pop %v3096
  %v3133 = vmul.f32 %v3132, 0.6931472
  %v3134 = vlog2.pop %v3099
  %v3135 = vmul.f32 %v3134, 0.6931472
  %v3136 = vlog2.pop %v3102
  %v3137 = vmul.f32 %v3136, 0.6931472
  %v3138 = vlog2.pop %v3105
  %v3139 = vmul.f32 %v3138, 0.6931472
  %v3140 = vlog2.pop %v3108
  %v3141 = vmul.f32 %v3140, 0.6931472
  %v3142 = vlog2.pop %v3111
  %v3143 = vmul.f32 %v3142, 0.6931472
  %v3144 = vsub.f32 %v3016, %v3113
  %v3145 = vsub.f32 %v3017, %v3115
  %v3146 = vsub.f32 %v3018, %v3117
  %v3147 = vsub.f32 %v3019, %v3119
  %v3148 = vsub.f32 %v3020, %v3121
  %v3149 = vsub.f32 %v3021, %v3123
  %v3150 = vsub.f32 %v3022, %v3125
  %v3151 = vsub.f32 %v3023, %v3127
  %v3152 = vsub.f32 %v3024, %v3129
  %v3153 = vsub.f32 %v3025, %v3131
  %v3154 = vsub.f32 %v3026, %v3133
  %v3155 = vsub.f32 %v3027, %v3135
  %v3156 = vsub.f32 %v3028, %v3137
  %v3157 = vsub.f32 %v3029, %v3139
  %v3158 = vsub.f32 %v3030, %v3141
  %v3159 = vsub.f32 %v3031, %v3143
  %3160 = vst.msk [vmem:[%s4] sm:$0xff] %vm683, %v3144
  %3161 = vst.msk [vmem:[%s4 + $0x8] sm:$0xff] %vm683, %v3145
  %3162 = vst.msk [vmem:[%s4 + $0x10] sm:$0xff] %vm683, %v3146
  %3163 = vst.msk [vmem:[%s4 + $0x18] sm:$0xff] %vm683, %v3147
  %3164 = vst.msk [vmem:[%s4 + $0x20] sm:$0xff] %vm683, %v3148
  %3165 = vst.msk [vmem:[%s4 + $0x28] sm:$0xff] %vm683, %v3149
  %3166 = vst.msk [vmem:[%s4 + $0x30] sm:$0xff] %vm683, %v3150
  %3167 = vst.msk [vmem:[%s4 + $0x38] sm:$0xff] %vm683, %v3151
  %3168 = vst.msk [vmem:[%s4 + $0x40] sm:$0xff] %vm683, %v3152
  %3169 = vst.msk [vmem:[%s4 + $0x48] sm:$0xff] %vm683, %v3153
  %3170 = vst.msk [vmem:[%s4 + $0x50] sm:$0xff] %vm683, %v3154
  %3171 = vst.msk [vmem:[%s4 + $0x58] sm:$0xff] %vm683, %v3155
  %3172 = vst.msk [vmem:[%s4 + $0x60] sm:$0xff] %vm683, %v3156
  %3173 = vst.msk [vmem:[%s4 + $0x68] sm:$0xff] %vm683, %v3157
  %3174 = vst.msk [vmem:[%s4 + $0x70] sm:$0xff] %vm683, %v3158
  %3175 = vst.msk [vmem:[%s4 + $0x78] sm:$0xff] %vm683, %v3159
  %3192 = vrot.lane.b32.xlu0 %v2779, 106
  %v3193 = vpop.permute.xlu0 %3192
  %3194 = vrot.lane.b32.xlu0 %v2780, 106
  %v3195 = vpop.permute.xlu0 %3194
  %3196 = vrot.lane.b32.xlu0 %v2781, 106
  %v3197 = vpop.permute.xlu0 %3196
  %3198 = vrot.lane.b32.xlu0 %v2782, 106
  %v3199 = vpop.permute.xlu0 %3198
  %3200 = vrot.lane.b32.xlu0 %v2783, 106
  %v3201 = vpop.permute.xlu0 %3200
  %3202 = vrot.lane.b32.xlu0 %v2784, 106
  %v3203 = vpop.permute.xlu0 %3202
  %3204 = vrot.lane.b32.xlu0 %v2785, 106
  %v3205 = vpop.permute.xlu0 %3204
  %3206 = vrot.lane.b32.xlu0 %v2786, 106
  %v3207 = vpop.permute.xlu0 %3206
  %3208 = vrot.lane.b32.xlu0 %v2787, 106
  %v3209 = vpop.permute.xlu0 %3208
  %3210 = vrot.lane.b32.xlu0 %v2788, 106
  %v3211 = vpop.permute.xlu0 %3210
  %3212 = vrot.lane.b32.xlu0 %v2789, 106
  %v3213 = vpop.permute.xlu0 %3212
  %3214 = vrot.lane.b32.xlu0 %v2790, 106
  %v3215 = vpop.permute.xlu0 %3214
  %3216 = vrot.lane.b32.xlu0 %v2791, 106
  %v3217 = vpop.permute.xlu0 %3216
  %3218 = vrot.lane.b32.xlu0 %v2792, 106
  %v3219 = vpop.permute.xlu0 %3218
  %3220 = vrot.lane.b32.xlu0 %v2793, 106
  %v3221 = vpop.permute.xlu0 %3220
  %3222 = vrot.lane.b32.xlu0 %v2794, 106
  %v3223 = vpop.permute.xlu0 %3222
  %vm3240 = vcmask 343120
  %3241 = vst.msk [vmem:[%s4] sm:$0xff] %vm3240, %v3193
  %3242 = vst.msk [vmem:[%s4 + $0x8] sm:$0xff] %vm3240, %v3195
  %3243 = vst.msk [vmem:[%s4 + $0x10] sm:$0xff] %vm3240, %v3197
  %3244 = vst.msk [vmem:[%s4 + $0x18] sm:$0xff] %vm3240, %v3199
  %3245 = vst.msk [vmem:[%s4 + $0x20] sm:$0xff] %vm3240, %v3201
  %3246 = vst.msk [vmem:[%s4 + $0x28] sm:$0xff] %vm3240, %v3203
  %3247 = vst.msk [vmem:[%s4 + $0x30] sm:$0xff] %vm3240, %v3205
  %3248 = vst.msk [vmem:[%s4 + $0x38] sm:$0xff] %vm3240, %v3207
  %3249 = vst.msk [vmem:[%s4 + $0x40] sm:$0xff] %vm3240, %v3209
  %3250 = vst.msk [vmem:[%s4 + $0x48] sm:$0xff] %vm3240, %v3211
  %3251 = vst.msk [vmem:[%s4 + $0x50] sm:$0xff] %vm3240, %v3213
  %3252 = vst.msk [vmem:[%s4 + $0x58] sm:$0xff] %vm3240, %v3215
  %3253 = vst.msk [vmem:[%s4 + $0x60] sm:$0xff] %vm3240, %v3217
  %3254 = vst.msk [vmem:[%s4 + $0x68] sm:$0xff] %vm3240, %v3219
  %3255 = vst.msk [vmem:[%s4 + $0x70] sm:$0xff] %vm3240, %v3221
  %3256 = vst.msk [vmem:[%s4 + $0x78] sm:$0xff] %vm3240, %v3223
  %3257 = vrot.lane.b32.xlu0 %v748, 10
  %v3258 = vpop.permute.xlu0 %3257
  %3259 = vrot.lane.b32.xlu0 %v749, 10
  %v3260 = vpop.permute.xlu0 %3259
  %3261 = vrot.lane.b32.xlu0 %v750, 10
  %v3262 = vpop.permute.xlu0 %3261
  %3263 = vrot.lane.b32.xlu0 %v751, 10
  %v3264 = vpop.permute.xlu0 %3263
  %3265 = vrot.lane.b32.xlu0 %v752, 10
  %v3266 = vpop.permute.xlu0 %3265
  %3267 = vrot.lane.b32.xlu0 %v753, 10
  %v3268 = vpop.permute.xlu0 %3267
  %3269 = vrot.lane.b32.xlu0 %v754, 10
  %v3270 = vpop.permute.xlu0 %3269
  %3271 = vrot.lane.b32.xlu0 %v755, 10
  %v3272 = vpop.permute.xlu0 %3271
  %3273 = vrot.lane.b32.xlu0 %v756, 10
  %v3274 = vpop.permute.xlu0 %3273
  %3275 = vrot.lane.b32.xlu0 %v757, 10
  %v3276 = vpop.permute.xlu0 %3275
  %3277 = vrot.lane.b32.xlu0 %v758, 10
  %v3278 = vpop.permute.xlu0 %3277
  %3279 = vrot.lane.b32.xlu0 %v759, 10
  %v3280 = vpop.permute.xlu0 %3279
  %3281 = vrot.lane.b32.xlu0 %v760, 10
  %v3282 = vpop.permute.xlu0 %3281
  %3283 = vrot.lane.b32.xlu0 %v761, 10
  %v3284 = vpop.permute.xlu0 %3283
  %3285 = vrot.lane.b32.xlu0 %v762, 10
  %v3286 = vpop.permute.xlu0 %3285
  %3287 = vrot.lane.b32.xlu0 %v763, 10
  %v3288 = vpop.permute.xlu0 %3287
  %vm3305 = vcmask 425296
  %3306 = vst.msk [vmem:[%s4] sm:$0xff] %vm3305, %v3258
  %3307 = vst.msk [vmem:[%s4 + $0x8] sm:$0xff] %vm3305, %v3260
  %3308 = vst.msk [vmem:[%s4 + $0x10] sm:$0xff] %vm3305, %v3262
  %3309 = vst.msk [vmem:[%s4 + $0x18] sm:$0xff] %vm3305, %v3264
  %3310 = vst.msk [vmem:[%s4 + $0x20] sm:$0xff] %vm3305, %v3266
  %3311 = vst.msk [vmem:[%s4 + $0x28] sm:$0xff] %vm3305, %v3268
  %3312 = vst.msk [vmem:[%s4 + $0x30] sm:$0xff] %vm3305, %v3270
  %3313 = vst.msk [vmem:[%s4 + $0x38] sm:$0xff] %vm3305, %v3272
  %3314 = vst.msk [vmem:[%s4 + $0x40] sm:$0xff] %vm3305, %v3274
  %3315 = vst.msk [vmem:[%s4 + $0x48] sm:$0xff] %vm3305, %v3276
  %3316 = vst.msk [vmem:[%s4 + $0x50] sm:$0xff] %vm3305, %v3278
  %3317 = vst.msk [vmem:[%s4 + $0x58] sm:$0xff] %vm3305, %v3280
  %3318 = vst.msk [vmem:[%s4 + $0x60] sm:$0xff] %vm3305, %v3282
  %3319 = vst.msk [vmem:[%s4 + $0x68] sm:$0xff] %vm3305, %v3284
  %3320 = vst.msk [vmem:[%s4 + $0x70] sm:$0xff] %vm3305, %v3286
  %3321 = vst.msk [vmem:[%s4 + $0x78] sm:$0xff] %vm3305, %v3288
  %vm3322 = vcmask 1047968
  %3323 = vst.msk [vmem:[%s4] sm:$0xff] %vm3322, 0.0
  %3324 = vst.msk [vmem:[%s4 + $0x8] sm:$0xff] %vm3322, 0.0
  %3325 = vst.msk [vmem:[%s4 + $0x10] sm:$0xff] %vm3322, 0.0
  %3326 = vst.msk [vmem:[%s4 + $0x18] sm:$0xff] %vm3322, 0.0
  %3327 = vst.msk [vmem:[%s4 + $0x20] sm:$0xff] %vm3322, 0.0
  %3328 = vst.msk [vmem:[%s4 + $0x28] sm:$0xff] %vm3322, 0.0
  %3329 = vst.msk [vmem:[%s4 + $0x30] sm:$0xff] %vm3322, 0.0
  %3330 = vst.msk [vmem:[%s4 + $0x38] sm:$0xff] %vm3322, 0.0
  %3331 = vst.msk [vmem:[%s4 + $0x40] sm:$0xff] %vm3322, 0.0
  %3332 = vst.msk [vmem:[%s4 + $0x48] sm:$0xff] %vm3322, 0.0
  %3333 = vst.msk [vmem:[%s4 + $0x50] sm:$0xff] %vm3322, 0.0
  %3334 = vst.msk [vmem:[%s4 + $0x58] sm:$0xff] %vm3322, 0.0
  %3335 = vst.msk [vmem:[%s4 + $0x60] sm:$0xff] %vm3322, 0.0
  %3336 = vst.msk [vmem:[%s4 + $0x68] sm:$0xff] %vm3322, 0.0
  %3337 = vst.msk [vmem:[%s4 + $0x70] sm:$0xff] %vm3322, 0.0
  %3338 = vst.msk [vmem:[%s4 + $0x78] sm:$0xff] %vm3322, 0.0
  // Predicated region
  $region18: #{attn_decoder_forward.1} parent=0 // pred_check
    _
  $region19: #{attn_decoder_forward.1} parent=0 // pred_check_branch
    %3340 = sbr.rel (0) target = $region21
  $region20: #{attn_decoder_forward.1} parent=0 // pred_region
    _
  $region21: #{attn_decoder_forward.1} parent=0 // pred_fallthru
    _
  // Predicated region
  $region22: #{attn_decoder_forward.1} parent=0 // pred_check
    _
  $region23: #{attn_decoder_forward.1} parent=0 // pred_check_branch
    %3342 = sbr.rel (0) target = $region25
  $region24: #{attn_decoder_forward.1} parent=0 // pred_region
    _
  $region25: #{attn_decoder_forward.1} parent=0 // pred_fallthru
    _

</llo_original>
